<compile_context>
chip_gen: v5e
topology: v5e:2x2
jax: 0.10.0
libtpu: 0.0.40
codegen_flags: <defaults>
</compile_context>

<pallas_src>
import jax
import jax.numpy as jnp
from jax.experimental import pallas as pl
from jax.experimental.pallas import tpu as pltpu

NUM_CLASSES = 10
HIDDEN = [512, 256, 256, 128, 128, 64, 64, 32, 32, NUM_CLASSES]
NUM_LAYERS = len(HIDDEN)
LANE = 128
N_HEAD = 4                       # fc1..fc4 keep their own (wide) weight refs
N_TAIL = NUM_LAYERS - N_HEAD     # fc5..fc10 are all 128x128 after padding


def _round_up(x, m):
    return (x + m - 1) // m * m


OUT_PAD = [_round_up(d, LANE) for d in HIDDEN]   # [512,256,256,128,128,...,128]
B_OFFS = [0]
for _d in OUT_PAD:
    B_OFFS.append(B_OFFS[-1] + _d)               # bias offsets, all 128-aligned


def bp_mlp_kernel(x_ref, w0_ref, w1_ref, w2_ref, w3_ref, wt_ref, bcat_ref, out_ref):
    """Fused 10-layer MLP on one (TB, D) batch tile.

    x_ref: f32 (TB, D) activation tile (pipelined over the batch grid).
    w0..w3: bf16 head weights; wt_ref: bf16 (6,128,128) stacked tail weights;
    bcat_ref: f32 (1, 1920) concatenated biases. All weights/biases use
    constant index_maps -> fetched once, VMEM-resident across grid steps.
    """
    h = x_ref[...].astype(jnp.bfloat16)           # in-kernel cast (VPU, free under DMA)
    head_refs = (w0_ref, w1_ref, w2_ref, w3_ref)
    for li in range(NUM_LAYERS):
        if li < N_HEAD:
            w = head_refs[li][...]                # bf16 (in_pad, out_pad)
        else:
            w = wt_ref[li - N_HEAD]               # bf16 (128, 128)
        # bf16 x bf16 on the MXU with f32 accumulation; f32 bias add.
        acc = jnp.dot(h, w, preferred_element_type=jnp.float32)
        acc = acc + bcat_ref[:, B_OFFS[li]:B_OFFS[li + 1]]   # (1, out_pad) f32
        if li < NUM_LAYERS - 1:                   # ReLU on fc1..fc9
            h = jnp.maximum(acc, 0.0).astype(jnp.bfloat16)
        else:                                     # fc10 is linear
            h = acc
    out_ref[...] = h.astype(out_ref.dtype)        # lane-dense (TB, 128) bf16 store


def _pick_tiling():
    """(default batch tile, TensorCores per chip) by generation."""
    try:
        kind = jax.devices()[0].device_kind.lower()
    except Exception:
        kind = ""
    if "v5 lite" in kind or "v5e" in kind or "v5litepod" in kind:
        return 256, 1     # v5e: single vst slot -> keep spill pressure down
    if "v7" in kind:
        return 512, 2     # v7x: 2 TCs/chip -> need >= 2 grid steps to shard
    return 512, 1         # v6e / default: big tiles amortize MXU fill/drain


def bp_model_forward(x_nchw, params, *, block_b=None):
    """x_nchw: (B, C, H, W) f32. params = (head_w, tail_w, b_cat) from
    pack_params. Returns (B, NUM_CLASSES) f32 logits."""
    head_w, tail_w, b_cat = params
    B = x_nchw.shape[0]
    x2d = x_nchw.reshape(B, -1)                   # f32; same flatten order as torch .view(B, -1)
    D = x2d.shape[1]

    default_tb, tc_count = _pick_tiling()
    if block_b is None:
        block_b = default_tb
    # Target tile: capped so multi-TC chips get >= tc_count grid steps, and a
    # multiple of 16 sublanes. If B is smaller than the target, use the full
    # batch as a single block (block == array dim is always a legal BlockSpec).
    tb_target = max(16, min(block_b, _round_up(pl.cdiv(B, tc_count), 16)))
    TB = B if B < tb_target else tb_target
    grid = (pl.cdiv(B, TB),)                      # ragged last tile, no jnp.pad

    out_pad = OUT_PAD[-1]                         # 128 (lane-dense output)

    in_specs = [pl.BlockSpec((TB, D), lambda i: (i, 0))]
    in_specs += [pl.BlockSpec(w.shape, lambda i: (0, 0)) for w in head_w]
    in_specs += [pl.BlockSpec(tail_w.shape, lambda i: (0, 0, 0)),
                 pl.BlockSpec(b_cat.shape, lambda i: (0, 0))]

    out_full = pl.pallas_call(
        bp_mlp_kernel,
        out_shape=jax.ShapeDtypeStruct((B, out_pad), jnp.bfloat16),
        grid=grid,
        in_specs=in_specs,
        out_specs=pl.BlockSpec((TB, out_pad), lambda i: (i, 0)),
        compiler_params=pltpu.CompilerParams(
            dimension_semantics=("parallel",),    # shard batch tiles over TCs (v7x)
            vmem_limit_bytes=32 << 20,            # ~10 MiB used at TB=512
        ),
    )(x2d, *head_w, tail_w, b_cat)

    return out_full[:, :NUM_CLASSES].astype(jnp.float32)


def init_params(input_dim, key):
    """Deterministic init matching PyTorch Linear (stored pre-transposed, f32)."""
    dims = [input_dim] + HIDDEN
    weights, biases = [], []
    for i in range(NUM_LAYERS):
        key, kw, kb = jax.random.split(key, 3)
        fan_in, fan_out = dims[i], dims[i + 1]
        bound = 1.0 / jnp.sqrt(fan_in)
        w = jax.random.uniform(kw, (fan_in, fan_out), jnp.float32, -bound, bound)
        b = jax.random.uniform(kb, (1, fan_out), jnp.float32, -bound, bound)
        weights.append(w)
        biases.append(b)
    return weights, biases


def pack_params(weights, biases):
    """Pad layer widths to 128-lane multiples with zeros (mathematically
    neutral), cast weights to bf16, stack the six 128x128 tail weights into one
    array, and concatenate all biases into a single lane-aligned f32 slab."""
    input_dim = weights[0].shape[0]

    head_w = []
    for i in range(N_HEAD):
        w = weights[i]
        fi, fo = w.shape
        pfi = input_dim if i == 0 else OUT_PAD[i - 1]
        pfo = OUT_PAD[i]
        wp = jnp.zeros((pfi, pfo), jnp.float32).at[:fi, :fo].set(w)
        head_w.append(wp.astype(jnp.bfloat16))

    tail = []
    for i in range(N_HEAD, NUM_LAYERS):
        w = weights[i]
        fi, fo = w.shape
        wp = jnp.zeros((OUT_PAD[i - 1], OUT_PAD[i]), jnp.float32).at[:fi, :fo].set(w)
        tail.append(wp)
    tail_w = jnp.stack(tail).astype(jnp.bfloat16)           # (6, 128, 128)

    b_cat = jnp.zeros((1, B_OFFS[-1]), jnp.float32)
    for i, b in enumerate(biases):
        b_cat = b_cat.at[0, B_OFFS[i]:B_OFFS[i] + b.size].set(b.reshape(-1))

    return head_w, tail_w, b_cat


def reference_forward_f32(x_nchw, weights, biases):
    """Exact (f32) reference matching the PyTorch module."""
    h = x_nchw.reshape(x_nchw.shape[0], -1)
    for i, (w, b) in enumerate(zip(weights, biases)):
        h = h @ w + b
        if i < NUM_LAYERS - 1:
            h = jnp.maximum(h, 0.0)
    return h


def reference_forward_bf16path(x_nchw, weights, biases):
    """Reference replicating the kernel's dtype path (bf16 ops, f32 accumulate,
    bf16 output store)."""
    h = x_nchw.reshape(x_nchw.shape[0], -1).astype(jnp.bfloat16)
    for i, (w, b) in enumerate(zip(weights, biases)):
        acc = jnp.dot(h, w.astype(jnp.bfloat16), preferred_element_type=jnp.float32)
        acc = acc + b
        if i < NUM_LAYERS - 1:
            h = jnp.maximum(acc, 0.0).astype(jnp.bfloat16)
        else:
            h = acc.astype(jnp.bfloat16).astype(jnp.float32)
    return h


if __name__ == "__main__":
    key = jax.random.PRNGKey(0)
    B, C, H, W = 2, 4, 16, 16                 # input_dim = 4*16*16 = 1024
    input_dim = C * H * W

    key, kx, kp = jax.random.split(key, 3)
    x = jax.random.normal(kx, (B, C, H, W), jnp.float32)
    weights, biases = init_params(input_dim, kp)
    params = pack_params(weights, biases)

    out = bp_model_forward(x, params)
    out = jax.block_until_ready(out)

    ref_bf16 = reference_forward_bf16path(x, weights, biases)
    ref_f32 = reference_forward_f32(x, weights, biases)

    assert out.shape == (B, NUM_CLASSES)
    # Same-dtype-path reference: should match very closely.
    assert jnp.allclose(out, ref_bf16, atol=2e-2, rtol=2e-2)
    # Full-f32 reference: loose tolerance (bf16 weights/activations through 10 layers).
    assert jnp.allclose(out, ref_f32, atol=7e-2, rtol=7e-2)
    print("KERNEL_OK")
</pallas_src>

<mosaic_0001>
module attributes {stable_mosaic.version = 11 : i64} {
  func.func @bp_mlp_kernel(%arg0: i32, %arg1: memref<2x1024xf32, #tpu.memory_space<vmem>>, %arg2: memref<1024x512xbf16, #tpu.memory_space<vmem>>, %arg3: memref<512x256xbf16, #tpu.memory_space<vmem>>, %arg4: memref<256x256xbf16, #tpu.memory_space<vmem>>, %arg5: memref<256x128xbf16, #tpu.memory_space<vmem>>, %arg6: memref<6x128x128xbf16, #tpu.memory_space<vmem>>, %arg7: memref<1x1920xf32, #tpu.memory_space<vmem>>, %arg8: memref<2x128xbf16, #tpu.memory_space<vmem>>) attributes {dimension_semantics = [#tpu.dimension_semantics<parallel>], iteration_bounds = array<i64: 1>, scalar_prefetch = 0 : i64, scratch_operands = 0 : i64, tpu.core_type = #tpu.core_type<tc>, window_params = [{transform_indices = @transform_0, window_bounds = array<i64: 2, 1024>}, {pipeline_mode = #tpu.pipeline_mode<synchronous>, transform_indices = @transform_1, window_bounds = array<i64: 1024, 512>}, {pipeline_mode = #tpu.pipeline_mode<synchronous>, transform_indices = @transform_2, window_bounds = array<i64: 512, 256>}, {pipeline_mode = #tpu.pipeline_mode<synchronous>, transform_indices = @transform_3, window_bounds = array<i64: 256, 256>}, {pipeline_mode = #tpu.pipeline_mode<synchronous>, transform_indices = @transform_4, window_bounds = array<i64: 256, 128>}, {pipeline_mode = #tpu.pipeline_mode<synchronous>, transform_indices = @transform_5, window_bounds = array<i64: 6, 128, 128>}, {pipeline_mode = #tpu.pipeline_mode<synchronous>, transform_indices = @transform_6, window_bounds = array<i64: 1, 1920>}, {transform_indices = @transform_7, window_bounds = array<i64: 2, 128>}]} {
    %c0 = arith.constant 0 : index
    %c0_0 = arith.constant 0 : index
    %0 = vector.load %arg1[%c0, %c0_0] : memref<2x1024xf32, #tpu.memory_space<vmem>>, vector<2x1024xf32>
    %1 = arith.truncf %0 : vector<2x1024xf32> to vector<2x1024xbf16>
    %c0_1 = arith.constant 0 : index
    %c0_2 = arith.constant 0 : index
    %2 = vector.load %arg2[%c0_1, %c0_2] : memref<1024x512xbf16, #tpu.memory_space<vmem>>, vector<1024x512xbf16>
    %cst = arith.constant dense<0.000000e+00> : vector<2x512xf32>
    %3 = tpu.matmul %1, %2, %cst {dimension_numbers = #tpu.dot_dimension_numbers<[1], [0], [0], [1], [0, 0, 1, 1], [], []>} : vector<2x1024xbf16>, vector<1024x512xbf16>, vector<2x512xf32> -> vector<2x512xf32>
    %c0_3 = arith.constant 0 : index
    %c0_4 = arith.constant 0 : index
    %4 = vector.load %arg7[%c0_3, %c0_4] : memref<1x1920xf32, #tpu.memory_space<vmem>>, vector<1x512xf32>
    %5 = vector.broadcast %4 : vector<1x512xf32> to vector<2x512xf32>
    %6 = arith.addf %3, %5 : vector<2x512xf32>
    %cst_5 = arith.constant 0.000000e+00 : f32
    %7 = vector.broadcast %cst_5 : f32 to vector<2x512xf32>
    %8 = arith.maximumf %6, %7 : vector<2x512xf32>
    %9 = arith.truncf %8 : vector<2x512xf32> to vector<2x512xbf16>
    %c0_6 = arith.constant 0 : index
    %c0_7 = arith.constant 0 : index
    %10 = vector.load %arg3[%c0_6, %c0_7] : memref<512x256xbf16, #tpu.memory_space<vmem>>, vector<512x256xbf16>
    %cst_8 = arith.constant dense<0.000000e+00> : vector<2x256xf32>
    %11 = tpu.matmul %9, %10, %cst_8 {dimension_numbers = #tpu.dot_dimension_numbers<[1], [0], [0], [1], [0, 0, 1, 1], [], []>} : vector<2x512xbf16>, vector<512x256xbf16>, vector<2x256xf32> -> vector<2x256xf32>
    %c0_9 = arith.constant 0 : index
    %c512 = arith.constant 512 : index
    %12 = vector.load %arg7[%c0_9, %c512] : memref<1x1920xf32, #tpu.memory_space<vmem>>, vector<1x256xf32>
    %13 = vector.broadcast %12 : vector<1x256xf32> to vector<2x256xf32>
    %14 = arith.addf %11, %13 : vector<2x256xf32>
    %cst_10 = arith.constant 0.000000e+00 : f32
    %15 = vector.broadcast %cst_10 : f32 to vector<2x256xf32>
    %16 = arith.maximumf %14, %15 : vector<2x256xf32>
    %17 = arith.truncf %16 : vector<2x256xf32> to vector<2x256xbf16>
    %c0_11 = arith.constant 0 : index
    %c0_12 = arith.constant 0 : index
    %18 = vector.load %arg4[%c0_11, %c0_12] : memref<256x256xbf16, #tpu.memory_space<vmem>>, vector<256x256xbf16>
    %cst_13 = arith.constant dense<0.000000e+00> : vector<2x256xf32>
    %19 = tpu.matmul %17, %18, %cst_13 {dimension_numbers = #tpu.dot_dimension_numbers<[1], [0], [0], [1], [0, 0, 1, 1], [], []>} : vector<2x256xbf16>, vector<256x256xbf16>, vector<2x256xf32> -> vector<2x256xf32>
    %c0_14 = arith.constant 0 : index
    %c768 = arith.constant 768 : index
    %20 = vector.load %arg7[%c0_14, %c768] : memref<1x1920xf32, #tpu.memory_space<vmem>>, vector<1x256xf32>
    %21 = vector.broadcast %20 : vector<1x256xf32> to vector<2x256xf32>
    %22 = arith.addf %19, %21 : vector<2x256xf32>
    %cst_15 = arith.constant 0.000000e+00 : f32
    %23 = vector.broadcast %cst_15 : f32 to vector<2x256xf32>
    %24 = arith.maximumf %22, %23 : vector<2x256xf32>
    %25 = arith.truncf %24 : vector<2x256xf32> to vector<2x256xbf16>
    %c0_16 = arith.constant 0 : index
    %c0_17 = arith.constant 0 : index
    %26 = vector.load %arg5[%c0_16, %c0_17] : memref<256x128xbf16, #tpu.memory_space<vmem>>, vector<256x128xbf16>
    %cst_18 = arith.constant dense<0.000000e+00> : vector<2x128xf32>
    %27 = tpu.matmul %25, %26, %cst_18 {dimension_numbers = #tpu.dot_dimension_numbers<[1], [0], [0], [1], [0, 0, 1, 1], [], []>} : vector<2x256xbf16>, vector<256x128xbf16>, vector<2x128xf32> -> vector<2x128xf32>
    %c0_19 = arith.constant 0 : index
    %c1024 = arith.constant 1024 : index
    %28 = vector.load %arg7[%c0_19, %c1024] : memref<1x1920xf32, #tpu.memory_space<vmem>>, vector<1x128xf32>
    %29 = vector.broadcast %28 : vector<1x128xf32> to vector<2x128xf32>
    %30 = arith.addf %27, %29 : vector<2x128xf32>
    %cst_20 = arith.constant 0.000000e+00 : f32
    %31 = vector.broadcast %cst_20 : f32 to vector<2x128xf32>
    %32 = arith.maximumf %30, %31 : vector<2x128xf32>
    %33 = arith.truncf %32 : vector<2x128xf32> to vector<2x128xbf16>
    %c0_21 = arith.constant 0 : index
    %c0_22 = arith.constant 0 : index
    %c0_23 = arith.constant 0 : index
    %34 = vector.load %arg6[%c0_21, %c0_22, %c0_23] : memref<6x128x128xbf16, #tpu.memory_space<vmem>>, vector<1x128x128xbf16>
    %35 = vector.shape_cast %34 : vector<1x128x128xbf16> to vector<128x128xbf16>
    %cst_24 = arith.constant dense<0.000000e+00> : vector<2x128xf32>
    %36 = tpu.matmul %33, %35, %cst_24 {dimension_numbers = #tpu.dot_dimension_numbers<[1], [0], [0], [1], [0, 0, 1, 1], [], []>} : vector<2x128xbf16>, vector<128x128xbf16>, vector<2x128xf32> -> vector<2x128xf32>
    %c0_25 = arith.constant 0 : index
    %c1152 = arith.constant 1152 : index
    %37 = vector.load %arg7[%c0_25, %c1152] : memref<1x1920xf32, #tpu.memory_space<vmem>>, vector<1x128xf32>
    %38 = vector.broadcast %37 : vector<1x128xf32> to vector<2x128xf32>
    %39 = arith.addf %36, %38 : vector<2x128xf32>
    %cst_26 = arith.constant 0.000000e+00 : f32
    %40 = vector.broadcast %cst_26 : f32 to vector<2x128xf32>
    %41 = arith.maximumf %39, %40 : vector<2x128xf32>
    %42 = arith.truncf %41 : vector<2x128xf32> to vector<2x128xbf16>
    %c1 = arith.constant 1 : index
    %c0_27 = arith.constant 0 : index
    %c0_28 = arith.constant 0 : index
    %43 = vector.load %arg6[%c1, %c0_27, %c0_28] : memref<6x128x128xbf16, #tpu.memory_space<vmem>>, vector<1x128x128xbf16>
    %44 = vector.shape_cast %43 : vector<1x128x128xbf16> to vector<128x128xbf16>
    %cst_29 = arith.constant dense<0.000000e+00> : vector<2x128xf32>
    %45 = tpu.matmul %42, %44, %cst_29 {dimension_numbers = #tpu.dot_dimension_numbers<[1], [0], [0], [1], [0, 0, 1, 1], [], []>} : vector<2x128xbf16>, vector<128x128xbf16>, vector<2x128xf32> -> vector<2x128xf32>
    %c0_30 = arith.constant 0 : index
    %c1280 = arith.constant 1280 : index
    %46 = vector.load %arg7[%c0_30, %c1280] : memref<1x1920xf32, #tpu.memory_space<vmem>>, vector<1x128xf32>
    %47 = vector.broadcast %46 : vector<1x128xf32> to vector<2x128xf32>
    %48 = arith.addf %45, %47 : vector<2x128xf32>
    %cst_31 = arith.constant 0.000000e+00 : f32
    %49 = vector.broadcast %cst_31 : f32 to vector<2x128xf32>
    %50 = arith.maximumf %48, %49 : vector<2x128xf32>
    %51 = arith.truncf %50 : vector<2x128xf32> to vector<2x128xbf16>
    %c2 = arith.constant 2 : index
    %c0_32 = arith.constant 0 : index
    %c0_33 = arith.constant 0 : index
    %52 = vector.load %arg6[%c2, %c0_32, %c0_33] : memref<6x128x128xbf16, #tpu.memory_space<vmem>>, vector<1x128x128xbf16>
    %53 = vector.shape_cast %52 : vector<1x128x128xbf16> to vector<128x128xbf16>
    %cst_34 = arith.constant dense<0.000000e+00> : vector<2x128xf32>
    %54 = tpu.matmul %51, %53, %cst_34 {dimension_numbers = #tpu.dot_dimension_numbers<[1], [0], [0], [1], [0, 0, 1, 1], [], []>} : vector<2x128xbf16>, vector<128x128xbf16>, vector<2x128xf32> -> vector<2x128xf32>
    %c0_35 = arith.constant 0 : index
    %c1408 = arith.constant 1408 : index
    %55 = vector.load %arg7[%c0_35, %c1408] : memref<1x1920xf32, #tpu.memory_space<vmem>>, vector<1x128xf32>
    %56 = vector.broadcast %55 : vector<1x128xf32> to vector<2x128xf32>
    %57 = arith.addf %54, %56 : vector<2x128xf32>
    %cst_36 = arith.constant 0.000000e+00 : f32
    %58 = vector.broadcast %cst_36 : f32 to vector<2x128xf32>
    %59 = arith.maximumf %57, %58 : vector<2x128xf32>
    %60 = arith.truncf %59 : vector<2x128xf32> to vector<2x128xbf16>
    %c3 = arith.constant 3 : index
    %c0_37 = arith.constant 0 : index
    %c0_38 = arith.constant 0 : index
    %61 = vector.load %arg6[%c3, %c0_37, %c0_38] : memref<6x128x128xbf16, #tpu.memory_space<vmem>>, vector<1x128x128xbf16>
    %62 = vector.shape_cast %61 : vector<1x128x128xbf16> to vector<128x128xbf16>
    %cst_39 = arith.constant dense<0.000000e+00> : vector<2x128xf32>
    %63 = tpu.matmul %60, %62, %cst_39 {dimension_numbers = #tpu.dot_dimension_numbers<[1], [0], [0], [1], [0, 0, 1, 1], [], []>} : vector<2x128xbf16>, vector<128x128xbf16>, vector<2x128xf32> -> vector<2x128xf32>
    %c0_40 = arith.constant 0 : index
    %c1536 = arith.constant 1536 : index
    %64 = vector.load %arg7[%c0_40, %c1536] : memref<1x1920xf32, #tpu.memory_space<vmem>>, vector<1x128xf32>
    %65 = vector.broadcast %64 : vector<1x128xf32> to vector<2x128xf32>
    %66 = arith.addf %63, %65 : vector<2x128xf32>
    %cst_41 = arith.constant 0.000000e+00 : f32
    %67 = vector.broadcast %cst_41 : f32 to vector<2x128xf32>
    %68 = arith.maximumf %66, %67 : vector<2x128xf32>
    %69 = arith.truncf %68 : vector<2x128xf32> to vector<2x128xbf16>
    %c4 = arith.constant 4 : index
    %c0_42 = arith.constant 0 : index
    %c0_43 = arith.constant 0 : index
    %70 = vector.load %arg6[%c4, %c0_42, %c0_43] : memref<6x128x128xbf16, #tpu.memory_space<vmem>>, vector<1x128x128xbf16>
    %71 = vector.shape_cast %70 : vector<1x128x128xbf16> to vector<128x128xbf16>
    %cst_44 = arith.constant dense<0.000000e+00> : vector<2x128xf32>
    %72 = tpu.matmul %69, %71, %cst_44 {dimension_numbers = #tpu.dot_dimension_numbers<[1], [0], [0], [1], [0, 0, 1, 1], [], []>} : vector<2x128xbf16>, vector<128x128xbf16>, vector<2x128xf32> -> vector<2x128xf32>
    %c0_45 = arith.constant 0 : index
    %c1664 = arith.constant 1664 : index
    %73 = vector.load %arg7[%c0_45, %c1664] : memref<1x1920xf32, #tpu.memory_space<vmem>>, vector<1x128xf32>
    %74 = vector.broadcast %73 : vector<1x128xf32> to vector<2x128xf32>
    %75 = arith.addf %72, %74 : vector<2x128xf32>
    %cst_46 = arith.constant 0.000000e+00 : f32
    %76 = vector.broadcast %cst_46 : f32 to vector<2x128xf32>
    %77 = arith.maximumf %75, %76 : vector<2x128xf32>
    %78 = arith.truncf %77 : vector<2x128xf32> to vector<2x128xbf16>
    %c5 = arith.constant 5 : index
    %c0_47 = arith.constant 0 : index
    %c0_48 = arith.constant 0 : index
    %79 = vector.load %arg6[%c5, %c0_47, %c0_48] : memref<6x128x128xbf16, #tpu.memory_space<vmem>>, vector<1x128x128xbf16>
    %80 = vector.shape_cast %79 : vector<1x128x128xbf16> to vector<128x128xbf16>
    %cst_49 = arith.constant dense<0.000000e+00> : vector<2x128xf32>
    %81 = tpu.matmul %78, %80, %cst_49 {dimension_numbers = #tpu.dot_dimension_numbers<[1], [0], [0], [1], [0, 0, 1, 1], [], []>} : vector<2x128xbf16>, vector<128x128xbf16>, vector<2x128xf32> -> vector<2x128xf32>
    %c0_50 = arith.constant 0 : index
    %c1792 = arith.constant 1792 : index
    %82 = vector.load %arg7[%c0_50, %c1792] : memref<1x1920xf32, #tpu.memory_space<vmem>>, vector<1x128xf32>
    %83 = vector.broadcast %82 : vector<1x128xf32> to vector<2x128xf32>
    %84 = arith.addf %81, %83 : vector<2x128xf32>
    %85 = arith.truncf %84 : vector<2x128xf32> to vector<2x128xbf16>
    %c0_51 = arith.constant 0 : index
    %c0_52 = arith.constant 0 : index
    %86 = vector.load %arg8[%c0_51, %c0_52] : memref<2x128xbf16, #tpu.memory_space<vmem>>, vector<2x128xbf16>
    tpu.vector_store %arg8[%c0_51, %c0_52], %85 {strides = array<i32>} : memref<2x128xbf16, #tpu.memory_space<vmem>>, vector<2x128xbf16>,
    return
  }
  func.func @transform_0(%arg0: i32) -> (i32, i32) {
    %c0_i32 = arith.constant 0 : i32
    %c0_i32_0 = arith.constant 0 : i32
    return %arg0, %c0_i32 : i32, i32
  }
  func.func @transform_1(%arg0: i32) -> (i32, i32) {
    %c0_i32 = arith.constant 0 : i32
    %c0_i32_0 = arith.constant 0 : i32
    %c0_i32_1 = arith.constant 0 : i32
    return %c0_i32, %c0_i32_0 : i32, i32
  }
  func.func @transform_2(%arg0: i32) -> (i32, i32) {
    %c0_i32 = arith.constant 0 : i32
    %c0_i32_0 = arith.constant 0 : i32
    %c0_i32_1 = arith.constant 0 : i32
    return %c0_i32, %c0_i32_0 : i32, i32
  }
  func.func @transform_3(%arg0: i32) -> (i32, i32) {
    %c0_i32 = arith.constant 0 : i32
    %c0_i32_0 = arith.constant 0 : i32
    %c0_i32_1 = arith.constant 0 : i32
    return %c0_i32, %c0_i32_0 : i32, i32
  }
  func.func @transform_4(%arg0: i32) -> (i32, i32) {
    %c0_i32 = arith.constant 0 : i32
    %c0_i32_0 = arith.constant 0 : i32
    %c0_i32_1 = arith.constant 0 : i32
    return %c0_i32, %c0_i32_0 : i32, i32
  }
  func.func @transform_5(%arg0: i32) -> (i32, i32, i32) {
    %c0_i32 = arith.constant 0 : i32
    %c0_i32_0 = arith.constant 0 : i32
    %c0_i32_1 = arith.constant 0 : i32
    %c0_i32_2 = arith.constant 0 : i32
    return %c0_i32, %c0_i32_0, %c0_i32_1 : i32, i32, i32
  }
  func.func @transform_6(%arg0: i32) -> (i32, i32) {
    %c0_i32 = arith.constant 0 : i32
    %c0_i32_0 = arith.constant 0 : i32
    %c0_i32_1 = arith.constant 0 : i32
    return %c0_i32, %c0_i32_0 : i32, i32
  }
  func.func @transform_7(%arg0: i32) -> (i32, i32) {
    %c0_i32 = arith.constant 0 : i32
    %c0_i32_0 = arith.constant 0 : i32
    return %arg0, %c0_i32 : i32, i32
  }
}

</mosaic_0001>

<llo_original>
// kernel: tpu_custom_call.1
$region0: #{tpu_custom_call.1}
  #allocation0 [shape = 'u32[]', space=smem, size = 0x4, offset = 0x4, fixed_abs, tag = 'smem constant byte address 0x4 - core index']
  #allocation1 [shape = 'u32[72,128]{1,0:T(1,128)}', space=vmem, size = 0x9000, scoped, tag = 'internal scratch']
  %s0 = inlined_call_operand.hbm [shape: f32[2,1024], index: 0, kind: input, shape index: {}]
  %s1 = inlined_call_operand.hbm [shape: bf16[1024,512], index: 1, kind: input, shape index: {}]
  %s2 = inlined_call_operand.hbm [shape: bf16[512,256], index: 2, kind: input, shape index: {}]
  %s3 = inlined_call_operand.hbm [shape: bf16[256,256], index: 3, kind: input, shape index: {}]
  %s4 = inlined_call_operand.hbm [shape: bf16[256,128], index: 4, kind: input, shape index: {}]
  %s5 = inlined_call_operand.hbm [shape: bf16[6,128,128], index: 5, kind: input, shape index: {}]
  %s6 = inlined_call_operand.hbm [shape: f32[1,1920], index: 6, kind: input, shape index: {}]
  %s7 = inlined_call_operand.hbm [shape: bf16[2,128], index: 7, kind: output, shape index: {}]
  %s8 = sld [smem:[#allocation0]]
  $region66: #{tpu_custom_call.1} parent=0
    _
  %s10 = ssub.s32 1, %s8
  %s11 = scalar_select 0, %s10, %s8
  $region1: #{tpu_custom_call.1} parent=0
    #allocation2 [shape = 'u8[8192]{0}', space=vmem, size = 0x2000, scoped, tag = 'input window, operand 0, single buffered']
    #allocation3 [shape = 's32[1]{0}', space=sflag, size = 0x4, scoped, tag = 'scoped memory for tpu_custom_call.1']
    #allocation4 [shape = 's32[1]{0}', space=sflag, size = 0x4, scoped, tag = 'scoped memory for tpu_custom_call.1']
    #allocation5 [shape = 'u8[1048576]{0}', space=vmem, size = 0x100000, scoped, tag = 'input window, operand 1, single buffered']
    #allocation6 [shape = 's32[1]{0}', space=sflag, size = 0x4, scoped, tag = 'scoped memory for tpu_custom_call.1']
    #allocation7 [shape = 'u8[262144]{0}', space=vmem, size = 0x40000, scoped, tag = 'input window, operand 2, single buffered']
    #allocation8 [shape = 'u8[131072]{0}', space=vmem, size = 0x20000, scoped, tag = 'input window, operand 3, single buffered']
    #allocation9 [shape = 's32[1]{0}', space=sflag, size = 0x4, scoped, tag = 'scoped memory for tpu_custom_call.1']
    #allocation10 [shape = 'u8[65536]{0}', space=vmem, size = 0x10000, scoped, tag = 'input window, operand 4, single buffered']
    #allocation11 [shape = 'u8[196608]{0}', space=vmem, size = 0x30000, scoped, tag = 'input window, operand 5, single buffered']
    #allocation12 [shape = 's32[1]{0}', space=sflag, size = 0x4, scoped, tag = 'scoped memory for tpu_custom_call.1']
    #allocation13 [shape = 'u8[7680]{0}', space=vmem, size = 0x2000, scoped, tag = 'input window, operand 6, single buffered']
    #allocation14 [shape = 'u8[512]{0}', space=vmem, size = 0x400, scoped, tag = 'output window, operand 0, single buffered']
    %12 = vsyncpa [#allocation3], 0
    %13 = vsyncpa [#allocation6], 0
    %14 = vsyncpa [#allocation9], 0
    %15 = vsyncpa [#allocation12], 0
    %16 = vsyncpa [#allocation4], 0
    // Predicated region
    $region2: #{tpu_custom_call.1} parent=1 // pred_check
      _
    $region3: #{tpu_custom_call.1} parent=1 // pred_check_branch
      %18 = sbr.rel (0) target = $region5
    $region4: #{tpu_custom_call.1} parent=1 // pred_region
      %20 = vsyncadd [#allocation3], 0
      %s22 = sshll.u32 %s0, 4
      %s23 = int_to_ptr.hbm [resolvable:$true] %s22
      %s24 = sshll.u32 [#allocation2], 4
      %s25 = int_to_ptr.vmem [resolvable:$true] %s24
      %27 = dma.hbm_to_vmem [thread:$0]  %s23, 256, %s25, [#allocation3]
    $region5: #{tpu_custom_call.1} parent=1 // pred_fallthru
      _
    // Predicated region
    $region6: #{tpu_custom_call.1} parent=1 // pred_check
      _
    $region7: #{tpu_custom_call.1} parent=1 // pred_check_branch
      %29 = sbr.rel (0) target = $region9
    $region8: #{tpu_custom_call.1} parent=1 // pred_region
      %31 = vsyncadd [#allocation6], 0
      %s32 = sshll.u32 %s1, 4
      %s33 = int_to_ptr.hbm [resolvable:$true] %s32
      %s34 = sshll.u32 [#allocation5], 4
      %s35 = int_to_ptr.vmem [resolvable:$true] %s34
      %40 = dma.hbm_to_vmem [thread:$0]  %s33, 32768, %s35, [#allocation6], 256, 256, 16
    $region9: #{tpu_custom_call.1} parent=1 // pred_fallthru
      _
    // Predicated region
    $region10: #{tpu_custom_call.1} parent=1 // pred_check
      _
    $region11: #{tpu_custom_call.1} parent=1 // pred_check_branch
      %42 = sbr.rel (0) target = $region13
    $region12: #{tpu_custom_call.1} parent=1 // pred_region
      %44 = vsyncadd [#allocation6], 0
      %s45 = sshll.u32 %s2, 4
      %s46 = int_to_ptr.hbm [resolvable:$true] %s45
      %s47 = sshll.u32 [#allocation7], 4
      %s48 = int_to_ptr.vmem [resolvable:$true] %s47
      %53 = dma.hbm_to_vmem [thread:$0]  %s46, 8192, %s48, [#allocation6], 128, 128, 8
    $region13: #{tpu_custom_call.1} parent=1 // pred_fallthru
      _
    // Predicated region
    $region14: #{tpu_custom_call.1} parent=1 // pred_check
      _
    $region15: #{tpu_custom_call.1} parent=1 // pred_check_branch
      %55 = sbr.rel (0) target = $region17
    $region16: #{tpu_custom_call.1} parent=1 // pred_region
      %57 = vsyncadd [#allocation9], 0
      %s58 = sshll.u32 %s3, 4
      %s59 = int_to_ptr.hbm [resolvable:$true] %s58
      %s60 = sshll.u32 [#allocation8], 4
      %s61 = int_to_ptr.vmem [resolvable:$true] %s60
      %66 = dma.hbm_to_vmem [thread:$0]  %s59, 4096, %s61, [#allocation9], 128, 128, 8
    $region17: #{tpu_custom_call.1} parent=1 // pred_fallthru
      _
    // Predicated region
    $region18: #{tpu_custom_call.1} parent=1 // pred_check
      _
    $region19: #{tpu_custom_call.1} parent=1 // pred_check_branch
      %68 = sbr.rel (0) target = $region21
    $region20: #{tpu_custom_call.1} parent=1 // pred_region
      %70 = vsyncadd [#allocation9], 0
      %s71 = sshll.u32 %s4, 4
      %s72 = int_to_ptr.hbm [resolvable:$true] %s71
      %s73 = sshll.u32 [#allocation10], 4
      %s74 = int_to_ptr.vmem [resolvable:$true] %s73
      %79 = dma.hbm_to_vmem [thread:$0]  %s72, 2048, %s74, [#allocation9], 64, 64, 4
    $region21: #{tpu_custom_call.1} parent=1 // pred_fallthru
      _
    // Predicated region
    $region22: #{tpu_custom_call.1} parent=1 // pred_check
      _
    $region23: #{tpu_custom_call.1} parent=1 // pred_check_branch
      %81 = sbr.rel (0) target = $region25
    $region24: #{tpu_custom_call.1} parent=1 // pred_region
      %83 = vsyncadd [#allocation12], 0
      %s84 = sshll.u32 %s5, 4
      %s85 = int_to_ptr.hbm [resolvable:$true] %s84
      %s86 = sshll.u32 [#allocation11], 4
      %s87 = int_to_ptr.vmem [resolvable:$true] %s86
      %92 = dma.hbm_to_vmem [thread:$0]  %s85, 6144, %s87, [#allocation12], 64, 64, 4
    $region25: #{tpu_custom_call.1} parent=1 // pred_fallthru
      _
    // Predicated region
    $region26: #{tpu_custom_call.1} parent=1 // pred_check
      _
    $region27: #{tpu_custom_call.1} parent=1 // pred_check_branch
      %94 = sbr.rel (0) target = $region29
    $region28: #{tpu_custom_call.1} parent=1 // pred_region
      %96 = vsyncadd [#allocation12], 0
      %s98 = sshll.u32 %s6, 4
      %s99 = int_to_ptr.hbm [resolvable:$true] %s98
      %s100 = sshll.u32 [#allocation13], 4
      %s101 = int_to_ptr.vmem [resolvable:$true] %s100
      %103 = dma.hbm_to_vmem [thread:$0]  %s99, 240, %s101, [#allocation12]
    $region29: #{tpu_custom_call.1} parent=1 // pred_fallthru
      _
    // Predicated region
    $region30: #{tpu_custom_call.1} parent=1 // pred_check
      _
    $region31: #{tpu_custom_call.1} parent=1 // pred_check_branch
      %105 = sbr.rel (0) target = $region33
    $region32: #{tpu_custom_call.1} parent=1 // pred_region
      %107 = dma.done [#allocation3], 256
    $region33: #{tpu_custom_call.1} parent=1 // pred_fallthru
      _
    // Predicated region
    $region34: #{tpu_custom_call.1} parent=1 // pred_check
      _
    $region35: #{tpu_custom_call.1} parent=1 // pred_check_branch
      %109 = sbr.rel (0) target = $region37
    $region36: #{tpu_custom_call.1} parent=1 // pred_region
      %111 = dma.done [#allocation6], 32768
    $region37: #{tpu_custom_call.1} parent=1 // pred_fallthru
      _
    // Predicated region
    $region38: #{tpu_custom_call.1} parent=1 // pred_check
      _
    $region39: #{tpu_custom_call.1} parent=1 // pred_check_branch
      %113 = sbr.rel (0) target = $region41
    $region40: #{tpu_custom_call.1} parent=1 // pred_region
      %115 = dma.done [#allocation6], 8192
    $region41: #{tpu_custom_call.1} parent=1 // pred_fallthru
      _
    // Predicated region
    $region42: #{tpu_custom_call.1} parent=1 // pred_check
      _
    $region43: #{tpu_custom_call.1} parent=1 // pred_check_branch
      %117 = sbr.rel (0) target = $region45
    $region44: #{tpu_custom_call.1} parent=1 // pred_region
      %119 = dma.done [#allocation9], 4096
    $region45: #{tpu_custom_call.1} parent=1 // pred_fallthru
      _
    // Predicated region
    $region46: #{tpu_custom_call.1} parent=1 // pred_check
      _
    $region47: #{tpu_custom_call.1} parent=1 // pred_check_branch
      %121 = sbr.rel (0) target = $region49
    $region48: #{tpu_custom_call.1} parent=1 // pred_region
      %123 = dma.done [#allocation9], 2048
    $region49: #{tpu_custom_call.1} parent=1 // pred_fallthru
      _
    // Predicated region
    $region50: #{tpu_custom_call.1} parent=1 // pred_check
      _
    $region51: #{tpu_custom_call.1} parent=1 // pred_check_branch
      %125 = sbr.rel (0) target = $region53
    $region52: #{tpu_custom_call.1} parent=1 // pred_region
      %127 = dma.done [#allocation12], 6144
    $region53: #{tpu_custom_call.1} parent=1 // pred_fallthru
      _
    // Predicated region
    $region54: #{tpu_custom_call.1} parent=1 // pred_check
      _
    $region55: #{tpu_custom_call.1} parent=1 // pred_check_branch
      %129 = sbr.rel (0) target = $region57
    $region56: #{tpu_custom_call.1} parent=1 // pred_region
      %131 = dma.done [#allocation12], 240
    $region57: #{tpu_custom_call.1} parent=1 // pred_fallthru
      _
    %v132 = vld [vmem:[#allocation2] sm:$0xff]
    %v133 = vld [vmem:[#allocation2 + $0x8] sm:$0xff]
    %136 = vst [vmem:[#allocation1] ss:$4 sm:$0xff] %v132
    %s137 = scalar_lea.vmem [#allocation1], 32
    %138 = vst [vmem:[%s137] ss:$4 sm:$0xff] %v133
    %v139 = vld.sshfl [vmem:[#allocation1] sm:$0xff pattern:$0x73625140]
    %v140 = vld.sshfl [vmem:[#allocation1 + $0x8] sm:$0xff pattern:$0x73625140]
    %v141 = vld.sshfl [vmem:[#allocation1 + $0x10] sm:$0xff pattern:$0x73625140]
    %v142 = vld.sshfl [vmem:[#allocation1 + $0x18] sm:$0xff pattern:$0x73625140]
    %v143 = vld.sshfl [vmem:[#allocation1 + $0x20] sm:$0xff pattern:$0x73625140]
    %v144 = vld.sshfl [vmem:[#allocation1 + $0x28] sm:$0xff pattern:$0x73625140]
    %v145 = vld.sshfl [vmem:[#allocation1 + $0x30] sm:$0xff pattern:$0x73625140]
    %v146 = vld.sshfl [vmem:[#allocation1 + $0x38] sm:$0xff pattern:$0x73625140]
    %v155 = vpack.c.bf16 %v139, %v139
    %v156 = vpack.c.bf16 %v140, %v140
    %v157 = vpack.c.bf16 %v141, %v141
    %v158 = vpack.c.bf16 %v142, %v142
    %v159 = vpack.c.bf16 %v143, %v143
    %v160 = vpack.c.bf16 %v144, %v144
    %v161 = vpack.c.bf16 %v145, %v145
    %v162 = vpack.c.bf16 %v146, %v146
    %v163 = vld [vmem:[#allocation5] sm:$0xff]
    %v164 = vld [vmem:[#allocation5 + $0x8] sm:$0xff]
    %v165 = vld [vmem:[#allocation5 + $0x10] sm:$0xff]
    %v166 = vld [vmem:[#allocation5 + $0x18] sm:$0xff]
    %v167 = vld [vmem:[#allocation5 + $0x20] sm:$0xff]
    %v168 = vld [vmem:[#allocation5 + $0x28] sm:$0xff]
    %v169 = vld [vmem:[#allocation5 + $0x30] sm:$0xff]
    %v170 = vld [vmem:[#allocation5 + $0x38] sm:$0xff]
    %v171 = vld [vmem:[#allocation5 + $0x40] sm:$0xff]
    %v172 = vld [vmem:[#allocation5 + $0x48] sm:$0xff]
    %v173 = vld [vmem:[#allocation5 + $0x50] sm:$0xff]
    %v174 = vld [vmem:[#allocation5 + $0x58] sm:$0xff]
    %v175 = vld [vmem:[#allocation5 + $0x60] sm:$0xff]
    %v176 = vld [vmem:[#allocation5 + $0x68] sm:$0xff]
    %v177 = vld [vmem:[#allocation5 + $0x70] sm:$0xff]
    %v178 = vld [vmem:[#allocation5 + $0x78] sm:$0xff]
    %v179 = vld [vmem:[#allocation5 + $0x80] sm:$0xff]
    %v180 = vld [vmem:[#allocation5 + $0x88] sm:$0xff]
    %v181 = vld [vmem:[#allocation5 + $0x90] sm:$0xff]
    %v182 = vld [vmem:[#allocation5 + $0x98] sm:$0xff]
    %v183 = vld [vmem:[#allocation5 + $0xa0] sm:$0xff]
    %v184 = vld [vmem:[#allocation5 + $0xa8] sm:$0xff]
    %v185 = vld [vmem:[#allocation5 + $0xb0] sm:$0xff]
    %v186 = vld [vmem:[#allocation5 + $0xb8] sm:$0xff]
    %v187 = vld [vmem:[#allocation5 + $0xc0] sm:$0xff]
    %v188 = vld [vmem:[#allocation5 + $0xc8] sm:$0xff]
    %v189 = vld [vmem:[#allocation5 + $0xd0] sm:$0xff]
    %v190 = vld [vmem:[#allocation5 + $0xd8] sm:$0xff]
    %v191 = vld [vmem:[#allocation5 + $0xe0] sm:$0xff]
    %v192 = vld [vmem:[#allocation5 + $0xe8] sm:$0xff]
    %v193 = vld [vmem:[#allocation5 + $0xf0] sm:$0xff]
    %v194 = vld [vmem:[#allocation5 + $0xf8] sm:$0xff]
    %v195 = vld [vmem:[#allocation5 + $0x100] sm:$0xff]
    %v196 = vld [vmem:[#allocation5 + $0x108] sm:$0xff]
    %v197 = vld [vmem:[#allocation5 + $0x110] sm:$0xff]
    %v198 = vld [vmem:[#allocation5 + $0x118] sm:$0xff]
    %v199 = vld [vmem:[#allocation5 + $0x120] sm:$0xff]
    %v200 = vld [vmem:[#allocation5 + $0x128] sm:$0xff]
    %v201 = vld [vmem:[#allocation5 + $0x130] sm:$0xff]
    %v202 = vld [vmem:[#allocation5 + $0x138] sm:$0xff]
    %v203 = vld [vmem:[#allocation5 + $0x140] sm:$0xff]
    %v204 = vld [vmem:[#allocation5 + $0x148] sm:$0xff]
    %v205 = vld [vmem:[#allocation5 + $0x150] sm:$0xff]
    %v206 = vld [vmem:[#allocation5 + $0x158] sm:$0xff]
    %v207 = vld [vmem:[#allocation5 + $0x160] sm:$0xff]
    %v208 = vld [vmem:[#allocation5 + $0x168] sm:$0xff]
    %v209 = vld [vmem:[#allocation5 + $0x170] sm:$0xff]
    %v210 = vld [vmem:[#allocation5 + $0x178] sm:$0xff]
    %v211 = vld [vmem:[#allocation5 + $0x180] sm:$0xff]
    %v212 = vld [vmem:[#allocation5 + $0x188] sm:$0xff]
    %v213 = vld [vmem:[#allocation5 + $0x190] sm:$0xff]
    %v214 = vld [vmem:[#allocation5 + $0x198] sm:$0xff]
    %v215 = vld [vmem:[#allocation5 + $0x1a0] sm:$0xff]
    %v216 = vld [vmem:[#allocation5 + $0x1a8] sm:$0xff]
    %v217 = vld [vmem:[#allocation5 + $0x1b0] sm:$0xff]
    %v218 = vld [vmem:[#allocation5 + $0x1b8] sm:$0xff]
    %v219 = vld [vmem:[#allocation5 + $0x1c0] sm:$0xff]
    %v220 = vld [vmem:[#allocation5 + $0x1c8] sm:$0xff]
    %v221 = vld [vmem:[#allocation5 + $0x1d0] sm:$0xff]
    %v222 = vld [vmem:[#allocation5 + $0x1d8] sm:$0xff]
    %v223 = vld [vmem:[#allocation5 + $0x1e0] sm:$0xff]
    %v224 = vld [vmem:[#allocation5 + $0x1e8] sm:$0xff]
    %v225 = vld [vmem:[#allocation5 + $0x1f0] sm:$0xff]
    %v226 = vld [vmem:[#allocation5 + $0x1f8] sm:$0xff]
    %v227 = vld [vmem:[#allocation5 + $0x200] sm:$0xff]
    %v228 = vld [vmem:[#allocation5 + $0x208] sm:$0xff]
    %v229 = vld [vmem:[#allocation5 + $0x210] sm:$0xff]
    %v230 = vld [vmem:[#allocation5 + $0x218] sm:$0xff]
    %v231 = vld [vmem:[#allocation5 + $0x220] sm:$0xff]
    %v232 = vld [vmem:[#allocation5 + $0x228] sm:$0xff]
    %v233 = vld [vmem:[#allocation5 + $0x230] sm:$0xff]
    %v234 = vld [vmem:[#allocation5 + $0x238] sm:$0xff]
    %v235 = vld [vmem:[#allocation5 + $0x240] sm:$0xff]
    %v236 = vld [vmem:[#allocation5 + $0x248] sm:$0xff]
    %v237 = vld [vmem:[#allocation5 + $0x250] sm:$0xff]
    %v238 = vld [vmem:[#allocation5 + $0x258] sm:$0xff]
    %v239 = vld [vmem:[#allocation5 + $0x260] sm:$0xff]
    %v240 = vld [vmem:[#allocation5 + $0x268] sm:$0xff]
    %v241 = vld [vmem:[#allocation5 + $0x270] sm:$0xff]
    %v242 = vld [vmem:[#allocation5 + $0x278] sm:$0xff]
    %v243 = vld [vmem:[#allocation5 + $0x280] sm:$0xff]
    %v244 = vld [vmem:[#allocation5 + $0x288] sm:$0xff]
    %v245 = vld [vmem:[#allocation5 + $0x290] sm:$0xff]
    %v246 = vld [vmem:[#allocation5 + $0x298] sm:$0xff]
    %v247 = vld [vmem:[#allocation5 + $0x2a0] sm:$0xff]
    %v248 = vld [vmem:[#allocation5 + $0x2a8] sm:$0xff]
    %v249 = vld [vmem:[#allocation5 + $0x2b0] sm:$0xff]
    %v250 = vld [vmem:[#allocation5 + $0x2b8] sm:$0xff]
    %v251 = vld [vmem:[#allocation5 + $0x2c0] sm:$0xff]
    %v252 = vld [vmem:[#allocation5 + $0x2c8] sm:$0xff]
    %v253 = vld [vmem:[#allocation5 + $0x2d0] sm:$0xff]
    %v254 = vld [vmem:[#allocation5 + $0x2d8] sm:$0xff]
    %v255 = vld [vmem:[#allocation5 + $0x2e0] sm:$0xff]
    %v256 = vld [vmem:[#allocation5 + $0x2e8] sm:$0xff]
    %v257 = vld [vmem:[#allocation5 + $0x2f0] sm:$0xff]
    %v258 = vld [vmem:[#allocation5 + $0x2f8] sm:$0xff]
    %v259 = vld [vmem:[#allocation5 + $0x300] sm:$0xff]
    %v260 = vld [vmem:[#allocation5 + $0x308] sm:$0xff]
    %v261 = vld [vmem:[#allocation5 + $0x310] sm:$0xff]
    %v262 = vld [vmem:[#allocation5 + $0x318] sm:$0xff]
    %v263 = vld [vmem:[#allocation5 + $0x320] sm:$0xff]
    %v264 = vld [vmem:[#allocation5 + $0x328] sm:$0xff]
    %v265 = vld [vmem:[#allocation5 + $0x330] sm:$0xff]
    %v266 = vld [vmem:[#allocation5 + $0x338] sm:$0xff]
    %v267 = vld [vmem:[#allocation5 + $0x340] sm:$0xff]
    %v268 = vld [vmem:[#allocation5 + $0x348] sm:$0xff]
    %v269 = vld [vmem:[#allocation5 + $0x350] sm:$0xff]
    %v270 = vld [vmem:[#allocation5 + $0x358] sm:$0xff]
    %v271 = vld [vmem:[#allocation5 + $0x360] sm:$0xff]
    %v272 = vld [vmem:[#allocation5 + $0x368] sm:$0xff]
    %v273 = vld [vmem:[#allocation5 + $0x370] sm:$0xff]
    %v274 = vld [vmem:[#allocation5 + $0x378] sm:$0xff]
    %v275 = vld [vmem:[#allocation5 + $0x380] sm:$0xff]
    %v276 = vld [vmem:[#allocation5 + $0x388] sm:$0xff]
    %v277 = vld [vmem:[#allocation5 + $0x390] sm:$0xff]
    %v278 = vld [vmem:[#allocation5 + $0x398] sm:$0xff]
    %v279 = vld [vmem:[#allocation5 + $0x3a0] sm:$0xff]
    %v280 = vld [vmem:[#allocation5 + $0x3a8] sm:$0xff]
    %v281 = vld [vmem:[#allocation5 + $0x3b0] sm:$0xff]
    %v282 = vld [vmem:[#allocation5 + $0x3b8] sm:$0xff]
    %v283 = vld [vmem:[#allocation5 + $0x3c0] sm:$0xff]
    %v284 = vld [vmem:[#allocation5 + $0x3c8] sm:$0xff]
    %v285 = vld [vmem:[#allocation5 + $0x3d0] sm:$0xff]
    %v286 = vld [vmem:[#allocation5 + $0x3d8] sm:$0xff]
    %v287 = vld [vmem:[#allocation5 + $0x3e0] sm:$0xff]
    %v288 = vld [vmem:[#allocation5 + $0x3e8] sm:$0xff]
    %v289 = vld [vmem:[#allocation5 + $0x3f0] sm:$0xff]
    %v290 = vld [vmem:[#allocation5 + $0x3f8] sm:$0xff]
    %v291 = vld [vmem:[#allocation5 + $0x400] sm:$0xff]
    %v292 = vld [vmem:[#allocation5 + $0x408] sm:$0xff]
    %v293 = vld [vmem:[#allocation5 + $0x410] sm:$0xff]
    %v294 = vld [vmem:[#allocation5 + $0x418] sm:$0xff]
    %v295 = vld [vmem:[#allocation5 + $0x420] sm:$0xff]
    %v296 = vld [vmem:[#allocation5 + $0x428] sm:$0xff]
    %v297 = vld [vmem:[#allocation5 + $0x430] sm:$0xff]
    %v298 = vld [vmem:[#allocation5 + $0x438] sm:$0xff]
    %v299 = vld [vmem:[#allocation5 + $0x440] sm:$0xff]
    %v300 = vld [vmem:[#allocation5 + $0x448] sm:$0xff]
    %v301 = vld [vmem:[#allocation5 + $0x450] sm:$0xff]
    %v302 = vld [vmem:[#allocation5 + $0x458] sm:$0xff]
    %v303 = vld [vmem:[#allocation5 + $0x460] sm:$0xff]
    %v304 = vld [vmem:[#allocation5 + $0x468] sm:$0xff]
    %v305 = vld [vmem:[#allocation5 + $0x470] sm:$0xff]
    %v306 = vld [vmem:[#allocation5 + $0x478] sm:$0xff]
    %v307 = vld [vmem:[#allocation5 + $0x480] sm:$0xff]
    %v308 = vld [vmem:[#allocation5 + $0x488] sm:$0xff]
    %v309 = vld [vmem:[#allocation5 + $0x490] sm:$0xff]
    %v310 = vld [vmem:[#allocation5 + $0x498] sm:$0xff]
    %v311 = vld [vmem:[#allocation5 + $0x4a0] sm:$0xff]
    %v312 = vld [vmem:[#allocation5 + $0x4a8] sm:$0xff]
    %v313 = vld [vmem:[#allocation5 + $0x4b0] sm:$0xff]
    %v314 = vld [vmem:[#allocation5 + $0x4b8] sm:$0xff]
    %v315 = vld [vmem:[#allocation5 + $0x4c0] sm:$0xff]
    %v316 = vld [vmem:[#allocation5 + $0x4c8] sm:$0xff]
    %v317 = vld [vmem:[#allocation5 + $0x4d0] sm:$0xff]
    %v318 = vld [vmem:[#allocation5 + $0x4d8] sm:$0xff]
    %v319 = vld [vmem:[#allocation5 + $0x4e0] sm:$0xff]
    %v320 = vld [vmem:[#allocation5 + $0x4e8] sm:$0xff]
    %v321 = vld [vmem:[#allocation5 + $0x4f0] sm:$0xff]
    %v322 = vld [vmem:[#allocation5 + $0x4f8] sm:$0xff]
    %v323 = vld [vmem:[#allocation5 + $0x500] sm:$0xff]
    %v324 = vld [vmem:[#allocation5 + $0x508] sm:$0xff]
    %v325 = vld [vmem:[#allocation5 + $0x510] sm:$0xff]
    %v326 = vld [vmem:[#allocation5 + $0x518] sm:$0xff]
    %v327 = vld [vmem:[#allocation5 + $0x520] sm:$0xff]
    %v328 = vld [vmem:[#allocation5 + $0x528] sm:$0xff]
    %v329 = vld [vmem:[#allocation5 + $0x530] sm:$0xff]
    %v330 = vld [vmem:[#allocation5 + $0x538] sm:$0xff]
    %v331 = vld [vmem:[#allocation5 + $0x540] sm:$0xff]
    %v332 = vld [vmem:[#allocation5 + $0x548] sm:$0xff]
    %v333 = vld [vmem:[#allocation5 + $0x550] sm:$0xff]
    %v334 = vld [vmem:[#allocation5 + $0x558] sm:$0xff]
    %v335 = vld [vmem:[#allocation5 + $0x560] sm:$0xff]
    %v336 = vld [vmem:[#allocation5 + $0x568] sm:$0xff]
    %v337 = vld [vmem:[#allocation5 + $0x570] sm:$0xff]
    %v338 = vld [vmem:[#allocation5 + $0x578] sm:$0xff]
    %v339 = vld [vmem:[#allocation5 + $0x580] sm:$0xff]
    %v340 = vld [vmem:[#allocation5 + $0x588] sm:$0xff]
    %v341 = vld [vmem:[#allocation5 + $0x590] sm:$0xff]
    %v342 = vld [vmem:[#allocation5 + $0x598] sm:$0xff]
    %v343 = vld [vmem:[#allocation5 + $0x5a0] sm:$0xff]
    %v344 = vld [vmem:[#allocation5 + $0x5a8] sm:$0xff]
    %v345 = vld [vmem:[#allocation5 + $0x5b0] sm:$0xff]
    %v346 = vld [vmem:[#allocation5 + $0x5b8] sm:$0xff]
    %v347 = vld [vmem:[#allocation5 + $0x5c0] sm:$0xff]
    %v348 = vld [vmem:[#allocation5 + $0x5c8] sm:$0xff]
    %v349 = vld [vmem:[#allocation5 + $0x5d0] sm:$0xff]
    %v350 = vld [vmem:[#allocation5 + $0x5d8] sm:$0xff]
    %v351 = vld [vmem:[#allocation5 + $0x5e0] sm:$0xff]
    %v352 = vld [vmem:[#allocation5 + $0x5e8] sm:$0xff]
    %v353 = vld [vmem:[#allocation5 + $0x5f0] sm:$0xff]
    %v354 = vld [vmem:[#allocation5 + $0x5f8] sm:$0xff]
    %v355 = vld [vmem:[#allocation5 + $0x600] sm:$0xff]
    %v356 = vld [vmem:[#allocation5 + $0x608] sm:$0xff]
    %v357 = vld [vmem:[#allocation5 + $0x610] sm:$0xff]
    %v358 = vld [vmem:[#allocation5 + $0x618] sm:$0xff]
    %v359 = vld [vmem:[#allocation5 + $0x620] sm:$0xff]
    %v360 = vld [vmem:[#allocation5 + $0x628] sm:$0xff]
    %v361 = vld [vmem:[#allocation5 + $0x630] sm:$0xff]
    %v362 = vld [vmem:[#allocation5 + $0x638] sm:$0xff]
    %v363 = vld [vmem:[#allocation5 + $0x640] sm:$0xff]
    %v364 = vld [vmem:[#allocation5 + $0x648] sm:$0xff]
    %v365 = vld [vmem:[#allocation5 + $0x650] sm:$0xff]
    %v366 = vld [vmem:[#allocation5 + $0x658] sm:$0xff]
    %v367 = vld [vmem:[#allocation5 + $0x660] sm:$0xff]
    %v368 = vld [vmem:[#allocation5 + $0x668] sm:$0xff]
    %v369 = vld [vmem:[#allocation5 + $0x670] sm:$0xff]
    %v370 = vld [vmem:[#allocation5 + $0x678] sm:$0xff]
    %v371 = vld [vmem:[#allocation5 + $0x680] sm:$0xff]
    %v372 = vld [vmem:[#allocation5 + $0x688] sm:$0xff]
    %v373 = vld [vmem:[#allocation5 + $0x690] sm:$0xff]
    %v374 = vld [vmem:[#allocation5 + $0x698] sm:$0xff]
    %v375 = vld [vmem:[#allocation5 + $0x6a0] sm:$0xff]
    %v376 = vld [vmem:[#allocation5 + $0x6a8] sm:$0xff]
    %v377 = vld [vmem:[#allocation5 + $0x6b0] sm:$0xff]
    %v378 = vld [vmem:[#allocation5 + $0x6b8] sm:$0xff]
    %v379 = vld [vmem:[#allocation5 + $0x6c0] sm:$0xff]
    %v380 = vld [vmem:[#allocation5 + $0x6c8] sm:$0xff]
    %v381 = vld [vmem:[#allocation5 + $0x6d0] sm:$0xff]
    %v382 = vld [vmem:[#allocation5 + $0x6d8] sm:$0xff]
    %v383 = vld [vmem:[#allocation5 + $0x6e0] sm:$0xff]
    %v384 = vld [vmem:[#allocation5 + $0x6e8] sm:$0xff]
    %v385 = vld [vmem:[#allocation5 + $0x6f0] sm:$0xff]
    %v386 = vld [vmem:[#allocation5 + $0x6f8] sm:$0xff]
    %v387 = vld [vmem:[#allocation5 + $0x700] sm:$0xff]
    %v388 = vld [vmem:[#allocation5 + $0x708] sm:$0xff]
    %v389 = vld [vmem:[#allocation5 + $0x710] sm:$0xff]
    %v390 = vld [vmem:[#allocation5 + $0x718] sm:$0xff]
    %v391 = vld [vmem:[#allocation5 + $0x720] sm:$0xff]
    %v392 = vld [vmem:[#allocation5 + $0x728] sm:$0xff]
    %v393 = vld [vmem:[#allocation5 + $0x730] sm:$0xff]
    %v394 = vld [vmem:[#allocation5 + $0x738] sm:$0xff]
    %v395 = vld [vmem:[#allocation5 + $0x740] sm:$0xff]
    %v396 = vld [vmem:[#allocation5 + $0x748] sm:$0xff]
    %v397 = vld [vmem:[#allocation5 + $0x750] sm:$0xff]
    %v398 = vld [vmem:[#allocation5 + $0x758] sm:$0xff]
    %v399 = vld [vmem:[#allocation5 + $0x760] sm:$0xff]
    %v400 = vld [vmem:[#allocation5 + $0x768] sm:$0xff]
    %v401 = vld [vmem:[#allocation5 + $0x770] sm:$0xff]
    %v402 = vld [vmem:[#allocation5 + $0x778] sm:$0xff]
    %v403 = vld [vmem:[#allocation5 + $0x780] sm:$0xff]
    %v404 = vld [vmem:[#allocation5 + $0x788] sm:$0xff]
    %v405 = vld [vmem:[#allocation5 + $0x790] sm:$0xff]
    %v406 = vld [vmem:[#allocation5 + $0x798] sm:$0xff]
    %v407 = vld [vmem:[#allocation5 + $0x7a0] sm:$0xff]
    %v408 = vld [vmem:[#allocation5 + $0x7a8] sm:$0xff]
    %v409 = vld [vmem:[#allocation5 + $0x7b0] sm:$0xff]
    %v410 = vld [vmem:[#allocation5 + $0x7b8] sm:$0xff]
    %v411 = vld [vmem:[#allocation5 + $0x7c0] sm:$0xff]
    %v412 = vld [vmem:[#allocation5 + $0x7c8] sm:$0xff]
    %v413 = vld [vmem:[#allocation5 + $0x7d0] sm:$0xff]
    %v414 = vld [vmem:[#allocation5 + $0x7d8] sm:$0xff]
    %v415 = vld [vmem:[#allocation5 + $0x7e0] sm:$0xff]
    %v416 = vld [vmem:[#allocation5 + $0x7e8] sm:$0xff]
    %v417 = vld [vmem:[#allocation5 + $0x7f0] sm:$0xff]
    %v418 = vld [vmem:[#allocation5 + $0x7f8] sm:$0xff]
    %v419 = vld [vmem:[#allocation13] sm:$0xf]
    %v421 = vperm.slane %v419, 0
    %v422 = vperm.slane %v419, 1
    %v423 = vperm.slane %v419, 2
    %v424 = vperm.slane %v419, 3
    %v685 = vunpack.c.l.b16 %v163
    %v686 = vunpack.c.h.b16 %v163
    %v687 = vunpack.c.l.b16 %v164
    %v688 = vunpack.c.h.b16 %v164
    %v689 = vunpack.c.l.b16 %v165
    %v690 = vunpack.c.h.b16 %v165
    %v691 = vunpack.c.l.b16 %v166
    %v692 = vunpack.c.h.b16 %v166
    %v693 = vunpack.c.l.b16 %v167
    %v694 = vunpack.c.h.b16 %v167
    %v695 = vunpack.c.l.b16 %v168
    %v696 = vunpack.c.h.b16 %v168
    %v697 = vunpack.c.l.b16 %v169
    %v698 = vunpack.c.h.b16 %v169
    %v699 = vunpack.c.l.b16 %v170
    %v700 = vunpack.c.h.b16 %v170
    %v701 = vunpack.c.l.b16 %v171
    %v702 = vunpack.c.h.b16 %v171
    %v703 = vunpack.c.l.b16 %v172
    %v704 = vunpack.c.h.b16 %v172
    %v705 = vunpack.c.l.b16 %v173
    %v706 = vunpack.c.h.b16 %v173
    %v707 = vunpack.c.l.b16 %v174
    %v708 = vunpack.c.h.b16 %v174
    %v709 = vunpack.c.l.b16 %v175
    %v710 = vunpack.c.h.b16 %v175
    %v711 = vunpack.c.l.b16 %v176
    %v712 = vunpack.c.h.b16 %v176
    %v713 = vunpack.c.l.b16 %v177
    %v714 = vunpack.c.h.b16 %v177
    %v715 = vunpack.c.l.b16 %v178
    %v716 = vunpack.c.h.b16 %v178
    %v717 = vunpack.c.l.b16 %v179
    %v718 = vunpack.c.h.b16 %v179
    %v719 = vunpack.c.l.b16 %v180
    %v720 = vunpack.c.h.b16 %v180
    %v721 = vunpack.c.l.b16 %v181
    %v722 = vunpack.c.h.b16 %v181
    %v723 = vunpack.c.l.b16 %v182
    %v724 = vunpack.c.h.b16 %v182
    %v725 = vunpack.c.l.b16 %v183
    %v726 = vunpack.c.h.b16 %v183
    %v727 = vunpack.c.l.b16 %v184
    %v728 = vunpack.c.h.b16 %v184
    %v729 = vunpack.c.l.b16 %v185
    %v730 = vunpack.c.h.b16 %v185
    %v731 = vunpack.c.l.b16 %v186
    %v732 = vunpack.c.h.b16 %v186
    %v733 = vunpack.c.l.b16 %v187
    %v734 = vunpack.c.h.b16 %v187
    %v735 = vunpack.c.l.b16 %v188
    %v736 = vunpack.c.h.b16 %v188
    %v737 = vunpack.c.l.b16 %v189
    %v738 = vunpack.c.h.b16 %v189
    %v739 = vunpack.c.l.b16 %v190
    %v740 = vunpack.c.h.b16 %v190
    %v741 = vunpack.c.l.b16 %v191
    %v742 = vunpack.c.h.b16 %v191
    %v743 = vunpack.c.l.b16 %v192
    %v744 = vunpack.c.h.b16 %v192
    %v745 = vunpack.c.l.b16 %v193
    %v746 = vunpack.c.h.b16 %v193
    %v747 = vunpack.c.l.b16 %v194
    %v748 = vunpack.c.h.b16 %v194
    %v749 = vunpack.c.l.b16 %v195
    %v750 = vunpack.c.h.b16 %v195
    %v751 = vunpack.c.l.b16 %v196
    %v752 = vunpack.c.h.b16 %v196
    %v753 = vunpack.c.l.b16 %v197
    %v754 = vunpack.c.h.b16 %v197
    %v755 = vunpack.c.l.b16 %v198
    %v756 = vunpack.c.h.b16 %v198
    %v757 = vunpack.c.l.b16 %v199
    %v758 = vunpack.c.h.b16 %v199
    %v759 = vunpack.c.l.b16 %v200
    %v760 = vunpack.c.h.b16 %v200
    %v761 = vunpack.c.l.b16 %v201
    %v762 = vunpack.c.h.b16 %v201
    %v763 = vunpack.c.l.b16 %v202
    %v764 = vunpack.c.h.b16 %v202
    %v765 = vunpack.c.l.b16 %v203
    %v766 = vunpack.c.h.b16 %v203
    %v767 = vunpack.c.l.b16 %v204
    %v768 = vunpack.c.h.b16 %v204
    %v769 = vunpack.c.l.b16 %v205
    %v770 = vunpack.c.h.b16 %v205
    %v771 = vunpack.c.l.b16 %v206
    %v772 = vunpack.c.h.b16 %v206
    %v773 = vunpack.c.l.b16 %v207
    %v774 = vunpack.c.h.b16 %v207
    %v775 = vunpack.c.l.b16 %v208
    %v776 = vunpack.c.h.b16 %v208
    %v777 = vunpack.c.l.b16 %v209
    %v778 = vunpack.c.h.b16 %v209
    %v779 = vunpack.c.l.b16 %v210
    %v780 = vunpack.c.h.b16 %v210
    %v781 = vunpack.c.l.b16 %v211
    %v782 = vunpack.c.h.b16 %v211
    %v783 = vunpack.c.l.b16 %v212
    %v784 = vunpack.c.h.b16 %v212
    %v785 = vunpack.c.l.b16 %v213
    %v786 = vunpack.c.h.b16 %v213
    %v787 = vunpack.c.l.b16 %v214
    %v788 = vunpack.c.h.b16 %v214
    %v789 = vunpack.c.l.b16 %v215
    %v790 = vunpack.c.h.b16 %v215
    %v791 = vunpack.c.l.b16 %v216
    %v792 = vunpack.c.h.b16 %v216
    %v793 = vunpack.c.l.b16 %v217
    %v794 = vunpack.c.h.b16 %v217
    %v795 = vunpack.c.l.b16 %v218
    %v796 = vunpack.c.h.b16 %v218
    %v797 = vunpack.c.l.b16 %v219
    %v798 = vunpack.c.h.b16 %v219
    %v799 = vunpack.c.l.b16 %v220
    %v800 = vunpack.c.h.b16 %v220
    %v801 = vunpack.c.l.b16 %v221
    %v802 = vunpack.c.h.b16 %v221
    %v803 = vunpack.c.l.b16 %v222
    %v804 = vunpack.c.h.b16 %v222
    %v805 = vunpack.c.l.b16 %v223
    %v806 = vunpack.c.h.b16 %v223
    %v807 = vunpack.c.l.b16 %v224
    %v808 = vunpack.c.h.b16 %v224
    %v809 = vunpack.c.l.b16 %v225
    %v810 = vunpack.c.h.b16 %v225
    %v811 = vunpack.c.l.b16 %v226
    %v812 = vunpack.c.h.b16 %v226
    %v813 = vunpack.c.l.b16 %v227
    %v814 = vunpack.c.h.b16 %v227
    %v815 = vunpack.c.l.b16 %v228
    %v816 = vunpack.c.h.b16 %v228
    %v817 = vunpack.c.l.b16 %v229
    %v818 = vunpack.c.h.b16 %v229
    %v819 = vunpack.c.l.b16 %v230
    %v820 = vunpack.c.h.b16 %v230
    %v821 = vunpack.c.l.b16 %v231
    %v822 = vunpack.c.h.b16 %v231
    %v823 = vunpack.c.l.b16 %v232
    %v824 = vunpack.c.h.b16 %v232
    %v825 = vunpack.c.l.b16 %v233
    %v826 = vunpack.c.h.b16 %v233
    %v827 = vunpack.c.l.b16 %v234
    %v828 = vunpack.c.h.b16 %v234
    %v829 = vunpack.c.l.b16 %v235
    %v830 = vunpack.c.h.b16 %v235
    %v831 = vunpack.c.l.b16 %v236
    %v832 = vunpack.c.h.b16 %v236
    %v833 = vunpack.c.l.b16 %v237
    %v834 = vunpack.c.h.b16 %v237
    %v835 = vunpack.c.l.b16 %v238
    %v836 = vunpack.c.h.b16 %v238
    %v837 = vunpack.c.l.b16 %v239
    %v838 = vunpack.c.h.b16 %v239
    %v839 = vunpack.c.l.b16 %v240
    %v840 = vunpack.c.h.b16 %v240
    %v841 = vunpack.c.l.b16 %v241
    %v842 = vunpack.c.h.b16 %v241
    %v843 = vunpack.c.l.b16 %v242
    %v844 = vunpack.c.h.b16 %v242
    %v845 = vunpack.c.l.b16 %v243
    %v846 = vunpack.c.h.b16 %v243
    %v847 = vunpack.c.l.b16 %v244
    %v848 = vunpack.c.h.b16 %v244
    %v849 = vunpack.c.l.b16 %v245
    %v850 = vunpack.c.h.b16 %v245
    %v851 = vunpack.c.l.b16 %v246
    %v852 = vunpack.c.h.b16 %v246
    %v853 = vunpack.c.l.b16 %v247
    %v854 = vunpack.c.h.b16 %v247
    %v855 = vunpack.c.l.b16 %v248
    %v856 = vunpack.c.h.b16 %v248
    %v857 = vunpack.c.l.b16 %v249
    %v858 = vunpack.c.h.b16 %v249
    %v859 = vunpack.c.l.b16 %v250
    %v860 = vunpack.c.h.b16 %v250
    %v861 = vunpack.c.l.b16 %v251
    %v862 = vunpack.c.h.b16 %v251
    %v863 = vunpack.c.l.b16 %v252
    %v864 = vunpack.c.h.b16 %v252
    %v865 = vunpack.c.l.b16 %v253
    %v866 = vunpack.c.h.b16 %v253
    %v867 = vunpack.c.l.b16 %v254
    %v868 = vunpack.c.h.b16 %v254
    %v869 = vunpack.c.l.b16 %v255
    %v870 = vunpack.c.h.b16 %v255
    %v871 = vunpack.c.l.b16 %v256
    %v872 = vunpack.c.h.b16 %v256
    %v873 = vunpack.c.l.b16 %v257
    %v874 = vunpack.c.h.b16 %v257
    %v875 = vunpack.c.l.b16 %v258
    %v876 = vunpack.c.h.b16 %v258
    %v877 = vunpack.c.l.b16 %v259
    %v878 = vunpack.c.h.b16 %v259
    %v879 = vunpack.c.l.b16 %v260
    %v880 = vunpack.c.h.b16 %v260
    %v881 = vunpack.c.l.b16 %v261
    %v882 = vunpack.c.h.b16 %v261
    %v883 = vunpack.c.l.b16 %v262
    %v884 = vunpack.c.h.b16 %v262
    %v885 = vunpack.c.l.b16 %v263
    %v886 = vunpack.c.h.b16 %v263
    %v887 = vunpack.c.l.b16 %v264
    %v888 = vunpack.c.h.b16 %v264
    %v889 = vunpack.c.l.b16 %v265
    %v890 = vunpack.c.h.b16 %v265
    %v891 = vunpack.c.l.b16 %v266
    %v892 = vunpack.c.h.b16 %v266
    %v893 = vunpack.c.l.b16 %v267
    %v894 = vunpack.c.h.b16 %v267
    %v895 = vunpack.c.l.b16 %v268
    %v896 = vunpack.c.h.b16 %v268
    %v897 = vunpack.c.l.b16 %v269
    %v898 = vunpack.c.h.b16 %v269
    %v899 = vunpack.c.l.b16 %v270
    %v900 = vunpack.c.h.b16 %v270
    %v901 = vunpack.c.l.b16 %v271
    %v902 = vunpack.c.h.b16 %v271
    %v903 = vunpack.c.l.b16 %v272
    %v904 = vunpack.c.h.b16 %v272
    %v905 = vunpack.c.l.b16 %v273
    %v906 = vunpack.c.h.b16 %v273
    %v907 = vunpack.c.l.b16 %v274
    %v908 = vunpack.c.h.b16 %v274
    %v909 = vunpack.c.l.b16 %v275
    %v910 = vunpack.c.h.b16 %v275
    %v911 = vunpack.c.l.b16 %v276
    %v912 = vunpack.c.h.b16 %v276
    %v913 = vunpack.c.l.b16 %v277
    %v914 = vunpack.c.h.b16 %v277
    %v915 = vunpack.c.l.b16 %v278
    %v916 = vunpack.c.h.b16 %v278
    %v917 = vunpack.c.l.b16 %v279
    %v918 = vunpack.c.h.b16 %v279
    %v919 = vunpack.c.l.b16 %v280
    %v920 = vunpack.c.h.b16 %v280
    %v921 = vunpack.c.l.b16 %v281
    %v922 = vunpack.c.h.b16 %v281
    %v923 = vunpack.c.l.b16 %v282
    %v924 = vunpack.c.h.b16 %v282
    %v925 = vunpack.c.l.b16 %v283
    %v926 = vunpack.c.h.b16 %v283
    %v927 = vunpack.c.l.b16 %v284
    %v928 = vunpack.c.h.b16 %v284
    %v929 = vunpack.c.l.b16 %v285
    %v930 = vunpack.c.h.b16 %v285
    %v931 = vunpack.c.l.b16 %v286
    %v932 = vunpack.c.h.b16 %v286
    %v933 = vunpack.c.l.b16 %v287
    %v934 = vunpack.c.h.b16 %v287
    %v935 = vunpack.c.l.b16 %v288
    %v936 = vunpack.c.h.b16 %v288
    %v937 = vunpack.c.l.b16 %v289
    %v938 = vunpack.c.h.b16 %v289
    %v939 = vunpack.c.l.b16 %v290
    %v940 = vunpack.c.h.b16 %v290
    %v941 = vunpack.c.l.b16 %v291
    %v942 = vunpack.c.h.b16 %v291
    %v943 = vunpack.c.l.b16 %v292
    %v944 = vunpack.c.h.b16 %v292
    %v945 = vunpack.c.l.b16 %v293
    %v946 = vunpack.c.h.b16 %v293
    %v947 = vunpack.c.l.b16 %v294
    %v948 = vunpack.c.h.b16 %v294
    %v949 = vunpack.c.l.b16 %v295
    %v950 = vunpack.c.h.b16 %v295
    %v951 = vunpack.c.l.b16 %v296
    %v952 = vunpack.c.h.b16 %v296
    %v953 = vunpack.c.l.b16 %v297
    %v954 = vunpack.c.h.b16 %v297
    %v955 = vunpack.c.l.b16 %v298
    %v956 = vunpack.c.h.b16 %v298
    %v957 = vunpack.c.l.b16 %v299
    %v958 = vunpack.c.h.b16 %v299
    %v959 = vunpack.c.l.b16 %v300
    %v960 = vunpack.c.h.b16 %v300
    %v961 = vunpack.c.l.b16 %v301
    %v962 = vunpack.c.h.b16 %v301
    %v963 = vunpack.c.l.b16 %v302
    %v964 = vunpack.c.h.b16 %v302
    %v965 = vunpack.c.l.b16 %v303
    %v966 = vunpack.c.h.b16 %v303
    %v967 = vunpack.c.l.b16 %v304
    %v968 = vunpack.c.h.b16 %v304
    %v969 = vunpack.c.l.b16 %v305
    %v970 = vunpack.c.h.b16 %v305
    %v971 = vunpack.c.l.b16 %v306
    %v972 = vunpack.c.h.b16 %v306
    %v973 = vunpack.c.l.b16 %v307
    %v974 = vunpack.c.h.b16 %v307
    %v975 = vunpack.c.l.b16 %v308
    %v976 = vunpack.c.h.b16 %v308
    %v977 = vunpack.c.l.b16 %v309
    %v978 = vunpack.c.h.b16 %v309
    %v979 = vunpack.c.l.b16 %v310
    %v980 = vunpack.c.h.b16 %v310
    %v981 = vunpack.c.l.b16 %v311
    %v982 = vunpack.c.h.b16 %v311
    %v983 = vunpack.c.l.b16 %v312
    %v984 = vunpack.c.h.b16 %v312
    %v985 = vunpack.c.l.b16 %v313
    %v986 = vunpack.c.h.b16 %v313
    %v987 = vunpack.c.l.b16 %v314
    %v988 = vunpack.c.h.b16 %v314
    %v989 = vunpack.c.l.b16 %v315
    %v990 = vunpack.c.h.b16 %v315
    %v991 = vunpack.c.l.b16 %v316
    %v992 = vunpack.c.h.b16 %v316
    %v993 = vunpack.c.l.b16 %v317
    %v994 = vunpack.c.h.b16 %v317
    %v995 = vunpack.c.l.b16 %v318
    %v996 = vunpack.c.h.b16 %v318
    %v997 = vunpack.c.l.b16 %v319
    %v998 = vunpack.c.h.b16 %v319
    %v999 = vunpack.c.l.b16 %v320
    %v1000 = vunpack.c.h.b16 %v320
    %v1001 = vunpack.c.l.b16 %v321
    %v1002 = vunpack.c.h.b16 %v321
    %v1003 = vunpack.c.l.b16 %v322
    %v1004 = vunpack.c.h.b16 %v322
    %v1005 = vunpack.c.l.b16 %v323
    %v1006 = vunpack.c.h.b16 %v323
    %v1007 = vunpack.c.l.b16 %v324
    %v1008 = vunpack.c.h.b16 %v324
    %v1009 = vunpack.c.l.b16 %v325
    %v1010 = vunpack.c.h.b16 %v325
    %v1011 = vunpack.c.l.b16 %v326
    %v1012 = vunpack.c.h.b16 %v326
    %v1013 = vunpack.c.l.b16 %v327
    %v1014 = vunpack.c.h.b16 %v327
    %v1015 = vunpack.c.l.b16 %v328
    %v1016 = vunpack.c.h.b16 %v328
    %v1017 = vunpack.c.l.b16 %v329
    %v1018 = vunpack.c.h.b16 %v329
    %v1019 = vunpack.c.l.b16 %v330
    %v1020 = vunpack.c.h.b16 %v330
    %v1021 = vunpack.c.l.b16 %v331
    %v1022 = vunpack.c.h.b16 %v331
    %v1023 = vunpack.c.l.b16 %v332
    %v1024 = vunpack.c.h.b16 %v332
    %v1025 = vunpack.c.l.b16 %v333
    %v1026 = vunpack.c.h.b16 %v333
    %v1027 = vunpack.c.l.b16 %v334
    %v1028 = vunpack.c.h.b16 %v334
    %v1029 = vunpack.c.l.b16 %v335
    %v1030 = vunpack.c.h.b16 %v335
    %v1031 = vunpack.c.l.b16 %v336
    %v1032 = vunpack.c.h.b16 %v336
    %v1033 = vunpack.c.l.b16 %v337
    %v1034 = vunpack.c.h.b16 %v337
    %v1035 = vunpack.c.l.b16 %v338
    %v1036 = vunpack.c.h.b16 %v338
    %v1037 = vunpack.c.l.b16 %v339
    %v1038 = vunpack.c.h.b16 %v339
    %v1039 = vunpack.c.l.b16 %v340
    %v1040 = vunpack.c.h.b16 %v340
    %v1041 = vunpack.c.l.b16 %v341
    %v1042 = vunpack.c.h.b16 %v341
    %v1043 = vunpack.c.l.b16 %v342
    %v1044 = vunpack.c.h.b16 %v342
    %v1045 = vunpack.c.l.b16 %v343
    %v1046 = vunpack.c.h.b16 %v343
    %v1047 = vunpack.c.l.b16 %v344
    %v1048 = vunpack.c.h.b16 %v344
    %v1049 = vunpack.c.l.b16 %v345
    %v1050 = vunpack.c.h.b16 %v345
    %v1051 = vunpack.c.l.b16 %v346
    %v1052 = vunpack.c.h.b16 %v346
    %v1053 = vunpack.c.l.b16 %v347
    %v1054 = vunpack.c.h.b16 %v347
    %v1055 = vunpack.c.l.b16 %v348
    %v1056 = vunpack.c.h.b16 %v348
    %v1057 = vunpack.c.l.b16 %v349
    %v1058 = vunpack.c.h.b16 %v349
    %v1059 = vunpack.c.l.b16 %v350
    %v1060 = vunpack.c.h.b16 %v350
    %v1061 = vunpack.c.l.b16 %v351
    %v1062 = vunpack.c.h.b16 %v351
    %v1063 = vunpack.c.l.b16 %v352
    %v1064 = vunpack.c.h.b16 %v352
    %v1065 = vunpack.c.l.b16 %v353
    %v1066 = vunpack.c.h.b16 %v353
    %v1067 = vunpack.c.l.b16 %v354
    %v1068 = vunpack.c.h.b16 %v354
    %v1069 = vunpack.c.l.b16 %v355
    %v1070 = vunpack.c.h.b16 %v355
    %v1071 = vunpack.c.l.b16 %v356
    %v1072 = vunpack.c.h.b16 %v356
    %v1073 = vunpack.c.l.b16 %v357
    %v1074 = vunpack.c.h.b16 %v357
    %v1075 = vunpack.c.l.b16 %v358
    %v1076 = vunpack.c.h.b16 %v358
    %v1077 = vunpack.c.l.b16 %v359
    %v1078 = vunpack.c.h.b16 %v359
    %v1079 = vunpack.c.l.b16 %v360
    %v1080 = vunpack.c.h.b16 %v360
    %v1081 = vunpack.c.l.b16 %v361
    %v1082 = vunpack.c.h.b16 %v361
    %v1083 = vunpack.c.l.b16 %v362
    %v1084 = vunpack.c.h.b16 %v362
    %v1085 = vunpack.c.l.b16 %v363
    %v1086 = vunpack.c.h.b16 %v363
    %v1087 = vunpack.c.l.b16 %v364
    %v1088 = vunpack.c.h.b16 %v364
    %v1089 = vunpack.c.l.b16 %v365
    %v1090 = vunpack.c.h.b16 %v365
    %v1091 = vunpack.c.l.b16 %v366
    %v1092 = vunpack.c.h.b16 %v366
    %v1093 = vunpack.c.l.b16 %v367
    %v1094 = vunpack.c.h.b16 %v367
    %v1095 = vunpack.c.l.b16 %v368
    %v1096 = vunpack.c.h.b16 %v368
    %v1097 = vunpack.c.l.b16 %v369
    %v1098 = vunpack.c.h.b16 %v369
    %v1099 = vunpack.c.l.b16 %v370
    %v1100 = vunpack.c.h.b16 %v370
    %v1101 = vunpack.c.l.b16 %v371
    %v1102 = vunpack.c.h.b16 %v371
    %v1103 = vunpack.c.l.b16 %v372
    %v1104 = vunpack.c.h.b16 %v372
    %v1105 = vunpack.c.l.b16 %v373
    %v1106 = vunpack.c.h.b16 %v373
    %v1107 = vunpack.c.l.b16 %v374
    %v1108 = vunpack.c.h.b16 %v374
    %v1109 = vunpack.c.l.b16 %v375
    %v1110 = vunpack.c.h.b16 %v375
    %v1111 = vunpack.c.l.b16 %v376
    %v1112 = vunpack.c.h.b16 %v376
    %v1113 = vunpack.c.l.b16 %v377
    %v1114 = vunpack.c.h.b16 %v377
    %v1115 = vunpack.c.l.b16 %v378
    %v1116 = vunpack.c.h.b16 %v378
    %v1117 = vunpack.c.l.b16 %v379
    %v1118 = vunpack.c.h.b16 %v379
    %v1119 = vunpack.c.l.b16 %v380
    %v1120 = vunpack.c.h.b16 %v380
    %v1121 = vunpack.c.l.b16 %v381
    %v1122 = vunpack.c.h.b16 %v381
    %v1123 = vunpack.c.l.b16 %v382
    %v1124 = vunpack.c.h.b16 %v382
    %v1125 = vunpack.c.l.b16 %v383
    %v1126 = vunpack.c.h.b16 %v383
    %v1127 = vunpack.c.l.b16 %v384
    %v1128 = vunpack.c.h.b16 %v384
    %v1129 = vunpack.c.l.b16 %v385
    %v1130 = vunpack.c.h.b16 %v385
    %v1131 = vunpack.c.l.b16 %v386
    %v1132 = vunpack.c.h.b16 %v386
    %v1133 = vunpack.c.l.b16 %v387
    %v1134 = vunpack.c.h.b16 %v387
    %v1135 = vunpack.c.l.b16 %v388
    %v1136 = vunpack.c.h.b16 %v388
    %v1137 = vunpack.c.l.b16 %v389
    %v1138 = vunpack.c.h.b16 %v389
    %v1139 = vunpack.c.l.b16 %v390
    %v1140 = vunpack.c.h.b16 %v390
    %v1141 = vunpack.c.l.b16 %v391
    %v1142 = vunpack.c.h.b16 %v391
    %v1143 = vunpack.c.l.b16 %v392
    %v1144 = vunpack.c.h.b16 %v392
    %v1145 = vunpack.c.l.b16 %v393
    %v1146 = vunpack.c.h.b16 %v393
    %v1147 = vunpack.c.l.b16 %v394
    %v1148 = vunpack.c.h.b16 %v394
    %v1149 = vunpack.c.l.b16 %v395
    %v1150 = vunpack.c.h.b16 %v395
    %v1151 = vunpack.c.l.b16 %v396
    %v1152 = vunpack.c.h.b16 %v396
    %v1153 = vunpack.c.l.b16 %v397
    %v1154 = vunpack.c.h.b16 %v397
    %v1155 = vunpack.c.l.b16 %v398
    %v1156 = vunpack.c.h.b16 %v398
    %v1157 = vunpack.c.l.b16 %v399
    %v1158 = vunpack.c.h.b16 %v399
    %v1159 = vunpack.c.l.b16 %v400
    %v1160 = vunpack.c.h.b16 %v400
    %v1161 = vunpack.c.l.b16 %v401
    %v1162 = vunpack.c.h.b16 %v401
    %v1163 = vunpack.c.l.b16 %v402
    %v1164 = vunpack.c.h.b16 %v402
    %v1165 = vunpack.c.l.b16 %v403
    %v1166 = vunpack.c.h.b16 %v403
    %v1167 = vunpack.c.l.b16 %v404
    %v1168 = vunpack.c.h.b16 %v404
    %v1169 = vunpack.c.l.b16 %v405
    %v1170 = vunpack.c.h.b16 %v405
    %v1171 = vunpack.c.l.b16 %v406
    %v1172 = vunpack.c.h.b16 %v406
    %v1173 = vunpack.c.l.b16 %v407
    %v1174 = vunpack.c.h.b16 %v407
    %v1175 = vunpack.c.l.b16 %v408
    %v1176 = vunpack.c.h.b16 %v408
    %v1177 = vunpack.c.l.b16 %v409
    %v1178 = vunpack.c.h.b16 %v409
    %v1179 = vunpack.c.l.b16 %v410
    %v1180 = vunpack.c.h.b16 %v410
    %v1181 = vunpack.c.l.b16 %v411
    %v1182 = vunpack.c.h.b16 %v411
    %v1183 = vunpack.c.l.b16 %v412
    %v1184 = vunpack.c.h.b16 %v412
    %v1185 = vunpack.c.l.b16 %v413
    %v1186 = vunpack.c.h.b16 %v413
    %v1187 = vunpack.c.l.b16 %v414
    %v1188 = vunpack.c.h.b16 %v414
    %v1189 = vunpack.c.l.b16 %v415
    %v1190 = vunpack.c.h.b16 %v415
    %v1191 = vunpack.c.l.b16 %v416
    %v1192 = vunpack.c.h.b16 %v416
    %v1193 = vunpack.c.l.b16 %v417
    %v1194 = vunpack.c.h.b16 %v417
    %v1195 = vunpack.c.l.b16 %v418
    %v1196 = vunpack.c.h.b16 %v418
    %v1197 = vpack.c.b16 %v689, %v685
    %v1198 = vpack.c.b16 %v690, %v686
    %v1199 = vpack.c.b16 %v691, %v687
    %v1200 = vpack.c.b16 %v692, %v688
    %v1201 = vpack.c.b16 %v697, %v693
    %v1202 = vpack.c.b16 %v698, %v694
    %v1203 = vpack.c.b16 %v699, %v695
    %v1204 = vpack.c.b16 %v700, %v696
    %v1205 = vpack.c.b16 %v705, %v701
    %v1206 = vpack.c.b16 %v706, %v702
    %v1207 = vpack.c.b16 %v707, %v703
    %v1208 = vpack.c.b16 %v708, %v704
    %v1209 = vpack.c.b16 %v713, %v709
    %v1210 = vpack.c.b16 %v714, %v710
    %v1211 = vpack.c.b16 %v715, %v711
    %v1212 = vpack.c.b16 %v716, %v712
    %v1213 = vpack.c.b16 %v721, %v717
    %v1214 = vpack.c.b16 %v722, %v718
    %v1215 = vpack.c.b16 %v723, %v719
    %v1216 = vpack.c.b16 %v724, %v720
    %v1217 = vpack.c.b16 %v729, %v725
    %v1218 = vpack.c.b16 %v730, %v726
    %v1219 = vpack.c.b16 %v731, %v727
    %v1220 = vpack.c.b16 %v732, %v728
    %v1221 = vpack.c.b16 %v737, %v733
    %v1222 = vpack.c.b16 %v738, %v734
    %v1223 = vpack.c.b16 %v739, %v735
    %v1224 = vpack.c.b16 %v740, %v736
    %v1225 = vpack.c.b16 %v745, %v741
    %v1226 = vpack.c.b16 %v746, %v742
    %v1227 = vpack.c.b16 %v747, %v743
    %v1228 = vpack.c.b16 %v748, %v744
    %v1229 = vpack.c.b16 %v753, %v749
    %v1230 = vpack.c.b16 %v754, %v750
    %v1231 = vpack.c.b16 %v755, %v751
    %v1232 = vpack.c.b16 %v756, %v752
    %v1233 = vpack.c.b16 %v761, %v757
    %v1234 = vpack.c.b16 %v762, %v758
    %v1235 = vpack.c.b16 %v763, %v759
    %v1236 = vpack.c.b16 %v764, %v760
    %v1237 = vpack.c.b16 %v769, %v765
    %v1238 = vpack.c.b16 %v770, %v766
    %v1239 = vpack.c.b16 %v771, %v767
    %v1240 = vpack.c.b16 %v772, %v768
    %v1241 = vpack.c.b16 %v777, %v773
    %v1242 = vpack.c.b16 %v778, %v774
    %v1243 = vpack.c.b16 %v779, %v775
    %v1244 = vpack.c.b16 %v780, %v776
    %v1245 = vpack.c.b16 %v785, %v781
    %v1246 = vpack.c.b16 %v786, %v782
    %v1247 = vpack.c.b16 %v787, %v783
    %v1248 = vpack.c.b16 %v788, %v784
    %v1249 = vpack.c.b16 %v793, %v789
    %v1250 = vpack.c.b16 %v794, %v790
    %v1251 = vpack.c.b16 %v795, %v791
    %v1252 = vpack.c.b16 %v796, %v792
    %v1253 = vpack.c.b16 %v801, %v797
    %v1254 = vpack.c.b16 %v802, %v798
    %v1255 = vpack.c.b16 %v803, %v799
    %v1256 = vpack.c.b16 %v804, %v800
    %v1257 = vpack.c.b16 %v809, %v805
    %v1258 = vpack.c.b16 %v810, %v806
    %v1259 = vpack.c.b16 %v811, %v807
    %v1260 = vpack.c.b16 %v812, %v808
    %v1261 = vpack.c.b16 %v817, %v813
    %v1262 = vpack.c.b16 %v818, %v814
    %v1263 = vpack.c.b16 %v819, %v815
    %v1264 = vpack.c.b16 %v820, %v816
    %v1265 = vpack.c.b16 %v825, %v821
    %v1266 = vpack.c.b16 %v826, %v822
    %v1267 = vpack.c.b16 %v827, %v823
    %v1268 = vpack.c.b16 %v828, %v824
    %v1269 = vpack.c.b16 %v833, %v829
    %v1270 = vpack.c.b16 %v834, %v830
    %v1271 = vpack.c.b16 %v835, %v831
    %v1272 = vpack.c.b16 %v836, %v832
    %v1273 = vpack.c.b16 %v841, %v837
    %v1274 = vpack.c.b16 %v842, %v838
    %v1275 = vpack.c.b16 %v843, %v839
    %v1276 = vpack.c.b16 %v844, %v840
    %v1277 = vpack.c.b16 %v849, %v845
    %v1278 = vpack.c.b16 %v850, %v846
    %v1279 = vpack.c.b16 %v851, %v847
    %v1280 = vpack.c.b16 %v852, %v848
    %v1281 = vpack.c.b16 %v857, %v853
    %v1282 = vpack.c.b16 %v858, %v854
    %v1283 = vpack.c.b16 %v859, %v855
    %v1284 = vpack.c.b16 %v860, %v856
    %v1285 = vpack.c.b16 %v865, %v861
    %v1286 = vpack.c.b16 %v866, %v862
    %v1287 = vpack.c.b16 %v867, %v863
    %v1288 = vpack.c.b16 %v868, %v864
    %v1289 = vpack.c.b16 %v873, %v869
    %v1290 = vpack.c.b16 %v874, %v870
    %v1291 = vpack.c.b16 %v875, %v871
    %v1292 = vpack.c.b16 %v876, %v872
    %v1293 = vpack.c.b16 %v881, %v877
    %v1294 = vpack.c.b16 %v882, %v878
    %v1295 = vpack.c.b16 %v883, %v879
    %v1296 = vpack.c.b16 %v884, %v880
    %v1297 = vpack.c.b16 %v889, %v885
    %v1298 = vpack.c.b16 %v890, %v886
    %v1299 = vpack.c.b16 %v891, %v887
    %v1300 = vpack.c.b16 %v892, %v888
    %v1301 = vpack.c.b16 %v897, %v893
    %v1302 = vpack.c.b16 %v898, %v894
    %v1303 = vpack.c.b16 %v899, %v895
    %v1304 = vpack.c.b16 %v900, %v896
    %v1305 = vpack.c.b16 %v905, %v901
    %v1306 = vpack.c.b16 %v906, %v902
    %v1307 = vpack.c.b16 %v907, %v903
    %v1308 = vpack.c.b16 %v908, %v904
    %v1309 = vpack.c.b16 %v913, %v909
    %v1310 = vpack.c.b16 %v914, %v910
    %v1311 = vpack.c.b16 %v915, %v911
    %v1312 = vpack.c.b16 %v916, %v912
    %v1313 = vpack.c.b16 %v921, %v917
    %v1314 = vpack.c.b16 %v922, %v918
    %v1315 = vpack.c.b16 %v923, %v919
    %v1316 = vpack.c.b16 %v924, %v920
    %v1317 = vpack.c.b16 %v929, %v925
    %v1318 = vpack.c.b16 %v930, %v926
    %v1319 = vpack.c.b16 %v931, %v927
    %v1320 = vpack.c.b16 %v932, %v928
    %v1321 = vpack.c.b16 %v937, %v933
    %v1322 = vpack.c.b16 %v938, %v934
    %v1323 = vpack.c.b16 %v939, %v935
    %v1324 = vpack.c.b16 %v940, %v936
    %v1325 = vpack.c.b16 %v945, %v941
    %v1326 = vpack.c.b16 %v946, %v942
    %v1327 = vpack.c.b16 %v947, %v943
    %v1328 = vpack.c.b16 %v948, %v944
    %v1329 = vpack.c.b16 %v953, %v949
    %v1330 = vpack.c.b16 %v954, %v950
    %v1331 = vpack.c.b16 %v955, %v951
    %v1332 = vpack.c.b16 %v956, %v952
    %v1333 = vpack.c.b16 %v961, %v957
    %v1334 = vpack.c.b16 %v962, %v958
    %v1335 = vpack.c.b16 %v963, %v959
    %v1336 = vpack.c.b16 %v964, %v960
    %v1337 = vpack.c.b16 %v969, %v965
    %v1338 = vpack.c.b16 %v970, %v966
    %v1339 = vpack.c.b16 %v971, %v967
    %v1340 = vpack.c.b16 %v972, %v968
    %v1341 = vpack.c.b16 %v977, %v973
    %v1342 = vpack.c.b16 %v978, %v974
    %v1343 = vpack.c.b16 %v979, %v975
    %v1344 = vpack.c.b16 %v980, %v976
    %v1345 = vpack.c.b16 %v985, %v981
    %v1346 = vpack.c.b16 %v986, %v982
    %v1347 = vpack.c.b16 %v987, %v983
    %v1348 = vpack.c.b16 %v988, %v984
    %v1349 = vpack.c.b16 %v993, %v989
    %v1350 = vpack.c.b16 %v994, %v990
    %v1351 = vpack.c.b16 %v995, %v991
    %v1352 = vpack.c.b16 %v996, %v992
    %v1353 = vpack.c.b16 %v1001, %v997
    %v1354 = vpack.c.b16 %v1002, %v998
    %v1355 = vpack.c.b16 %v1003, %v999
    %v1356 = vpack.c.b16 %v1004, %v1000
    %v1357 = vpack.c.b16 %v1009, %v1005
    %v1358 = vpack.c.b16 %v1010, %v1006
    %v1359 = vpack.c.b16 %v1011, %v1007
    %v1360 = vpack.c.b16 %v1012, %v1008
    %v1361 = vpack.c.b16 %v1017, %v1013
    %v1362 = vpack.c.b16 %v1018, %v1014
    %v1363 = vpack.c.b16 %v1019, %v1015
    %v1364 = vpack.c.b16 %v1020, %v1016
    %v1365 = vpack.c.b16 %v1025, %v1021
    %v1366 = vpack.c.b16 %v1026, %v1022
    %v1367 = vpack.c.b16 %v1027, %v1023
    %v1368 = vpack.c.b16 %v1028, %v1024
    %v1369 = vpack.c.b16 %v1033, %v1029
    %v1370 = vpack.c.b16 %v1034, %v1030
    %v1371 = vpack.c.b16 %v1035, %v1031
    %v1372 = vpack.c.b16 %v1036, %v1032
    %v1373 = vpack.c.b16 %v1041, %v1037
    %v1374 = vpack.c.b16 %v1042, %v1038
    %v1375 = vpack.c.b16 %v1043, %v1039
    %v1376 = vpack.c.b16 %v1044, %v1040
    %v1377 = vpack.c.b16 %v1049, %v1045
    %v1378 = vpack.c.b16 %v1050, %v1046
    %v1379 = vpack.c.b16 %v1051, %v1047
    %v1380 = vpack.c.b16 %v1052, %v1048
    %v1381 = vpack.c.b16 %v1057, %v1053
    %v1382 = vpack.c.b16 %v1058, %v1054
    %v1383 = vpack.c.b16 %v1059, %v1055
    %v1384 = vpack.c.b16 %v1060, %v1056
    %v1385 = vpack.c.b16 %v1065, %v1061
    %v1386 = vpack.c.b16 %v1066, %v1062
    %v1387 = vpack.c.b16 %v1067, %v1063
    %v1388 = vpack.c.b16 %v1068, %v1064
    %v1389 = vpack.c.b16 %v1073, %v1069
    %v1390 = vpack.c.b16 %v1074, %v1070
    %v1391 = vpack.c.b16 %v1075, %v1071
    %v1392 = vpack.c.b16 %v1076, %v1072
    %v1393 = vpack.c.b16 %v1081, %v1077
    %v1394 = vpack.c.b16 %v1082, %v1078
    %v1395 = vpack.c.b16 %v1083, %v1079
    %v1396 = vpack.c.b16 %v1084, %v1080
    %v1397 = vpack.c.b16 %v1089, %v1085
    %v1398 = vpack.c.b16 %v1090, %v1086
    %v1399 = vpack.c.b16 %v1091, %v1087
    %v1400 = vpack.c.b16 %v1092, %v1088
    %v1401 = vpack.c.b16 %v1097, %v1093
    %v1402 = vpack.c.b16 %v1098, %v1094
    %v1403 = vpack.c.b16 %v1099, %v1095
    %v1404 = vpack.c.b16 %v1100, %v1096
    %v1405 = vpack.c.b16 %v1105, %v1101
    %v1406 = vpack.c.b16 %v1106, %v1102
    %v1407 = vpack.c.b16 %v1107, %v1103
    %v1408 = vpack.c.b16 %v1108, %v1104
    %v1409 = vpack.c.b16 %v1113, %v1109
    %v1410 = vpack.c.b16 %v1114, %v1110
    %v1411 = vpack.c.b16 %v1115, %v1111
    %v1412 = vpack.c.b16 %v1116, %v1112
    %v1413 = vpack.c.b16 %v1121, %v1117
    %v1414 = vpack.c.b16 %v1122, %v1118
    %v1415 = vpack.c.b16 %v1123, %v1119
    %v1416 = vpack.c.b16 %v1124, %v1120
    %v1417 = vpack.c.b16 %v1129, %v1125
    %v1418 = vpack.c.b16 %v1130, %v1126
    %v1419 = vpack.c.b16 %v1131, %v1127
    %v1420 = vpack.c.b16 %v1132, %v1128
    %v1421 = vpack.c.b16 %v1137, %v1133
    %v1422 = vpack.c.b16 %v1138, %v1134
    %v1423 = vpack.c.b16 %v1139, %v1135
    %v1424 = vpack.c.b16 %v1140, %v1136
    %v1425 = vpack.c.b16 %v1145, %v1141
    %v1426 = vpack.c.b16 %v1146, %v1142
    %v1427 = vpack.c.b16 %v1147, %v1143
    %v1428 = vpack.c.b16 %v1148, %v1144
    %v1429 = vpack.c.b16 %v1153, %v1149
    %v1430 = vpack.c.b16 %v1154, %v1150
    %v1431 = vpack.c.b16 %v1155, %v1151
    %v1432 = vpack.c.b16 %v1156, %v1152
    %v1433 = vpack.c.b16 %v1161, %v1157
    %v1434 = vpack.c.b16 %v1162, %v1158
    %v1435 = vpack.c.b16 %v1163, %v1159
    %v1436 = vpack.c.b16 %v1164, %v1160
    %v1437 = vpack.c.b16 %v1169, %v1165
    %v1438 = vpack.c.b16 %v1170, %v1166
    %v1439 = vpack.c.b16 %v1171, %v1167
    %v1440 = vpack.c.b16 %v1172, %v1168
    %v1441 = vpack.c.b16 %v1177, %v1173
    %v1442 = vpack.c.b16 %v1178, %v1174
    %v1443 = vpack.c.b16 %v1179, %v1175
    %v1444 = vpack.c.b16 %v1180, %v1176
    %v1445 = vpack.c.b16 %v1185, %v1181
    %v1446 = vpack.c.b16 %v1186, %v1182
    %v1447 = vpack.c.b16 %v1187, %v1183
    %v1448 = vpack.c.b16 %v1188, %v1184
    %v1449 = vpack.c.b16 %v1193, %v1189
    %v1450 = vpack.c.b16 %v1194, %v1190
    %v1451 = vpack.c.b16 %v1195, %v1191
    %v1452 = vpack.c.b16 %v1196, %v1192
    %1709 = vmatpush.bf16.msra.mxu0 %v1225
    %1710 = vmatpush.bf16.msra.mxu0 %v1221
    %1711 = vmatpush.bf16.msra.mxu0 %v1217
    %1712 = vmatpush.bf16.msra.mxu0 %v1213
    %1713 = vmatpush.bf16.msra.mxu0 %v1209
    %1714 = vmatpush.bf16.msra.mxu0 %v1205
    %1715 = vmatpush.bf16.msra.mxu0 %v1201
    %1716 = vmatpush.bf16.msra.mxu0 %v1197
    %1717 = vmatmul.bf16.gmra.mxu0 %v155
    %v1718 = vpop.f32.mrf.mxu0
    %v1719 = vadd.f32 %v421, %v1718
    %v1720 = vpop.f32.mrf.mxu0
    %1721 = vdwg.mxu0
    %1722 = vmatpush.bf16.msra.mxu0 %v1257
    %1723 = vmatpush.bf16.msra.mxu0 %v1253
    %1724 = vmatpush.bf16.msra.mxu0 %v1249
    %1725 = vmatpush.bf16.msra.mxu0 %v1245
    %1726 = vmatpush.bf16.msra.mxu0 %v1241
    %1727 = vmatpush.bf16.msra.mxu0 %v1237
    %1728 = vmatpush.bf16.msra.mxu0 %v1233
    %1729 = vmatpush.bf16.msra.mxu0 %v1229
    %1730 = vmatmul.bf16.gmra.mxu0 %v156
    %v1731 = vpop.f32.mrf.mxu0
    %v1732 = vadd.f32 %v1719, %v1731
    %v1733 = vpop.f32.mrf.mxu0
    %1734 = vdwg.mxu0
    %1735 = vmatpush.bf16.msra.mxu0 %v1289
    %1736 = vmatpush.bf16.msra.mxu0 %v1285
    %1737 = vmatpush.bf16.msra.mxu0 %v1281
    %1738 = vmatpush.bf16.msra.mxu0 %v1277
    %1739 = vmatpush.bf16.msra.mxu0 %v1273
    %1740 = vmatpush.bf16.msra.mxu0 %v1269
    %1741 = vmatpush.bf16.msra.mxu0 %v1265
    %1742 = vmatpush.bf16.msra.mxu0 %v1261
    %1743 = vmatmul.bf16.gmra.mxu0 %v157
    %v1744 = vpop.f32.mrf.mxu0
    %v1745 = vadd.f32 %v1732, %v1744
    %v1746 = vpop.f32.mrf.mxu0
    %1747 = vdwg.mxu0
    %1748 = vmatpush.bf16.msra.mxu0 %v1321
    %1749 = vmatpush.bf16.msra.mxu0 %v1317
    %1750 = vmatpush.bf16.msra.mxu0 %v1313
    %1751 = vmatpush.bf16.msra.mxu0 %v1309
    %1752 = vmatpush.bf16.msra.mxu0 %v1305
    %1753 = vmatpush.bf16.msra.mxu0 %v1301
    %1754 = vmatpush.bf16.msra.mxu0 %v1297
    %1755 = vmatpush.bf16.msra.mxu0 %v1293
    %1756 = vmatmul.bf16.gmra.mxu0 %v158
    %v1757 = vpop.f32.mrf.mxu0
    %v1758 = vadd.f32 %v1745, %v1757
    %v1759 = vpop.f32.mrf.mxu0
    %1760 = vdwg.mxu0
    %1761 = vmatpush.bf16.msra.mxu0 %v1353
    %1762 = vmatpush.bf16.msra.mxu0 %v1349
    %1763 = vmatpush.bf16.msra.mxu0 %v1345
    %1764 = vmatpush.bf16.msra.mxu0 %v1341
    %1765 = vmatpush.bf16.msra.mxu0 %v1337
    %1766 = vmatpush.bf16.msra.mxu0 %v1333
    %1767 = vmatpush.bf16.msra.mxu0 %v1329
    %1768 = vmatpush.bf16.msra.mxu0 %v1325
    %1769 = vmatmul.bf16.gmra.mxu0 %v159
    %v1770 = vpop.f32.mrf.mxu0
    %v1771 = vadd.f32 %v1758, %v1770
    %v1772 = vpop.f32.mrf.mxu0
    %1773 = vdwg.mxu0
    %1774 = vmatpush.bf16.msra.mxu0 %v1385
    %1775 = vmatpush.bf16.msra.mxu0 %v1381
    %1776 = vmatpush.bf16.msra.mxu0 %v1377
    %1777 = vmatpush.bf16.msra.mxu0 %v1373
    %1778 = vmatpush.bf16.msra.mxu0 %v1369
    %1779 = vmatpush.bf16.msra.mxu0 %v1365
    %1780 = vmatpush.bf16.msra.mxu0 %v1361
    %1781 = vmatpush.bf16.msra.mxu0 %v1357
    %1782 = vmatmul.bf16.gmra.mxu0 %v160
    %v1783 = vpop.f32.mrf.mxu0
    %v1784 = vadd.f32 %v1771, %v1783
    %v1785 = vpop.f32.mrf.mxu0
    %1786 = vdwg.mxu0
    %1787 = vmatpush.bf16.msra.mxu0 %v1417
    %1788 = vmatpush.bf16.msra.mxu0 %v1413
    %1789 = vmatpush.bf16.msra.mxu0 %v1409
    %1790 = vmatpush.bf16.msra.mxu0 %v1405
    %1791 = vmatpush.bf16.msra.mxu0 %v1401
    %1792 = vmatpush.bf16.msra.mxu0 %v1397
    %1793 = vmatpush.bf16.msra.mxu0 %v1393
    %1794 = vmatpush.bf16.msra.mxu0 %v1389
    %1795 = vmatmul.bf16.gmra.mxu0 %v161
    %v1796 = vpop.f32.mrf.mxu0
    %v1797 = vadd.f32 %v1784, %v1796
    %v1798 = vpop.f32.mrf.mxu0
    %1799 = vdwg.mxu0
    %1800 = vmatpush.bf16.msra.mxu0 %v1449
    %1801 = vmatpush.bf16.msra.mxu0 %v1445
    %1802 = vmatpush.bf16.msra.mxu0 %v1441
    %1803 = vmatpush.bf16.msra.mxu0 %v1437
    %1804 = vmatpush.bf16.msra.mxu0 %v1433
    %1805 = vmatpush.bf16.msra.mxu0 %v1429
    %1806 = vmatpush.bf16.msra.mxu0 %v1425
    %1807 = vmatpush.bf16.msra.mxu0 %v1421
    %1808 = vmatmul.bf16.gmra.mxu0 %v162
    %v1809 = vpop.f32.mrf.mxu0
    %v1810 = vadd.f32 %v1797, %v1809
    %v1811 = vpop.f32.mrf.mxu0
    %1812 = vdwg.mxu0
    %1813 = vmatpush.bf16.msra.mxu0 %v1226
    %1814 = vmatpush.bf16.msra.mxu0 %v1222
    %1815 = vmatpush.bf16.msra.mxu0 %v1218
    %1816 = vmatpush.bf16.msra.mxu0 %v1214
    %1817 = vmatpush.bf16.msra.mxu0 %v1210
    %1818 = vmatpush.bf16.msra.mxu0 %v1206
    %1819 = vmatpush.bf16.msra.mxu0 %v1202
    %1820 = vmatpush.bf16.msra.mxu0 %v1198
    %1821 = vmatmul.bf16.gmra.mxu0 %v155
    %v1822 = vpop.f32.mrf.mxu0
    %v1823 = vadd.f32 %v422, %v1822
    %v1824 = vpop.f32.mrf.mxu0
    %1825 = vdwg.mxu0
    %1826 = vmatpush.bf16.msra.mxu0 %v1258
    %1827 = vmatpush.bf16.msra.mxu0 %v1254
    %1828 = vmatpush.bf16.msra.mxu0 %v1250
    %1829 = vmatpush.bf16.msra.mxu0 %v1246
    %1830 = vmatpush.bf16.msra.mxu0 %v1242
    %1831 = vmatpush.bf16.msra.mxu0 %v1238
    %1832 = vmatpush.bf16.msra.mxu0 %v1234
    %1833 = vmatpush.bf16.msra.mxu0 %v1230
    %1834 = vmatmul.bf16.gmra.mxu0 %v156
    %v1835 = vpop.f32.mrf.mxu0
    %v1836 = vadd.f32 %v1823, %v1835
    %v1837 = vpop.f32.mrf.mxu0
    %1838 = vdwg.mxu0
    %1839 = vmatpush.bf16.msra.mxu0 %v1290
    %1840 = vmatpush.bf16.msra.mxu0 %v1286
    %1841 = vmatpush.bf16.msra.mxu0 %v1282
    %1842 = vmatpush.bf16.msra.mxu0 %v1278
    %1843 = vmatpush.bf16.msra.mxu0 %v1274
    %1844 = vmatpush.bf16.msra.mxu0 %v1270
    %1845 = vmatpush.bf16.msra.mxu0 %v1266
    %1846 = vmatpush.bf16.msra.mxu0 %v1262
    %1847 = vmatmul.bf16.gmra.mxu0 %v157
    %v1848 = vpop.f32.mrf.mxu0
    %v1849 = vadd.f32 %v1836, %v1848
    %v1850 = vpop.f32.mrf.mxu0
    %1851 = vdwg.mxu0
    %1852 = vmatpush.bf16.msra.mxu0 %v1322
    %1853 = vmatpush.bf16.msra.mxu0 %v1318
    %1854 = vmatpush.bf16.msra.mxu0 %v1314
    %1855 = vmatpush.bf16.msra.mxu0 %v1310
    %1856 = vmatpush.bf16.msra.mxu0 %v1306
    %1857 = vmatpush.bf16.msra.mxu0 %v1302
    %1858 = vmatpush.bf16.msra.mxu0 %v1298
    %1859 = vmatpush.bf16.msra.mxu0 %v1294
    %1860 = vmatmul.bf16.gmra.mxu0 %v158
    %v1861 = vpop.f32.mrf.mxu0
    %v1862 = vadd.f32 %v1849, %v1861
    %v1863 = vpop.f32.mrf.mxu0
    %1864 = vdwg.mxu0
    %1865 = vmatpush.bf16.msra.mxu0 %v1354
    %1866 = vmatpush.bf16.msra.mxu0 %v1350
    %1867 = vmatpush.bf16.msra.mxu0 %v1346
    %1868 = vmatpush.bf16.msra.mxu0 %v1342
    %1869 = vmatpush.bf16.msra.mxu0 %v1338
    %1870 = vmatpush.bf16.msra.mxu0 %v1334
    %1871 = vmatpush.bf16.msra.mxu0 %v1330
    %1872 = vmatpush.bf16.msra.mxu0 %v1326
    %1873 = vmatmul.bf16.gmra.mxu0 %v159
    %v1874 = vpop.f32.mrf.mxu0
    %v1875 = vadd.f32 %v1862, %v1874
    %v1876 = vpop.f32.mrf.mxu0
    %1877 = vdwg.mxu0
    %1878 = vmatpush.bf16.msra.mxu0 %v1386
    %1879 = vmatpush.bf16.msra.mxu0 %v1382
    %1880 = vmatpush.bf16.msra.mxu0 %v1378
    %1881 = vmatpush.bf16.msra.mxu0 %v1374
    %1882 = vmatpush.bf16.msra.mxu0 %v1370
    %1883 = vmatpush.bf16.msra.mxu0 %v1366
    %1884 = vmatpush.bf16.msra.mxu0 %v1362
    %1885 = vmatpush.bf16.msra.mxu0 %v1358
    %1886 = vmatmul.bf16.gmra.mxu0 %v160
    %v1887 = vpop.f32.mrf.mxu0
    %v1888 = vadd.f32 %v1875, %v1887
    %v1889 = vpop.f32.mrf.mxu0
    %1890 = vdwg.mxu0
    %1891 = vmatpush.bf16.msra.mxu0 %v1418
    %1892 = vmatpush.bf16.msra.mxu0 %v1414
    %1893 = vmatpush.bf16.msra.mxu0 %v1410
    %1894 = vmatpush.bf16.msra.mxu0 %v1406
    %1895 = vmatpush.bf16.msra.mxu0 %v1402
    %1896 = vmatpush.bf16.msra.mxu0 %v1398
    %1897 = vmatpush.bf16.msra.mxu0 %v1394
    %1898 = vmatpush.bf16.msra.mxu0 %v1390
    %1899 = vmatmul.bf16.gmra.mxu0 %v161
    %v1900 = vpop.f32.mrf.mxu0
    %v1901 = vadd.f32 %v1888, %v1900
    %v1902 = vpop.f32.mrf.mxu0
    %1903 = vdwg.mxu0
    %1904 = vmatpush.bf16.msra.mxu0 %v1450
    %1905 = vmatpush.bf16.msra.mxu0 %v1446
    %1906 = vmatpush.bf16.msra.mxu0 %v1442
    %1907 = vmatpush.bf16.msra.mxu0 %v1438
    %1908 = vmatpush.bf16.msra.mxu0 %v1434
    %1909 = vmatpush.bf16.msra.mxu0 %v1430
    %1910 = vmatpush.bf16.msra.mxu0 %v1426
    %1911 = vmatpush.bf16.msra.mxu0 %v1422
    %1912 = vmatmul.bf16.gmra.mxu0 %v162
    %v1913 = vpop.f32.mrf.mxu0
    %v1914 = vadd.f32 %v1901, %v1913
    %v1915 = vpop.f32.mrf.mxu0
    %1916 = vdwg.mxu0
    %1917 = vmatpush.bf16.msra.mxu0 %v1227
    %1918 = vmatpush.bf16.msra.mxu0 %v1223
    %1919 = vmatpush.bf16.msra.mxu0 %v1219
    %1920 = vmatpush.bf16.msra.mxu0 %v1215
    %1921 = vmatpush.bf16.msra.mxu0 %v1211
    %1922 = vmatpush.bf16.msra.mxu0 %v1207
    %1923 = vmatpush.bf16.msra.mxu0 %v1203
    %1924 = vmatpush.bf16.msra.mxu0 %v1199
    %1925 = vmatmul.bf16.gmra.mxu0 %v155
    %v1926 = vpop.f32.mrf.mxu0
    %v1927 = vadd.f32 %v423, %v1926
    %v1928 = vpop.f32.mrf.mxu0
    %1929 = vdwg.mxu0
    %1930 = vmatpush.bf16.msra.mxu0 %v1259
    %1931 = vmatpush.bf16.msra.mxu0 %v1255
    %1932 = vmatpush.bf16.msra.mxu0 %v1251
    %1933 = vmatpush.bf16.msra.mxu0 %v1247
    %1934 = vmatpush.bf16.msra.mxu0 %v1243
    %1935 = vmatpush.bf16.msra.mxu0 %v1239
    %1936 = vmatpush.bf16.msra.mxu0 %v1235
    %1937 = vmatpush.bf16.msra.mxu0 %v1231
    %1938 = vmatmul.bf16.gmra.mxu0 %v156
    %v1939 = vpop.f32.mrf.mxu0
    %v1940 = vadd.f32 %v1927, %v1939
    %v1941 = vpop.f32.mrf.mxu0
    %1942 = vdwg.mxu0
    %1943 = vmatpush.bf16.msra.mxu0 %v1291
    %1944 = vmatpush.bf16.msra.mxu0 %v1287
    %1945 = vmatpush.bf16.msra.mxu0 %v1283
    %1946 = vmatpush.bf16.msra.mxu0 %v1279
    %1947 = vmatpush.bf16.msra.mxu0 %v1275
    %1948 = vmatpush.bf16.msra.mxu0 %v1271
    %1949 = vmatpush.bf16.msra.mxu0 %v1267
    %1950 = vmatpush.bf16.msra.mxu0 %v1263
    %1951 = vmatmul.bf16.gmra.mxu0 %v157
    %v1952 = vpop.f32.mrf.mxu0
    %v1953 = vadd.f32 %v1940, %v1952
    %v1954 = vpop.f32.mrf.mxu0
    %1955 = vdwg.mxu0
    %1956 = vmatpush.bf16.msra.mxu0 %v1323
    %1957 = vmatpush.bf16.msra.mxu0 %v1319
    %1958 = vmatpush.bf16.msra.mxu0 %v1315
    %1959 = vmatpush.bf16.msra.mxu0 %v1311
    %1960 = vmatpush.bf16.msra.mxu0 %v1307
    %1961 = vmatpush.bf16.msra.mxu0 %v1303
    %1962 = vmatpush.bf16.msra.mxu0 %v1299
    %1963 = vmatpush.bf16.msra.mxu0 %v1295
    %1964 = vmatmul.bf16.gmra.mxu0 %v158
    %v1965 = vpop.f32.mrf.mxu0
    %v1966 = vadd.f32 %v1953, %v1965
    %v1967 = vpop.f32.mrf.mxu0
    %1968 = vdwg.mxu0
    %1969 = vmatpush.bf16.msra.mxu0 %v1355
    %1970 = vmatpush.bf16.msra.mxu0 %v1351
    %1971 = vmatpush.bf16.msra.mxu0 %v1347
    %1972 = vmatpush.bf16.msra.mxu0 %v1343
    %1973 = vmatpush.bf16.msra.mxu0 %v1339
    %1974 = vmatpush.bf16.msra.mxu0 %v1335
    %1975 = vmatpush.bf16.msra.mxu0 %v1331
    %1976 = vmatpush.bf16.msra.mxu0 %v1327
    %1977 = vmatmul.bf16.gmra.mxu0 %v159
    %v1978 = vpop.f32.mrf.mxu0
    %v1979 = vadd.f32 %v1966, %v1978
    %v1980 = vpop.f32.mrf.mxu0
    %1981 = vdwg.mxu0
    %1982 = vmatpush.bf16.msra.mxu0 %v1387
    %1983 = vmatpush.bf16.msra.mxu0 %v1383
    %1984 = vmatpush.bf16.msra.mxu0 %v1379
    %1985 = vmatpush.bf16.msra.mxu0 %v1375
    %1986 = vmatpush.bf16.msra.mxu0 %v1371
    %1987 = vmatpush.bf16.msra.mxu0 %v1367
    %1988 = vmatpush.bf16.msra.mxu0 %v1363
    %1989 = vmatpush.bf16.msra.mxu0 %v1359
    %1990 = vmatmul.bf16.gmra.mxu0 %v160
    %v1991 = vpop.f32.mrf.mxu0
    %v1992 = vadd.f32 %v1979, %v1991
    %v1993 = vpop.f32.mrf.mxu0
    %1994 = vdwg.mxu0
    %1995 = vmatpush.bf16.msra.mxu0 %v1419
    %1996 = vmatpush.bf16.msra.mxu0 %v1415
    %1997 = vmatpush.bf16.msra.mxu0 %v1411
    %1998 = vmatpush.bf16.msra.mxu0 %v1407
    %1999 = vmatpush.bf16.msra.mxu0 %v1403
    %2000 = vmatpush.bf16.msra.mxu0 %v1399
    %2001 = vmatpush.bf16.msra.mxu0 %v1395
    %2002 = vmatpush.bf16.msra.mxu0 %v1391
    %2003 = vmatmul.bf16.gmra.mxu0 %v161
    %v2004 = vpop.f32.mrf.mxu0
    %v2005 = vadd.f32 %v1992, %v2004
    %v2006 = vpop.f32.mrf.mxu0
    %2007 = vdwg.mxu0
    %2008 = vmatpush.bf16.msra.mxu0 %v1451
    %2009 = vmatpush.bf16.msra.mxu0 %v1447
    %2010 = vmatpush.bf16.msra.mxu0 %v1443
    %2011 = vmatpush.bf16.msra.mxu0 %v1439
    %2012 = vmatpush.bf16.msra.mxu0 %v1435
    %2013 = vmatpush.bf16.msra.mxu0 %v1431
    %2014 = vmatpush.bf16.msra.mxu0 %v1427
    %2015 = vmatpush.bf16.msra.mxu0 %v1423
    %2016 = vmatmul.bf16.gmra.mxu0 %v162
    %v2017 = vpop.f32.mrf.mxu0
    %v2018 = vadd.f32 %v2005, %v2017
    %v2019 = vpop.f32.mrf.mxu0
    %2020 = vdwg.mxu0
    %2021 = vmatpush.bf16.msra.mxu0 %v1228
    %2022 = vmatpush.bf16.msra.mxu0 %v1224
    %2023 = vmatpush.bf16.msra.mxu0 %v1220
    %2024 = vmatpush.bf16.msra.mxu0 %v1216
    %2025 = vmatpush.bf16.msra.mxu0 %v1212
    %2026 = vmatpush.bf16.msra.mxu0 %v1208
    %2027 = vmatpush.bf16.msra.mxu0 %v1204
    %2028 = vmatpush.bf16.msra.mxu0 %v1200
    %2029 = vmatmul.bf16.gmra.mxu0 %v155
    %v2030 = vpop.f32.mrf.mxu0
    %v2031 = vadd.f32 %v424, %v2030
    %v2032 = vpop.f32.mrf.mxu0
    %2033 = vdwg.mxu0
    %2034 = vmatpush.bf16.msra.mxu0 %v1260
    %2035 = vmatpush.bf16.msra.mxu0 %v1256
    %2036 = vmatpush.bf16.msra.mxu0 %v1252
    %2037 = vmatpush.bf16.msra.mxu0 %v1248
    %2038 = vmatpush.bf16.msra.mxu0 %v1244
    %2039 = vmatpush.bf16.msra.mxu0 %v1240
    %2040 = vmatpush.bf16.msra.mxu0 %v1236
    %2041 = vmatpush.bf16.msra.mxu0 %v1232
    %2042 = vmatmul.bf16.gmra.mxu0 %v156
    %v2043 = vpop.f32.mrf.mxu0
    %v2044 = vadd.f32 %v2031, %v2043
    %v2045 = vpop.f32.mrf.mxu0
    %2046 = vdwg.mxu0
    %2047 = vmatpush.bf16.msra.mxu0 %v1292
    %2048 = vmatpush.bf16.msra.mxu0 %v1288
    %2049 = vmatpush.bf16.msra.mxu0 %v1284
    %2050 = vmatpush.bf16.msra.mxu0 %v1280
    %2051 = vmatpush.bf16.msra.mxu0 %v1276
    %2052 = vmatpush.bf16.msra.mxu0 %v1272
    %2053 = vmatpush.bf16.msra.mxu0 %v1268
    %2054 = vmatpush.bf16.msra.mxu0 %v1264
    %2055 = vmatmul.bf16.gmra.mxu0 %v157
    %v2056 = vpop.f32.mrf.mxu0
    %v2057 = vadd.f32 %v2044, %v2056
    %v2058 = vpop.f32.mrf.mxu0
    %2059 = vdwg.mxu0
    %2060 = vmatpush.bf16.msra.mxu0 %v1324
    %2061 = vmatpush.bf16.msra.mxu0 %v1320
    %2062 = vmatpush.bf16.msra.mxu0 %v1316
    %2063 = vmatpush.bf16.msra.mxu0 %v1312
    %2064 = vmatpush.bf16.msra.mxu0 %v1308
    %2065 = vmatpush.bf16.msra.mxu0 %v1304
    %2066 = vmatpush.bf16.msra.mxu0 %v1300
    %2067 = vmatpush.bf16.msra.mxu0 %v1296
    %2068 = vmatmul.bf16.gmra.mxu0 %v158
    %v2069 = vpop.f32.mrf.mxu0
    %v2070 = vadd.f32 %v2057, %v2069
    %v2071 = vpop.f32.mrf.mxu0
    %2072 = vdwg.mxu0
    %2073 = vmatpush.bf16.msra.mxu0 %v1356
    %2074 = vmatpush.bf16.msra.mxu0 %v1352
    %2075 = vmatpush.bf16.msra.mxu0 %v1348
    %2076 = vmatpush.bf16.msra.mxu0 %v1344
    %2077 = vmatpush.bf16.msra.mxu0 %v1340
    %2078 = vmatpush.bf16.msra.mxu0 %v1336
    %2079 = vmatpush.bf16.msra.mxu0 %v1332
    %2080 = vmatpush.bf16.msra.mxu0 %v1328
    %2081 = vmatmul.bf16.gmra.mxu0 %v159
    %v2082 = vpop.f32.mrf.mxu0
    %v2083 = vadd.f32 %v2070, %v2082
    %v2084 = vpop.f32.mrf.mxu0
    %2085 = vdwg.mxu0
    %2086 = vmatpush.bf16.msra.mxu0 %v1388
    %2087 = vmatpush.bf16.msra.mxu0 %v1384
    %2088 = vmatpush.bf16.msra.mxu0 %v1380
    %2089 = vmatpush.bf16.msra.mxu0 %v1376
    %2090 = vmatpush.bf16.msra.mxu0 %v1372
    %2091 = vmatpush.bf16.msra.mxu0 %v1368
    %2092 = vmatpush.bf16.msra.mxu0 %v1364
    %2093 = vmatpush.bf16.msra.mxu0 %v1360
    %2094 = vmatmul.bf16.gmra.mxu0 %v160
    %v2095 = vpop.f32.mrf.mxu0
    %v2096 = vadd.f32 %v2083, %v2095
    %v2097 = vpop.f32.mrf.mxu0
    %2098 = vdwg.mxu0
    %2099 = vmatpush.bf16.msra.mxu0 %v1420
    %2100 = vmatpush.bf16.msra.mxu0 %v1416
    %2101 = vmatpush.bf16.msra.mxu0 %v1412
    %2102 = vmatpush.bf16.msra.mxu0 %v1408
    %2103 = vmatpush.bf16.msra.mxu0 %v1404
    %2104 = vmatpush.bf16.msra.mxu0 %v1400
    %2105 = vmatpush.bf16.msra.mxu0 %v1396
    %2106 = vmatpush.bf16.msra.mxu0 %v1392
    %2107 = vmatmul.bf16.gmra.mxu0 %v161
    %v2108 = vpop.f32.mrf.mxu0
    %v2109 = vadd.f32 %v2096, %v2108
    %v2110 = vpop.f32.mrf.mxu0
    %2111 = vdwg.mxu0
    %2112 = vmatpush.bf16.msra.mxu0 %v1452
    %2113 = vmatpush.bf16.msra.mxu0 %v1448
    %2114 = vmatpush.bf16.msra.mxu0 %v1444
    %2115 = vmatpush.bf16.msra.mxu0 %v1440
    %2116 = vmatpush.bf16.msra.mxu0 %v1436
    %2117 = vmatpush.bf16.msra.mxu0 %v1432
    %2118 = vmatpush.bf16.msra.mxu0 %v1428
    %2119 = vmatpush.bf16.msra.mxu0 %v1424
    %2120 = vmatmul.bf16.gmra.mxu0 %v162
    %v2121 = vpop.f32.mrf.mxu0
    %v2122 = vadd.f32 %v2109, %v2121
    %v2123 = vpop.f32.mrf.mxu0
    %2124 = vdwg.mxu0
    %v2125 = vmax.f32 %v1810, 0.0
    %v2126 = vmax.f32 %v1914, 0.0
    %v2127 = vmax.f32 %v2018, 0.0
    %v2128 = vmax.f32 %v2122, 0.0
    %v2129 = vpack.c.bf16 %v2125, %v2125
    %v2130 = vpack.c.bf16 %v2126, %v2126
    %v2131 = vpack.c.bf16 %v2127, %v2127
    %v2132 = vpack.c.bf16 %v2128, %v2128
    %v2133 = vld [vmem:[#allocation7] sm:$0xff]
    %v2134 = vld [vmem:[#allocation7 + $0x8] sm:$0xff]
    %v2135 = vld [vmem:[#allocation7 + $0x10] sm:$0xff]
    %v2136 = vld [vmem:[#allocation7 + $0x18] sm:$0xff]
    %v2137 = vld [vmem:[#allocation7 + $0x20] sm:$0xff]
    %v2138 = vld [vmem:[#allocation7 + $0x28] sm:$0xff]
    %v2139 = vld [vmem:[#allocation7 + $0x30] sm:$0xff]
    %v2140 = vld [vmem:[#allocation7 + $0x38] sm:$0xff]
    %v2141 = vld [vmem:[#allocation7 + $0x40] sm:$0xff]
    %v2142 = vld [vmem:[#allocation7 + $0x48] sm:$0xff]
    %v2143 = vld [vmem:[#allocation7 + $0x50] sm:$0xff]
    %v2144 = vld [vmem:[#allocation7 + $0x58] sm:$0xff]
    %v2145 = vld [vmem:[#allocation7 + $0x60] sm:$0xff]
    %v2146 = vld [vmem:[#allocation7 + $0x68] sm:$0xff]
    %v2147 = vld [vmem:[#allocation7 + $0x70] sm:$0xff]
    %v2148 = vld [vmem:[#allocation7 + $0x78] sm:$0xff]
    %v2149 = vld [vmem:[#allocation7 + $0x80] sm:$0xff]
    %v2150 = vld [vmem:[#allocation7 + $0x88] sm:$0xff]
    %v2151 = vld [vmem:[#allocation7 + $0x90] sm:$0xff]
    %v2152 = vld [vmem:[#allocation7 + $0x98] sm:$0xff]
    %v2153 = vld [vmem:[#allocation7 + $0xa0] sm:$0xff]
    %v2154 = vld [vmem:[#allocation7 + $0xa8] sm:$0xff]
    %v2155 = vld [vmem:[#allocation7 + $0xb0] sm:$0xff]
    %v2156 = vld [vmem:[#allocation7 + $0xb8] sm:$0xff]
    %v2157 = vld [vmem:[#allocation7 + $0xc0] sm:$0xff]
    %v2158 = vld [vmem:[#allocation7 + $0xc8] sm:$0xff]
    %v2159 = vld [vmem:[#allocation7 + $0xd0] sm:$0xff]
    %v2160 = vld [vmem:[#allocation7 + $0xd8] sm:$0xff]
    %v2161 = vld [vmem:[#allocation7 + $0xe0] sm:$0xff]
    %v2162 = vld [vmem:[#allocation7 + $0xe8] sm:$0xff]
    %v2163 = vld [vmem:[#allocation7 + $0xf0] sm:$0xff]
    %v2164 = vld [vmem:[#allocation7 + $0xf8] sm:$0xff]
    %v2165 = vld [vmem:[#allocation7 + $0x100] sm:$0xff]
    %v2166 = vld [vmem:[#allocation7 + $0x108] sm:$0xff]
    %v2167 = vld [vmem:[#allocation7 + $0x110] sm:$0xff]
    %v2168 = vld [vmem:[#allocation7 + $0x118] sm:$0xff]
    %v2169 = vld [vmem:[#allocation7 + $0x120] sm:$0xff]
    %v2170 = vld [vmem:[#allocation7 + $0x128] sm:$0xff]
    %v2171 = vld [vmem:[#allocation7 + $0x130] sm:$0xff]
    %v2172 = vld [vmem:[#allocation7 + $0x138] sm:$0xff]
    %v2173 = vld [vmem:[#allocation7 + $0x140] sm:$0xff]
    %v2174 = vld [vmem:[#allocation7 + $0x148] sm:$0xff]
    %v2175 = vld [vmem:[#allocation7 + $0x150] sm:$0xff]
    %v2176 = vld [vmem:[#allocation7 + $0x158] sm:$0xff]
    %v2177 = vld [vmem:[#allocation7 + $0x160] sm:$0xff]
    %v2178 = vld [vmem:[#allocation7 + $0x168] sm:$0xff]
    %v2179 = vld [vmem:[#allocation7 + $0x170] sm:$0xff]
    %v2180 = vld [vmem:[#allocation7 + $0x178] sm:$0xff]
    %v2181 = vld [vmem:[#allocation7 + $0x180] sm:$0xff]
    %v2182 = vld [vmem:[#allocation7 + $0x188] sm:$0xff]
    %v2183 = vld [vmem:[#allocation7 + $0x190] sm:$0xff]
    %v2184 = vld [vmem:[#allocation7 + $0x198] sm:$0xff]
    %v2185 = vld [vmem:[#allocation7 + $0x1a0] sm:$0xff]
    %v2186 = vld [vmem:[#allocation7 + $0x1a8] sm:$0xff]
    %v2187 = vld [vmem:[#allocation7 + $0x1b0] sm:$0xff]
    %v2188 = vld [vmem:[#allocation7 + $0x1b8] sm:$0xff]
    %v2189 = vld [vmem:[#allocation7 + $0x1c0] sm:$0xff]
    %v2190 = vld [vmem:[#allocation7 + $0x1c8] sm:$0xff]
    %v2191 = vld [vmem:[#allocation7 + $0x1d0] sm:$0xff]
    %v2192 = vld [vmem:[#allocation7 + $0x1d8] sm:$0xff]
    %v2193 = vld [vmem:[#allocation7 + $0x1e0] sm:$0xff]
    %v2194 = vld [vmem:[#allocation7 + $0x1e8] sm:$0xff]
    %v2195 = vld [vmem:[#allocation7 + $0x1f0] sm:$0xff]
    %v2196 = vld [vmem:[#allocation7 + $0x1f8] sm:$0xff]
    %v2197 = vld [vmem:[#allocation13 + $0x4] sm:$0x3]
    %v2199 = vperm.slane %v2197, 0
    %v2200 = vperm.slane %v2197, 1
    %v2267 = vunpack.c.l.b16 %v2133
    %v2268 = vunpack.c.h.b16 %v2133
    %v2269 = vunpack.c.l.b16 %v2134
    %v2270 = vunpack.c.h.b16 %v2134
    %v2271 = vunpack.c.l.b16 %v2135
    %v2272 = vunpack.c.h.b16 %v2135
    %v2273 = vunpack.c.l.b16 %v2136
    %v2274 = vunpack.c.h.b16 %v2136
    %v2275 = vunpack.c.l.b16 %v2137
    %v2276 = vunpack.c.h.b16 %v2137
    %v2277 = vunpack.c.l.b16 %v2138
    %v2278 = vunpack.c.h.b16 %v2138
    %v2279 = vunpack.c.l.b16 %v2139
    %v2280 = vunpack.c.h.b16 %v2139
    %v2281 = vunpack.c.l.b16 %v2140
    %v2282 = vunpack.c.h.b16 %v2140
    %v2283 = vunpack.c.l.b16 %v2141
    %v2284 = vunpack.c.h.b16 %v2141
    %v2285 = vunpack.c.l.b16 %v2142
    %v2286 = vunpack.c.h.b16 %v2142
    %v2287 = vunpack.c.l.b16 %v2143
    %v2288 = vunpack.c.h.b16 %v2143
    %v2289 = vunpack.c.l.b16 %v2144
    %v2290 = vunpack.c.h.b16 %v2144
    %v2291 = vunpack.c.l.b16 %v2145
    %v2292 = vunpack.c.h.b16 %v2145
    %v2293 = vunpack.c.l.b16 %v2146
    %v2294 = vunpack.c.h.b16 %v2146
    %v2295 = vunpack.c.l.b16 %v2147
    %v2296 = vunpack.c.h.b16 %v2147
    %v2297 = vunpack.c.l.b16 %v2148
    %v2298 = vunpack.c.h.b16 %v2148
    %v2299 = vunpack.c.l.b16 %v2149
    %v2300 = vunpack.c.h.b16 %v2149
    %v2301 = vunpack.c.l.b16 %v2150
    %v2302 = vunpack.c.h.b16 %v2150
    %v2303 = vunpack.c.l.b16 %v2151
    %v2304 = vunpack.c.h.b16 %v2151
    %v2305 = vunpack.c.l.b16 %v2152
    %v2306 = vunpack.c.h.b16 %v2152
    %v2307 = vunpack.c.l.b16 %v2153
    %v2308 = vunpack.c.h.b16 %v2153
    %v2309 = vunpack.c.l.b16 %v2154
    %v2310 = vunpack.c.h.b16 %v2154
    %v2311 = vunpack.c.l.b16 %v2155
    %v2312 = vunpack.c.h.b16 %v2155
    %v2313 = vunpack.c.l.b16 %v2156
    %v2314 = vunpack.c.h.b16 %v2156
    %v2315 = vunpack.c.l.b16 %v2157
    %v2316 = vunpack.c.h.b16 %v2157
    %v2317 = vunpack.c.l.b16 %v2158
    %v2318 = vunpack.c.h.b16 %v2158
    %v2319 = vunpack.c.l.b16 %v2159
    %v2320 = vunpack.c.h.b16 %v2159
    %v2321 = vunpack.c.l.b16 %v2160
    %v2322 = vunpack.c.h.b16 %v2160
    %v2323 = vunpack.c.l.b16 %v2161
    %v2324 = vunpack.c.h.b16 %v2161
    %v2325 = vunpack.c.l.b16 %v2162
    %v2326 = vunpack.c.h.b16 %v2162
    %v2327 = vunpack.c.l.b16 %v2163
    %v2328 = vunpack.c.h.b16 %v2163
    %v2329 = vunpack.c.l.b16 %v2164
    %v2330 = vunpack.c.h.b16 %v2164
    %v2331 = vunpack.c.l.b16 %v2165
    %v2332 = vunpack.c.h.b16 %v2165
    %v2333 = vunpack.c.l.b16 %v2166
    %v2334 = vunpack.c.h.b16 %v2166
    %v2335 = vunpack.c.l.b16 %v2167
    %v2336 = vunpack.c.h.b16 %v2167
    %v2337 = vunpack.c.l.b16 %v2168
    %v2338 = vunpack.c.h.b16 %v2168
    %v2339 = vunpack.c.l.b16 %v2169
    %v2340 = vunpack.c.h.b16 %v2169
    %v2341 = vunpack.c.l.b16 %v2170
    %v2342 = vunpack.c.h.b16 %v2170
    %v2343 = vunpack.c.l.b16 %v2171
    %v2344 = vunpack.c.h.b16 %v2171
    %v2345 = vunpack.c.l.b16 %v2172
    %v2346 = vunpack.c.h.b16 %v2172
    %v2347 = vunpack.c.l.b16 %v2173
    %v2348 = vunpack.c.h.b16 %v2173
    %v2349 = vunpack.c.l.b16 %v2174
    %v2350 = vunpack.c.h.b16 %v2174
    %v2351 = vunpack.c.l.b16 %v2175
    %v2352 = vunpack.c.h.b16 %v2175
    %v2353 = vunpack.c.l.b16 %v2176
    %v2354 = vunpack.c.h.b16 %v2176
    %v2355 = vunpack.c.l.b16 %v2177
    %v2356 = vunpack.c.h.b16 %v2177
    %v2357 = vunpack.c.l.b16 %v2178
    %v2358 = vunpack.c.h.b16 %v2178
    %v2359 = vunpack.c.l.b16 %v2179
    %v2360 = vunpack.c.h.b16 %v2179
    %v2361 = vunpack.c.l.b16 %v2180
    %v2362 = vunpack.c.h.b16 %v2180
    %v2363 = vunpack.c.l.b16 %v2181
    %v2364 = vunpack.c.h.b16 %v2181
    %v2365 = vunpack.c.l.b16 %v2182
    %v2366 = vunpack.c.h.b16 %v2182
    %v2367 = vunpack.c.l.b16 %v2183
    %v2368 = vunpack.c.h.b16 %v2183
    %v2369 = vunpack.c.l.b16 %v2184
    %v2370 = vunpack.c.h.b16 %v2184
    %v2371 = vunpack.c.l.b16 %v2185
    %v2372 = vunpack.c.h.b16 %v2185
    %v2373 = vunpack.c.l.b16 %v2186
    %v2374 = vunpack.c.h.b16 %v2186
    %v2375 = vunpack.c.l.b16 %v2187
    %v2376 = vunpack.c.h.b16 %v2187
    %v2377 = vunpack.c.l.b16 %v2188
    %v2378 = vunpack.c.h.b16 %v2188
    %v2379 = vunpack.c.l.b16 %v2189
    %v2380 = vunpack.c.h.b16 %v2189
    %v2381 = vunpack.c.l.b16 %v2190
    %v2382 = vunpack.c.h.b16 %v2190
    %v2383 = vunpack.c.l.b16 %v2191
    %v2384 = vunpack.c.h.b16 %v2191
    %v2385 = vunpack.c.l.b16 %v2192
    %v2386 = vunpack.c.h.b16 %v2192
    %v2387 = vunpack.c.l.b16 %v2193
    %v2388 = vunpack.c.h.b16 %v2193
    %v2389 = vunpack.c.l.b16 %v2194
    %v2390 = vunpack.c.h.b16 %v2194
    %v2391 = vunpack.c.l.b16 %v2195
    %v2392 = vunpack.c.h.b16 %v2195
    %v2393 = vunpack.c.l.b16 %v2196
    %v2394 = vunpack.c.h.b16 %v2196
    %v2395 = vpack.c.b16 %v2269, %v2267
    %v2396 = vpack.c.b16 %v2270, %v2268
    %v2397 = vpack.c.b16 %v2273, %v2271
    %v2398 = vpack.c.b16 %v2274, %v2272
    %v2399 = vpack.c.b16 %v2277, %v2275
    %v2400 = vpack.c.b16 %v2278, %v2276
    %v2401 = vpack.c.b16 %v2281, %v2279
    %v2402 = vpack.c.b16 %v2282, %v2280
    %v2403 = vpack.c.b16 %v2285, %v2283
    %v2404 = vpack.c.b16 %v2286, %v2284
    %v2405 = vpack.c.b16 %v2289, %v2287
    %v2406 = vpack.c.b16 %v2290, %v2288
    %v2407 = vpack.c.b16 %v2293, %v2291
    %v2408 = vpack.c.b16 %v2294, %v2292
    %v2409 = vpack.c.b16 %v2297, %v2295
    %v2410 = vpack.c.b16 %v2298, %v2296
    %v2411 = vpack.c.b16 %v2301, %v2299
    %v2412 = vpack.c.b16 %v2302, %v2300
    %v2413 = vpack.c.b16 %v2305, %v2303
    %v2414 = vpack.c.b16 %v2306, %v2304
    %v2415 = vpack.c.b16 %v2309, %v2307
    %v2416 = vpack.c.b16 %v2310, %v2308
    %v2417 = vpack.c.b16 %v2313, %v2311
    %v2418 = vpack.c.b16 %v2314, %v2312
    %v2419 = vpack.c.b16 %v2317, %v2315
    %v2420 = vpack.c.b16 %v2318, %v2316
    %v2421 = vpack.c.b16 %v2321, %v2319
    %v2422 = vpack.c.b16 %v2322, %v2320
    %v2423 = vpack.c.b16 %v2325, %v2323
    %v2424 = vpack.c.b16 %v2326, %v2324
    %v2425 = vpack.c.b16 %v2329, %v2327
    %v2426 = vpack.c.b16 %v2330, %v2328
    %v2427 = vpack.c.b16 %v2333, %v2331
    %v2428 = vpack.c.b16 %v2334, %v2332
    %v2429 = vpack.c.b16 %v2337, %v2335
    %v2430 = vpack.c.b16 %v2338, %v2336
    %v2431 = vpack.c.b16 %v2341, %v2339
    %v2432 = vpack.c.b16 %v2342, %v2340
    %v2433 = vpack.c.b16 %v2345, %v2343
    %v2434 = vpack.c.b16 %v2346, %v2344
    %v2435 = vpack.c.b16 %v2349, %v2347
    %v2436 = vpack.c.b16 %v2350, %v2348
    %v2437 = vpack.c.b16 %v2353, %v2351
    %v2438 = vpack.c.b16 %v2354, %v2352
    %v2439 = vpack.c.b16 %v2357, %v2355
    %v2440 = vpack.c.b16 %v2358, %v2356
    %v2441 = vpack.c.b16 %v2361, %v2359
    %v2442 = vpack.c.b16 %v2362, %v2360
    %v2443 = vpack.c.b16 %v2365, %v2363
    %v2444 = vpack.c.b16 %v2366, %v2364
    %v2445 = vpack.c.b16 %v2369, %v2367
    %v2446 = vpack.c.b16 %v2370, %v2368
    %v2447 = vpack.c.b16 %v2373, %v2371
    %v2448 = vpack.c.b16 %v2374, %v2372
    %v2449 = vpack.c.b16 %v2377, %v2375
    %v2450 = vpack.c.b16 %v2378, %v2376
    %v2451 = vpack.c.b16 %v2381, %v2379
    %v2452 = vpack.c.b16 %v2382, %v2380
    %v2453 = vpack.c.b16 %v2385, %v2383
    %v2454 = vpack.c.b16 %v2386, %v2384
    %v2455 = vpack.c.b16 %v2389, %v2387
    %v2456 = vpack.c.b16 %v2390, %v2388
    %v2457 = vpack.c.b16 %v2393, %v2391
    %v2458 = vpack.c.b16 %v2394, %v2392
    %2523 = vmatpush.bf16.msra.mxu0 %v2409
    %2524 = vmatpush.bf16.msra.mxu0 %v2407
    %2525 = vmatpush.bf16.msra.mxu0 %v2405
    %2526 = vmatpush.bf16.msra.mxu0 %v2403
    %2527 = vmatpush.bf16.msra.mxu0 %v2401
    %2528 = vmatpush.bf16.msra.mxu0 %v2399
    %2529 = vmatpush.bf16.msra.mxu0 %v2397
    %2530 = vmatpush.bf16.msra.mxu0 %v2395
    %2531 = vmatmul.bf16.gmra.mxu0 %v2129
    %v2532 = vpop.f32.mrf.mxu0
    %v2533 = vadd.f32 %v2199, %v2532
    %v2534 = vpop.f32.mrf.mxu0
    %2535 = vdwg.mxu0
    %2536 = vmatpush.bf16.msra.mxu0 %v2425
    %2537 = vmatpush.bf16.msra.mxu0 %v2423
    %2538 = vmatpush.bf16.msra.mxu0 %v2421
    %2539 = vmatpush.bf16.msra.mxu0 %v2419
    %2540 = vmatpush.bf16.msra.mxu0 %v2417
    %2541 = vmatpush.bf16.msra.mxu0 %v2415
    %2542 = vmatpush.bf16.msra.mxu0 %v2413
    %2543 = vmatpush.bf16.msra.mxu0 %v2411
    %2544 = vmatmul.bf16.gmra.mxu0 %v2130
    %v2545 = vpop.f32.mrf.mxu0
    %v2546 = vadd.f32 %v2533, %v2545
    %v2547 = vpop.f32.mrf.mxu0
    %2548 = vdwg.mxu0
    %2549 = vmatpush.bf16.msra.mxu0 %v2441
    %2550 = vmatpush.bf16.msra.mxu0 %v2439
    %2551 = vmatpush.bf16.msra.mxu0 %v2437
    %2552 = vmatpush.bf16.msra.mxu0 %v2435
    %2553 = vmatpush.bf16.msra.mxu0 %v2433
    %2554 = vmatpush.bf16.msra.mxu0 %v2431
    %2555 = vmatpush.bf16.msra.mxu0 %v2429
    %2556 = vmatpush.bf16.msra.mxu0 %v2427
    %2557 = vmatmul.bf16.gmra.mxu0 %v2131
    %v2558 = vpop.f32.mrf.mxu0
    %v2559 = vadd.f32 %v2546, %v2558
    %v2560 = vpop.f32.mrf.mxu0
    %2561 = vdwg.mxu0
    %2562 = vmatpush.bf16.msra.mxu0 %v2457
    %2563 = vmatpush.bf16.msra.mxu0 %v2455
    %2564 = vmatpush.bf16.msra.mxu0 %v2453
    %2565 = vmatpush.bf16.msra.mxu0 %v2451
    %2566 = vmatpush.bf16.msra.mxu0 %v2449
    %2567 = vmatpush.bf16.msra.mxu0 %v2447
    %2568 = vmatpush.bf16.msra.mxu0 %v2445
    %2569 = vmatpush.bf16.msra.mxu0 %v2443
    %2570 = vmatmul.bf16.gmra.mxu0 %v2132
    %v2571 = vpop.f32.mrf.mxu0
    %v2572 = vadd.f32 %v2559, %v2571
    %v2573 = vpop.f32.mrf.mxu0
    %2574 = vdwg.mxu0
    %2575 = vmatpush.bf16.msra.mxu0 %v2410
    %2576 = vmatpush.bf16.msra.mxu0 %v2408
    %2577 = vmatpush.bf16.msra.mxu0 %v2406
    %2578 = vmatpush.bf16.msra.mxu0 %v2404
    %2579 = vmatpush.bf16.msra.mxu0 %v2402
    %2580 = vmatpush.bf16.msra.mxu0 %v2400
    %2581 = vmatpush.bf16.msra.mxu0 %v2398
    %2582 = vmatpush.bf16.msra.mxu0 %v2396
    %2583 = vmatmul.bf16.gmra.mxu0 %v2129
    %v2584 = vpop.f32.mrf.mxu0
    %v2585 = vadd.f32 %v2200, %v2584
    %v2586 = vpop.f32.mrf.mxu0
    %2587 = vdwg.mxu0
    %2588 = vmatpush.bf16.msra.mxu0 %v2426
    %2589 = vmatpush.bf16.msra.mxu0 %v2424
    %2590 = vmatpush.bf16.msra.mxu0 %v2422
    %2591 = vmatpush.bf16.msra.mxu0 %v2420
    %2592 = vmatpush.bf16.msra.mxu0 %v2418
    %2593 = vmatpush.bf16.msra.mxu0 %v2416
    %2594 = vmatpush.bf16.msra.mxu0 %v2414
    %2595 = vmatpush.bf16.msra.mxu0 %v2412
    %2596 = vmatmul.bf16.gmra.mxu0 %v2130
    %v2597 = vpop.f32.mrf.mxu0
    %v2598 = vadd.f32 %v2585, %v2597
    %v2599 = vpop.f32.mrf.mxu0
    %2600 = vdwg.mxu0
    %2601 = vmatpush.bf16.msra.mxu0 %v2442
    %2602 = vmatpush.bf16.msra.mxu0 %v2440
    %2603 = vmatpush.bf16.msra.mxu0 %v2438
    %2604 = vmatpush.bf16.msra.mxu0 %v2436
    %2605 = vmatpush.bf16.msra.mxu0 %v2434
    %2606 = vmatpush.bf16.msra.mxu0 %v2432
    %2607 = vmatpush.bf16.msra.mxu0 %v2430
    %2608 = vmatpush.bf16.msra.mxu0 %v2428
    %2609 = vmatmul.bf16.gmra.mxu0 %v2131
    %v2610 = vpop.f32.mrf.mxu0
    %v2611 = vadd.f32 %v2598, %v2610
    %v2612 = vpop.f32.mrf.mxu0
    %2613 = vdwg.mxu0
    %2614 = vmatpush.bf16.msra.mxu0 %v2458
    %2615 = vmatpush.bf16.msra.mxu0 %v2456
    %2616 = vmatpush.bf16.msra.mxu0 %v2454
    %2617 = vmatpush.bf16.msra.mxu0 %v2452
    %2618 = vmatpush.bf16.msra.mxu0 %v2450
    %2619 = vmatpush.bf16.msra.mxu0 %v2448
    %2620 = vmatpush.bf16.msra.mxu0 %v2446
    %2621 = vmatpush.bf16.msra.mxu0 %v2444
    %2622 = vmatmul.bf16.gmra.mxu0 %v2132
    %v2623 = vpop.f32.mrf.mxu0
    %v2624 = vadd.f32 %v2611, %v2623
    %v2625 = vpop.f32.mrf.mxu0
    %2626 = vdwg.mxu0
    %v2627 = vmax.f32 %v2572, 0.0
    %v2628 = vmax.f32 %v2624, 0.0
    %v2629 = vpack.c.bf16 %v2627, %v2627
    %v2630 = vpack.c.bf16 %v2628, %v2628
    %v2631 = vld [vmem:[#allocation8] sm:$0xff]
    %v2632 = vld [vmem:[#allocation8 + $0x8] sm:$0xff]
    %v2633 = vld [vmem:[#allocation8 + $0x10] sm:$0xff]
    %v2634 = vld [vmem:[#allocation8 + $0x18] sm:$0xff]
    %v2635 = vld [vmem:[#allocation8 + $0x20] sm:$0xff]
    %v2636 = vld [vmem:[#allocation8 + $0x28] sm:$0xff]
    %v2637 = vld [vmem:[#allocation8 + $0x30] sm:$0xff]
    %v2638 = vld [vmem:[#allocation8 + $0x38] sm:$0xff]
    %v2639 = vld [vmem:[#allocation8 + $0x40] sm:$0xff]
    %v2640 = vld [vmem:[#allocation8 + $0x48] sm:$0xff]
    %v2641 = vld [vmem:[#allocation8 + $0x50] sm:$0xff]
    %v2642 = vld [vmem:[#allocation8 + $0x58] sm:$0xff]
    %v2643 = vld [vmem:[#allocation8 + $0x60] sm:$0xff]
    %v2644 = vld [vmem:[#allocation8 + $0x68] sm:$0xff]
    %v2645 = vld [vmem:[#allocation8 + $0x70] sm:$0xff]
    %v2646 = vld [vmem:[#allocation8 + $0x78] sm:$0xff]
    %v2647 = vld [vmem:[#allocation8 + $0x80] sm:$0xff]
    %v2648 = vld [vmem:[#allocation8 + $0x88] sm:$0xff]
    %v2649 = vld [vmem:[#allocation8 + $0x90] sm:$0xff]
    %v2650 = vld [vmem:[#allocation8 + $0x98] sm:$0xff]
    %v2651 = vld [vmem:[#allocation8 + $0xa0] sm:$0xff]
    %v2652 = vld [vmem:[#allocation8 + $0xa8] sm:$0xff]
    %v2653 = vld [vmem:[#allocation8 + $0xb0] sm:$0xff]
    %v2654 = vld [vmem:[#allocation8 + $0xb8] sm:$0xff]
    %v2655 = vld [vmem:[#allocation8 + $0xc0] sm:$0xff]
    %v2656 = vld [vmem:[#allocation8 + $0xc8] sm:$0xff]
    %v2657 = vld [vmem:[#allocation8 + $0xd0] sm:$0xff]
    %v2658 = vld [vmem:[#allocation8 + $0xd8] sm:$0xff]
    %v2659 = vld [vmem:[#allocation8 + $0xe0] sm:$0xff]
    %v2660 = vld [vmem:[#allocation8 + $0xe8] sm:$0xff]
    %v2661 = vld [vmem:[#allocation8 + $0xf0] sm:$0xff]
    %v2662 = vld [vmem:[#allocation8 + $0xf8] sm:$0xff]
    %v2663 = vld [vmem:[#allocation13 + $0x6] sm:$0x3]
    %v2665 = vperm.slane %v2663, 0
    %v2666 = vperm.slane %v2663, 1
    %v2701 = vunpack.c.l.b16 %v2631
    %v2702 = vunpack.c.h.b16 %v2631
    %v2703 = vunpack.c.l.b16 %v2632
    %v2704 = vunpack.c.h.b16 %v2632
    %v2705 = vunpack.c.l.b16 %v2633
    %v2706 = vunpack.c.h.b16 %v2633
    %v2707 = vunpack.c.l.b16 %v2634
    %v2708 = vunpack.c.h.b16 %v2634
    %v2709 = vunpack.c.l.b16 %v2635
    %v2710 = vunpack.c.h.b16 %v2635
    %v2711 = vunpack.c.l.b16 %v2636
    %v2712 = vunpack.c.h.b16 %v2636
    %v2713 = vunpack.c.l.b16 %v2637
    %v2714 = vunpack.c.h.b16 %v2637
    %v2715 = vunpack.c.l.b16 %v2638
    %v2716 = vunpack.c.h.b16 %v2638
    %v2717 = vunpack.c.l.b16 %v2639
    %v2718 = vunpack.c.h.b16 %v2639
    %v2719 = vunpack.c.l.b16 %v2640
    %v2720 = vunpack.c.h.b16 %v2640
    %v2721 = vunpack.c.l.b16 %v2641
    %v2722 = vunpack.c.h.b16 %v2641
    %v2723 = vunpack.c.l.b16 %v2642
    %v2724 = vunpack.c.h.b16 %v2642
    %v2725 = vunpack.c.l.b16 %v2643
    %v2726 = vunpack.c.h.b16 %v2643
    %v2727 = vunpack.c.l.b16 %v2644
    %v2728 = vunpack.c.h.b16 %v2644
    %v2729 = vunpack.c.l.b16 %v2645
    %v2730 = vunpack.c.h.b16 %v2645
    %v2731 = vunpack.c.l.b16 %v2646
    %v2732 = vunpack.c.h.b16 %v2646
    %v2733 = vunpack.c.l.b16 %v2647
    %v2734 = vunpack.c.h.b16 %v2647
    %v2735 = vunpack.c.l.b16 %v2648
    %v2736 = vunpack.c.h.b16 %v2648
    %v2737 = vunpack.c.l.b16 %v2649
    %v2738 = vunpack.c.h.b16 %v2649
    %v2739 = vunpack.c.l.b16 %v2650
    %v2740 = vunpack.c.h.b16 %v2650
    %v2741 = vunpack.c.l.b16 %v2651
    %v2742 = vunpack.c.h.b16 %v2651
    %v2743 = vunpack.c.l.b16 %v2652
    %v2744 = vunpack.c.h.b16 %v2652
    %v2745 = vunpack.c.l.b16 %v2653
    %v2746 = vunpack.c.h.b16 %v2653
    %v2747 = vunpack.c.l.b16 %v2654
    %v2748 = vunpack.c.h.b16 %v2654
    %v2749 = vunpack.c.l.b16 %v2655
    %v2750 = vunpack.c.h.b16 %v2655
    %v2751 = vunpack.c.l.b16 %v2656
    %v2752 = vunpack.c.h.b16 %v2656
    %v2753 = vunpack.c.l.b16 %v2657
    %v2754 = vunpack.c.h.b16 %v2657
    %v2755 = vunpack.c.l.b16 %v2658
    %v2756 = vunpack.c.h.b16 %v2658
    %v2757 = vunpack.c.l.b16 %v2659
    %v2758 = vunpack.c.h.b16 %v2659
    %v2759 = vunpack.c.l.b16 %v2660
    %v2760 = vunpack.c.h.b16 %v2660
    %v2761 = vunpack.c.l.b16 %v2661
    %v2762 = vunpack.c.h.b16 %v2661
    %v2763 = vunpack.c.l.b16 %v2662
    %v2764 = vunpack.c.h.b16 %v2662
    %v2765 = vpack.c.b16 %v2703, %v2701
    %v2766 = vpack.c.b16 %v2704, %v2702
    %v2767 = vpack.c.b16 %v2707, %v2705
    %v2768 = vpack.c.b16 %v2708, %v2706
    %v2769 = vpack.c.b16 %v2711, %v2709
    %v2770 = vpack.c.b16 %v2712, %v2710
    %v2771 = vpack.c.b16 %v2715, %v2713
    %v2772 = vpack.c.b16 %v2716, %v2714
    %v2773 = vpack.c.b16 %v2719, %v2717
    %v2774 = vpack.c.b16 %v2720, %v2718
    %v2775 = vpack.c.b16 %v2723, %v2721
    %v2776 = vpack.c.b16 %v2724, %v2722
    %v2777 = vpack.c.b16 %v2727, %v2725
    %v2778 = vpack.c.b16 %v2728, %v2726
    %v2779 = vpack.c.b16 %v2731, %v2729
    %v2780 = vpack.c.b16 %v2732, %v2730
    %v2781 = vpack.c.b16 %v2735, %v2733
    %v2782 = vpack.c.b16 %v2736, %v2734
    %v2783 = vpack.c.b16 %v2739, %v2737
    %v2784 = vpack.c.b16 %v2740, %v2738
    %v2785 = vpack.c.b16 %v2743, %v2741
    %v2786 = vpack.c.b16 %v2744, %v2742
    %v2787 = vpack.c.b16 %v2747, %v2745
    %v2788 = vpack.c.b16 %v2748, %v2746
    %v2789 = vpack.c.b16 %v2751, %v2749
    %v2790 = vpack.c.b16 %v2752, %v2750
    %v2791 = vpack.c.b16 %v2755, %v2753
    %v2792 = vpack.c.b16 %v2756, %v2754
    %v2793 = vpack.c.b16 %v2759, %v2757
    %v2794 = vpack.c.b16 %v2760, %v2758
    %v2795 = vpack.c.b16 %v2763, %v2761
    %v2796 = vpack.c.b16 %v2764, %v2762
    %2829 = vmatpush.bf16.msra.mxu0 %v2779
    %2830 = vmatpush.bf16.msra.mxu0 %v2777
    %2831 = vmatpush.bf16.msra.mxu0 %v2775
    %2832 = vmatpush.bf16.msra.mxu0 %v2773
    %2833 = vmatpush.bf16.msra.mxu0 %v2771
    %2834 = vmatpush.bf16.msra.mxu0 %v2769
    %2835 = vmatpush.bf16.msra.mxu0 %v2767
    %2836 = vmatpush.bf16.msra.mxu0 %v2765
    %2837 = vmatmul.bf16.gmra.mxu0 %v2629
    %v2838 = vpop.f32.mrf.mxu0
    %v2839 = vadd.f32 %v2665, %v2838
    %v2840 = vpop.f32.mrf.mxu0
    %2841 = vdwg.mxu0
    %2842 = vmatpush.bf16.msra.mxu0 %v2795
    %2843 = vmatpush.bf16.msra.mxu0 %v2793
    %2844 = vmatpush.bf16.msra.mxu0 %v2791
    %2845 = vmatpush.bf16.msra.mxu0 %v2789
    %2846 = vmatpush.bf16.msra.mxu0 %v2787
    %2847 = vmatpush.bf16.msra.mxu0 %v2785
    %2848 = vmatpush.bf16.msra.mxu0 %v2783
    %2849 = vmatpush.bf16.msra.mxu0 %v2781
    %2850 = vmatmul.bf16.gmra.mxu0 %v2630
    %v2851 = vpop.f32.mrf.mxu0
    %v2852 = vadd.f32 %v2839, %v2851
    %v2853 = vpop.f32.mrf.mxu0
    %2854 = vdwg.mxu0
    %2855 = vmatpush.bf16.msra.mxu0 %v2780
    %2856 = vmatpush.bf16.msra.mxu0 %v2778
    %2857 = vmatpush.bf16.msra.mxu0 %v2776
    %2858 = vmatpush.bf16.msra.mxu0 %v2774
    %2859 = vmatpush.bf16.msra.mxu0 %v2772
    %2860 = vmatpush.bf16.msra.mxu0 %v2770
    %2861 = vmatpush.bf16.msra.mxu0 %v2768
    %2862 = vmatpush.bf16.msra.mxu0 %v2766
    %2863 = vmatmul.bf16.gmra.mxu0 %v2629
    %v2864 = vpop.f32.mrf.mxu0
    %v2865 = vadd.f32 %v2666, %v2864
    %v2866 = vpop.f32.mrf.mxu0
    %2867 = vdwg.mxu0
    %2868 = vmatpush.bf16.msra.mxu0 %v2796
    %2869 = vmatpush.bf16.msra.mxu0 %v2794
    %2870 = vmatpush.bf16.msra.mxu0 %v2792
    %2871 = vmatpush.bf16.msra.mxu0 %v2790
    %2872 = vmatpush.bf16.msra.mxu0 %v2788
    %2873 = vmatpush.bf16.msra.mxu0 %v2786
    %2874 = vmatpush.bf16.msra.mxu0 %v2784
    %2875 = vmatpush.bf16.msra.mxu0 %v2782
    %2876 = vmatmul.bf16.gmra.mxu0 %v2630
    %v2877 = vpop.f32.mrf.mxu0
    %v2878 = vadd.f32 %v2865, %v2877
    %v2879 = vpop.f32.mrf.mxu0
    %2880 = vdwg.mxu0
    %v2881 = vmax.f32 %v2852, 0.0
    %v2882 = vmax.f32 %v2878, 0.0
    %v2883 = vpack.c.bf16 %v2881, %v2881
    %v2884 = vpack.c.bf16 %v2882, %v2882
    %v2885 = vld [vmem:[#allocation10] sm:$0xf]
    %v2886 = vld [vmem:[#allocation10 + $0x4] sm:$0xf]
    %v2887 = vld [vmem:[#allocation10 + $0x8] sm:$0xf]
    %v2888 = vld [vmem:[#allocation10 + $0xc] sm:$0xf]
    %v2889 = vld [vmem:[#allocation10 + $0x10] sm:$0xf]
    %v2890 = vld [vmem:[#allocation10 + $0x14] sm:$0xf]
    %v2891 = vld [vmem:[#allocation10 + $0x18] sm:$0xf]
    %v2892 = vld [vmem:[#allocation10 + $0x1c] sm:$0xf]
    %v2893 = vld [vmem:[#allocation10 + $0x20] sm:$0xf]
    %v2894 = vld [vmem:[#allocation10 + $0x24] sm:$0xf]
    %v2895 = vld [vmem:[#allocation10 + $0x28] sm:$0xf]
    %v2896 = vld [vmem:[#allocation10 + $0x2c] sm:$0xf]
    %v2897 = vld [vmem:[#allocation10 + $0x30] sm:$0xf]
    %v2898 = vld [vmem:[#allocation10 + $0x34] sm:$0xf]
    %v2899 = vld [vmem:[#allocation10 + $0x38] sm:$0xf]
    %v2900 = vld [vmem:[#allocation10 + $0x3c] sm:$0xf]
    %v2901 = vld [vmem:[#allocation10 + $0x40] sm:$0xf]
    %v2902 = vld [vmem:[#allocation10 + $0x44] sm:$0xf]
    %v2903 = vld [vmem:[#allocation10 + $0x48] sm:$0xf]
    %v2904 = vld [vmem:[#allocation10 + $0x4c] sm:$0xf]
    %v2905 = vld [vmem:[#allocation10 + $0x50] sm:$0xf]
    %v2906 = vld [vmem:[#allocation10 + $0x54] sm:$0xf]
    %v2907 = vld [vmem:[#allocation10 + $0x58] sm:$0xf]
    %v2908 = vld [vmem:[#allocation10 + $0x5c] sm:$0xf]
    %v2909 = vld [vmem:[#allocation10 + $0x60] sm:$0xf]
    %v2910 = vld [vmem:[#allocation10 + $0x64] sm:$0xf]
    %v2911 = vld [vmem:[#allocation10 + $0x68] sm:$0xf]
    %v2912 = vld [vmem:[#allocation10 + $0x6c] sm:$0xf]
    %v2913 = vld [vmem:[#allocation10 + $0x70] sm:$0xf]
    %v2914 = vld [vmem:[#allocation10 + $0x74] sm:$0xf]
    %v2915 = vld [vmem:[#allocation10 + $0x78] sm:$0xf]
    %v2916 = vld [vmem:[#allocation10 + $0x7c] sm:$0xf]
    %v2917 = vld [vmem:[#allocation13 + $0x8] sm:$0x1]
    %v2919 = vperm.slane %v2917, 0
    %v2953 = vunpack.c.l.b16 %v2885
    %v2954 = vunpack.c.l.b16 %v2886
    %v2955 = vunpack.c.l.b16 %v2887
    %v2956 = vunpack.c.l.b16 %v2888
    %v2957 = vunpack.c.l.b16 %v2889
    %v2958 = vunpack.c.l.b16 %v2890
    %v2959 = vunpack.c.l.b16 %v2891
    %v2960 = vunpack.c.l.b16 %v2892
    %v2961 = vunpack.c.l.b16 %v2893
    %v2962 = vunpack.c.l.b16 %v2894
    %v2963 = vunpack.c.l.b16 %v2895
    %v2964 = vunpack.c.l.b16 %v2896
    %v2965 = vunpack.c.l.b16 %v2897
    %v2966 = vunpack.c.l.b16 %v2898
    %v2967 = vunpack.c.l.b16 %v2899
    %v2968 = vunpack.c.l.b16 %v2900
    %v2969 = vunpack.c.l.b16 %v2901
    %v2970 = vunpack.c.l.b16 %v2902
    %v2971 = vunpack.c.l.b16 %v2903
    %v2972 = vunpack.c.l.b16 %v2904
    %v2973 = vunpack.c.l.b16 %v2905
    %v2974 = vunpack.c.l.b16 %v2906
    %v2975 = vunpack.c.l.b16 %v2907
    %v2976 = vunpack.c.l.b16 %v2908
    %v2977 = vunpack.c.l.b16 %v2909
    %v2978 = vunpack.c.l.b16 %v2910
    %v2979 = vunpack.c.l.b16 %v2911
    %v2980 = vunpack.c.l.b16 %v2912
    %v2981 = vunpack.c.l.b16 %v2913
    %v2982 = vunpack.c.l.b16 %v2914
    %v2983 = vunpack.c.l.b16 %v2915
    %v2984 = vunpack.c.l.b16 %v2916
    %v2985 = vpack.c.b16 %v2954, %v2953
    %v2986 = vpack.c.b16 %v2956, %v2955
    %v2987 = vpack.c.b16 %v2958, %v2957
    %v2988 = vpack.c.b16 %v2960, %v2959
    %v2989 = vpack.c.b16 %v2962, %v2961
    %v2990 = vpack.c.b16 %v2964, %v2963
    %v2991 = vpack.c.b16 %v2966, %v2965
    %v2992 = vpack.c.b16 %v2968, %v2967
    %v2993 = vpack.c.b16 %v2970, %v2969
    %v2994 = vpack.c.b16 %v2972, %v2971
    %v2995 = vpack.c.b16 %v2974, %v2973
    %v2996 = vpack.c.b16 %v2976, %v2975
    %v2997 = vpack.c.b16 %v2978, %v2977
    %v2998 = vpack.c.b16 %v2980, %v2979
    %v2999 = vpack.c.b16 %v2982, %v2981
    %v3000 = vpack.c.b16 %v2984, %v2983
    %3017 = vmatpush.bf16.msra.mxu0 %v2992
    %3018 = vmatpush.bf16.msra.mxu0 %v2991
    %3019 = vmatpush.bf16.msra.mxu0 %v2990
    %3020 = vmatpush.bf16.msra.mxu0 %v2989
    %3021 = vmatpush.bf16.msra.mxu0 %v2988
    %3022 = vmatpush.bf16.msra.mxu0 %v2987
    %3023 = vmatpush.bf16.msra.mxu0 %v2986
    %3024 = vmatpush.bf16.msra.mxu0 %v2985
    %3025 = vmatmul.bf16.gmra.mxu0 %v2883
    %v3026 = vpop.f32.mrf.mxu0
    %v3027 = vadd.f32 %v2919, %v3026
    %v3028 = vpop.f32.mrf.mxu0
    %3029 = vdwg.mxu0
    %3030 = vmatpush.bf16.msra.mxu0 %v3000
    %3031 = vmatpush.bf16.msra.mxu0 %v2999
    %3032 = vmatpush.bf16.msra.mxu0 %v2998
    %3033 = vmatpush.bf16.msra.mxu0 %v2997
    %3034 = vmatpush.bf16.msra.mxu0 %v2996
    %3035 = vmatpush.bf16.msra.mxu0 %v2995
    %3036 = vmatpush.bf16.msra.mxu0 %v2994
    %3037 = vmatpush.bf16.msra.mxu0 %v2993
    %3038 = vmatmul.bf16.gmra.mxu0 %v2884
    %v3039 = vpop.f32.mrf.mxu0
    %v3040 = vadd.f32 %v3027, %v3039
    %v3041 = vpop.f32.mrf.mxu0
    %3042 = vdwg.mxu0
    %v3043 = vmax.f32 %v3040, 0.0
    %v3044 = vpack.c.bf16 %v3043, %v3043
    %v3045 = vld [vmem:[#allocation11] sm:$0xf]
    %v3046 = vld [vmem:[#allocation11 + $0x4] sm:$0xf]
    %v3047 = vld [vmem:[#allocation11 + $0x8] sm:$0xf]
    %v3048 = vld [vmem:[#allocation11 + $0xc] sm:$0xf]
    %v3049 = vld [vmem:[#allocation11 + $0x10] sm:$0xf]
    %v3050 = vld [vmem:[#allocation11 + $0x14] sm:$0xf]
    %v3051 = vld [vmem:[#allocation11 + $0x18] sm:$0xf]
    %v3052 = vld [vmem:[#allocation11 + $0x1c] sm:$0xf]
    %v3053 = vld [vmem:[#allocation11 + $0x20] sm:$0xf]
    %v3054 = vld [vmem:[#allocation11 + $0x24] sm:$0xf]
    %v3055 = vld [vmem:[#allocation11 + $0x28] sm:$0xf]
    %v3056 = vld [vmem:[#allocation11 + $0x2c] sm:$0xf]
    %v3057 = vld [vmem:[#allocation11 + $0x30] sm:$0xf]
    %v3058 = vld [vmem:[#allocation11 + $0x34] sm:$0xf]
    %v3059 = vld [vmem:[#allocation11 + $0x38] sm:$0xf]
    %v3060 = vld [vmem:[#allocation11 + $0x3c] sm:$0xf]
    %v3061 = vld [vmem:[#allocation13 + $0x9] sm:$0x1]
    %v3063 = vperm.slane %v3061, 0
    %v3081 = vunpack.c.l.b16 %v3045
    %v3082 = vunpack.c.l.b16 %v3046
    %v3083 = vunpack.c.l.b16 %v3047
    %v3084 = vunpack.c.l.b16 %v3048
    %v3085 = vunpack.c.l.b16 %v3049
    %v3086 = vunpack.c.l.b16 %v3050
    %v3087 = vunpack.c.l.b16 %v3051
    %v3088 = vunpack.c.l.b16 %v3052
    %v3089 = vunpack.c.l.b16 %v3053
    %v3090 = vunpack.c.l.b16 %v3054
    %v3091 = vunpack.c.l.b16 %v3055
    %v3092 = vunpack.c.l.b16 %v3056
    %v3093 = vunpack.c.l.b16 %v3057
    %v3094 = vunpack.c.l.b16 %v3058
    %v3095 = vunpack.c.l.b16 %v3059
    %v3096 = vunpack.c.l.b16 %v3060
    %v3097 = vpack.c.b16 %v3082, %v3081
    %v3098 = vpack.c.b16 %v3084, %v3083
    %v3099 = vpack.c.b16 %v3086, %v3085
    %v3100 = vpack.c.b16 %v3088, %v3087
    %v3101 = vpack.c.b16 %v3090, %v3089
    %v3102 = vpack.c.b16 %v3092, %v3091
    %v3103 = vpack.c.b16 %v3094, %v3093
    %v3104 = vpack.c.b16 %v3096, %v3095
    %3113 = vmatpush.bf16.msra.mxu0 %v3104
    %3114 = vmatpush.bf16.msra.mxu0 %v3103
    %3115 = vmatpush.bf16.msra.mxu0 %v3102
    %3116 = vmatpush.bf16.msra.mxu0 %v3101
    %3117 = vmatpush.bf16.msra.mxu0 %v3100
    %3118 = vmatpush.bf16.msra.mxu0 %v3099
    %3119 = vmatpush.bf16.msra.mxu0 %v3098
    %3120 = vmatpush.bf16.msra.mxu0 %v3097
    %3121 = vmatmul.bf16.gmra.mxu0 %v3044
    %v3122 = vpop.f32.mrf.mxu0
    %v3123 = vadd.f32 %v3063, %v3122
    %v3124 = vpop.f32.mrf.mxu0
    %3125 = vdwg.mxu0
    %v3126 = vmax.f32 %v3123, 0.0
    %v3127 = vpack.c.bf16 %v3126, %v3126
    %s3128 = scalar_lea.vmem [#allocation11], 64
    %v3129 = vld [vmem:[%s3128] sm:$0xf]
    %v3130 = vld [vmem:[%s3128 + $0x4] sm:$0xf]
    %v3131 = vld [vmem:[%s3128 + $0x8] sm:$0xf]
    %v3132 = vld [vmem:[%s3128 + $0xc] sm:$0xf]
    %v3133 = vld [vmem:[%s3128 + $0x10] sm:$0xf]
    %v3134 = vld [vmem:[%s3128 + $0x14] sm:$0xf]
    %v3135 = vld [vmem:[%s3128 + $0x18] sm:$0xf]
    %v3136 = vld [vmem:[%s3128 + $0x1c] sm:$0xf]
    %v3137 = vld [vmem:[%s3128 + $0x20] sm:$0xf]
    %v3138 = vld [vmem:[%s3128 + $0x24] sm:$0xf]
    %v3139 = vld [vmem:[%s3128 + $0x28] sm:$0xf]
    %v3140 = vld [vmem:[%s3128 + $0x2c] sm:$0xf]
    %v3141 = vld [vmem:[%s3128 + $0x30] sm:$0xf]
    %v3142 = vld [vmem:[%s3128 + $0x34] sm:$0xf]
    %v3143 = vld [vmem:[%s3128 + $0x38] sm:$0xf]
    %v3144 = vld [vmem:[%s3128 + $0x3c] sm:$0xf]
    %v3145 = vld [vmem:[#allocation13 + $0xa] sm:$0x1]
    %v3147 = vperm.slane %v3145, 0
    %v3165 = vunpack.c.l.b16 %v3129
    %v3166 = vunpack.c.l.b16 %v3130
    %v3167 = vunpack.c.l.b16 %v3131
    %v3168 = vunpack.c.l.b16 %v3132
    %v3169 = vunpack.c.l.b16 %v3133
    %v3170 = vunpack.c.l.b16 %v3134
    %v3171 = vunpack.c.l.b16 %v3135
    %v3172 = vunpack.c.l.b16 %v3136
    %v3173 = vunpack.c.l.b16 %v3137
    %v3174 = vunpack.c.l.b16 %v3138
    %v3175 = vunpack.c.l.b16 %v3139
    %v3176 = vunpack.c.l.b16 %v3140
    %v3177 = vunpack.c.l.b16 %v3141
    %v3178 = vunpack.c.l.b16 %v3142
    %v3179 = vunpack.c.l.b16 %v3143
    %v3180 = vunpack.c.l.b16 %v3144
    %v3181 = vpack.c.b16 %v3166, %v3165
    %v3182 = vpack.c.b16 %v3168, %v3167
    %v3183 = vpack.c.b16 %v3170, %v3169
    %v3184 = vpack.c.b16 %v3172, %v3171
    %v3185 = vpack.c.b16 %v3174, %v3173
    %v3186 = vpack.c.b16 %v3176, %v3175
    %v3187 = vpack.c.b16 %v3178, %v3177
    %v3188 = vpack.c.b16 %v3180, %v3179
    %3197 = vmatpush.bf16.msra.mxu0 %v3188
    %3198 = vmatpush.bf16.msra.mxu0 %v3187
    %3199 = vmatpush.bf16.msra.mxu0 %v3186
    %3200 = vmatpush.bf16.msra.mxu0 %v3185
    %3201 = vmatpush.bf16.msra.mxu0 %v3184
    %3202 = vmatpush.bf16.msra.mxu0 %v3183
    %3203 = vmatpush.bf16.msra.mxu0 %v3182
    %3204 = vmatpush.bf16.msra.mxu0 %v3181
    %3205 = vmatmul.bf16.gmra.mxu0 %v3127
    %v3206 = vpop.f32.mrf.mxu0
    %v3207 = vadd.f32 %v3147, %v3206
    %v3208 = vpop.f32.mrf.mxu0
    %3209 = vdwg.mxu0
    %v3210 = vmax.f32 %v3207, 0.0
    %v3211 = vpack.c.bf16 %v3210, %v3210
    %s3212 = scalar_lea.vmem [#allocation11], 128
    %v3213 = vld [vmem:[%s3212] sm:$0xf]
    %v3214 = vld [vmem:[%s3212 + $0x4] sm:$0xf]
    %v3215 = vld [vmem:[%s3212 + $0x8] sm:$0xf]
    %v3216 = vld [vmem:[%s3212 + $0xc] sm:$0xf]
    %v3217 = vld [vmem:[%s3212 + $0x10] sm:$0xf]
    %v3218 = vld [vmem:[%s3212 + $0x14] sm:$0xf]
    %v3219 = vld [vmem:[%s3212 + $0x18] sm:$0xf]
    %v3220 = vld [vmem:[%s3212 + $0x1c] sm:$0xf]
    %v3221 = vld [vmem:[%s3212 + $0x20] sm:$0xf]
    %v3222 = vld [vmem:[%s3212 + $0x24] sm:$0xf]
    %v3223 = vld [vmem:[%s3212 + $0x28] sm:$0xf]
    %v3224 = vld [vmem:[%s3212 + $0x2c] sm:$0xf]
    %v3225 = vld [vmem:[%s3212 + $0x30] sm:$0xf]
    %v3226 = vld [vmem:[%s3212 + $0x34] sm:$0xf]
    %v3227 = vld [vmem:[%s3212 + $0x38] sm:$0xf]
    %v3228 = vld [vmem:[%s3212 + $0x3c] sm:$0xf]
    %v3229 = vld [vmem:[#allocation13 + $0xb] sm:$0x1]
    %v3231 = vperm.slane %v3229, 0
    %v3249 = vunpack.c.l.b16 %v3213
    %v3250 = vunpack.c.l.b16 %v3214
    %v3251 = vunpack.c.l.b16 %v3215
    %v3252 = vunpack.c.l.b16 %v3216
    %v3253 = vunpack.c.l.b16 %v3217
    %v3254 = vunpack.c.l.b16 %v3218
    %v3255 = vunpack.c.l.b16 %v3219
    %v3256 = vunpack.c.l.b16 %v3220
    %v3257 = vunpack.c.l.b16 %v3221
    %v3258 = vunpack.c.l.b16 %v3222
    %v3259 = vunpack.c.l.b16 %v3223
    %v3260 = vunpack.c.l.b16 %v3224
    %v3261 = vunpack.c.l.b16 %v3225
    %v3262 = vunpack.c.l.b16 %v3226
    %v3263 = vunpack.c.l.b16 %v3227
    %v3264 = vunpack.c.l.b16 %v3228
    %v3265 = vpack.c.b16 %v3250, %v3249
    %v3266 = vpack.c.b16 %v3252, %v3251
    %v3267 = vpack.c.b16 %v3254, %v3253
    %v3268 = vpack.c.b16 %v3256, %v3255
    %v3269 = vpack.c.b16 %v3258, %v3257
    %v3270 = vpack.c.b16 %v3260, %v3259
    %v3271 = vpack.c.b16 %v3262, %v3261
    %v3272 = vpack.c.b16 %v3264, %v3263
    %3281 = vmatpush.bf16.msra.mxu0 %v3272
    %3282 = vmatpush.bf16.msra.mxu0 %v3271
    %3283 = vmatpush.bf16.msra.mxu0 %v3270
    %3284 = vmatpush.bf16.msra.mxu0 %v3269
    %3285 = vmatpush.bf16.msra.mxu0 %v3268
    %3286 = vmatpush.bf16.msra.mxu0 %v3267
    %3287 = vmatpush.bf16.msra.mxu0 %v3266
    %3288 = vmatpush.bf16.msra.mxu0 %v3265
    %3289 = vmatmul.bf16.gmra.mxu0 %v3211
    %v3290 = vpop.f32.mrf.mxu0
    %v3291 = vadd.f32 %v3231, %v3290
    %v3292 = vpop.f32.mrf.mxu0
    %3293 = vdwg.mxu0
    %v3294 = vmax.f32 %v3291, 0.0
    %v3295 = vpack.c.bf16 %v3294, %v3294
    %s3296 = scalar_lea.vmem [#allocation11], 192
    %v3297 = vld [vmem:[%s3296] sm:$0xf]
    %v3298 = vld [vmem:[%s3296 + $0x4] sm:$0xf]
    %v3299 = vld [vmem:[%s3296 + $0x8] sm:$0xf]
    %v3300 = vld [vmem:[%s3296 + $0xc] sm:$0xf]
    %v3301 = vld [vmem:[%s3296 + $0x10] sm:$0xf]
    %v3302 = vld [vmem:[%s3296 + $0x14] sm:$0xf]
    %v3303 = vld [vmem:[%s3296 + $0x18] sm:$0xf]
    %v3304 = vld [vmem:[%s3296 + $0x1c] sm:$0xf]
    %v3305 = vld [vmem:[%s3296 + $0x20] sm:$0xf]
    %v3306 = vld [vmem:[%s3296 + $0x24] sm:$0xf]
    %v3307 = vld [vmem:[%s3296 + $0x28] sm:$0xf]
    %v3308 = vld [vmem:[%s3296 + $0x2c] sm:$0xf]
    %v3309 = vld [vmem:[%s3296 + $0x30] sm:$0xf]
    %v3310 = vld [vmem:[%s3296 + $0x34] sm:$0xf]
    %v3311 = vld [vmem:[%s3296 + $0x38] sm:$0xf]
    %v3312 = vld [vmem:[%s3296 + $0x3c] sm:$0xf]
    %v3313 = vld [vmem:[#allocation13 + $0xc] sm:$0x1]
    %v3315 = vperm.slane %v3313, 0
    %v3333 = vunpack.c.l.b16 %v3297
    %v3334 = vunpack.c.l.b16 %v3298
    %v3335 = vunpack.c.l.b16 %v3299
    %v3336 = vunpack.c.l.b16 %v3300
    %v3337 = vunpack.c.l.b16 %v3301
    %v3338 = vunpack.c.l.b16 %v3302
    %v3339 = vunpack.c.l.b16 %v3303
    %v3340 = vunpack.c.l.b16 %v3304
    %v3341 = vunpack.c.l.b16 %v3305
    %v3342 = vunpack.c.l.b16 %v3306
    %v3343 = vunpack.c.l.b16 %v3307
    %v3344 = vunpack.c.l.b16 %v3308
    %v3345 = vunpack.c.l.b16 %v3309
    %v3346 = vunpack.c.l.b16 %v3310
    %v3347 = vunpack.c.l.b16 %v3311
    %v3348 = vunpack.c.l.b16 %v3312
    %v3349 = vpack.c.b16 %v3334, %v3333
    %v3350 = vpack.c.b16 %v3336, %v3335
    %v3351 = vpack.c.b16 %v3338, %v3337
    %v3352 = vpack.c.b16 %v3340, %v3339
    %v3353 = vpack.c.b16 %v3342, %v3341
    %v3354 = vpack.c.b16 %v3344, %v3343
    %v3355 = vpack.c.b16 %v3346, %v3345
    %v3356 = vpack.c.b16 %v3348, %v3347
    %3365 = vmatpush.bf16.msra.mxu0 %v3356
    %3366 = vmatpush.bf16.msra.mxu0 %v3355
    %3367 = vmatpush.bf16.msra.mxu0 %v3354
    %3368 = vmatpush.bf16.msra.mxu0 %v3353
    %3369 = vmatpush.bf16.msra.mxu0 %v3352
    %3370 = vmatpush.bf16.msra.mxu0 %v3351
    %3371 = vmatpush.bf16.msra.mxu0 %v3350
    %3372 = vmatpush.bf16.msra.mxu0 %v3349
    %3373 = vmatmul.bf16.gmra.mxu0 %v3295
    %v3374 = vpop.f32.mrf.mxu0
    %v3375 = vadd.f32 %v3315, %v3374
    %v3376 = vpop.f32.mrf.mxu0
    %3377 = vdwg.mxu0
    %v3378 = vmax.f32 %v3375, 0.0
    %v3379 = vpack.c.bf16 %v3378, %v3378
    %s3380 = scalar_lea.vmem [#allocation11], 256
    %v3381 = vld [vmem:[%s3380] sm:$0xf]
    %v3382 = vld [vmem:[%s3380 + $0x4] sm:$0xf]
    %v3383 = vld [vmem:[%s3380 + $0x8] sm:$0xf]
    %v3384 = vld [vmem:[%s3380 + $0xc] sm:$0xf]
    %v3385 = vld [vmem:[%s3380 + $0x10] sm:$0xf]
    %v3386 = vld [vmem:[%s3380 + $0x14] sm:$0xf]
    %v3387 = vld [vmem:[%s3380 + $0x18] sm:$0xf]
    %v3388 = vld [vmem:[%s3380 + $0x1c] sm:$0xf]
    %v3389 = vld [vmem:[%s3380 + $0x20] sm:$0xf]
    %v3390 = vld [vmem:[%s3380 + $0x24] sm:$0xf]
    %v3391 = vld [vmem:[%s3380 + $0x28] sm:$0xf]
    %v3392 = vld [vmem:[%s3380 + $0x2c] sm:$0xf]
    %v3393 = vld [vmem:[%s3380 + $0x30] sm:$0xf]
    %v3394 = vld [vmem:[%s3380 + $0x34] sm:$0xf]
    %v3395 = vld [vmem:[%s3380 + $0x38] sm:$0xf]
    %v3396 = vld [vmem:[%s3380 + $0x3c] sm:$0xf]
    %v3397 = vld [vmem:[#allocation13 + $0xd] sm:$0x1]
    %v3399 = vperm.slane %v3397, 0
    %v3417 = vunpack.c.l.b16 %v3381
    %v3418 = vunpack.c.l.b16 %v3382
    %v3419 = vunpack.c.l.b16 %v3383
    %v3420 = vunpack.c.l.b16 %v3384
    %v3421 = vunpack.c.l.b16 %v3385
    %v3422 = vunpack.c.l.b16 %v3386
    %v3423 = vunpack.c.l.b16 %v3387
    %v3424 = vunpack.c.l.b16 %v3388
    %v3425 = vunpack.c.l.b16 %v3389
    %v3426 = vunpack.c.l.b16 %v3390
    %v3427 = vunpack.c.l.b16 %v3391
    %v3428 = vunpack.c.l.b16 %v3392
    %v3429 = vunpack.c.l.b16 %v3393
    %v3430 = vunpack.c.l.b16 %v3394
    %v3431 = vunpack.c.l.b16 %v3395
    %v3432 = vunpack.c.l.b16 %v3396
    %v3433 = vpack.c.b16 %v3418, %v3417
    %v3434 = vpack.c.b16 %v3420, %v3419
    %v3435 = vpack.c.b16 %v3422, %v3421
    %v3436 = vpack.c.b16 %v3424, %v3423
    %v3437 = vpack.c.b16 %v3426, %v3425
    %v3438 = vpack.c.b16 %v3428, %v3427
    %v3439 = vpack.c.b16 %v3430, %v3429
    %v3440 = vpack.c.b16 %v3432, %v3431
    %3449 = vmatpush.bf16.msra.mxu0 %v3440
    %3450 = vmatpush.bf16.msra.mxu0 %v3439
    %3451 = vmatpush.bf16.msra.mxu0 %v3438
    %3452 = vmatpush.bf16.msra.mxu0 %v3437
    %3453 = vmatpush.bf16.msra.mxu0 %v3436
    %3454 = vmatpush.bf16.msra.mxu0 %v3435
    %3455 = vmatpush.bf16.msra.mxu0 %v3434
    %3456 = vmatpush.bf16.msra.mxu0 %v3433
    %3457 = vmatmul.bf16.gmra.mxu0 %v3379
    %v3458 = vpop.f32.mrf.mxu0
    %v3459 = vadd.f32 %v3399, %v3458
    %v3460 = vpop.f32.mrf.mxu0
    %3461 = vdwg.mxu0
    %v3462 = vmax.f32 %v3459, 0.0
    %v3463 = vpack.c.bf16 %v3462, %v3462
    %s3464 = scalar_lea.vmem [#allocation11], 320
    %v3465 = vld [vmem:[%s3464] sm:$0xf]
    %v3466 = vld [vmem:[%s3464 + $0x4] sm:$0xf]
    %v3467 = vld [vmem:[%s3464 + $0x8] sm:$0xf]
    %v3468 = vld [vmem:[%s3464 + $0xc] sm:$0xf]
    %v3469 = vld [vmem:[%s3464 + $0x10] sm:$0xf]
    %v3470 = vld [vmem:[%s3464 + $0x14] sm:$0xf]
    %v3471 = vld [vmem:[%s3464 + $0x18] sm:$0xf]
    %v3472 = vld [vmem:[%s3464 + $0x1c] sm:$0xf]
    %v3473 = vld [vmem:[%s3464 + $0x20] sm:$0xf]
    %v3474 = vld [vmem:[%s3464 + $0x24] sm:$0xf]
    %v3475 = vld [vmem:[%s3464 + $0x28] sm:$0xf]
    %v3476 = vld [vmem:[%s3464 + $0x2c] sm:$0xf]
    %v3477 = vld [vmem:[%s3464 + $0x30] sm:$0xf]
    %v3478 = vld [vmem:[%s3464 + $0x34] sm:$0xf]
    %v3479 = vld [vmem:[%s3464 + $0x38] sm:$0xf]
    %v3480 = vld [vmem:[%s3464 + $0x3c] sm:$0xf]
    %v3481 = vld [vmem:[#allocation13 + $0xe] sm:$0x1]
    %v3483 = vperm.slane %v3481, 0
    %v3501 = vunpack.c.l.b16 %v3465
    %v3502 = vunpack.c.l.b16 %v3466
    %v3503 = vunpack.c.l.b16 %v3467
    %v3504 = vunpack.c.l.b16 %v3468
    %v3505 = vunpack.c.l.b16 %v3469
    %v3506 = vunpack.c.l.b16 %v3470
    %v3507 = vunpack.c.l.b16 %v3471
    %v3508 = vunpack.c.l.b16 %v3472
    %v3509 = vunpack.c.l.b16 %v3473
    %v3510 = vunpack.c.l.b16 %v3474
    %v3511 = vunpack.c.l.b16 %v3475
    %v3512 = vunpack.c.l.b16 %v3476
    %v3513 = vunpack.c.l.b16 %v3477
    %v3514 = vunpack.c.l.b16 %v3478
    %v3515 = vunpack.c.l.b16 %v3479
    %v3516 = vunpack.c.l.b16 %v3480
    %v3517 = vpack.c.b16 %v3502, %v3501
    %v3518 = vpack.c.b16 %v3504, %v3503
    %v3519 = vpack.c.b16 %v3506, %v3505
    %v3520 = vpack.c.b16 %v3508, %v3507
    %v3521 = vpack.c.b16 %v3510, %v3509
    %v3522 = vpack.c.b16 %v3512, %v3511
    %v3523 = vpack.c.b16 %v3514, %v3513
    %v3524 = vpack.c.b16 %v3516, %v3515
    %3533 = vmatpush.bf16.msra.mxu0 %v3524
    %3534 = vmatpush.bf16.msra.mxu0 %v3523
    %3535 = vmatpush.bf16.msra.mxu0 %v3522
    %3536 = vmatpush.bf16.msra.mxu0 %v3521
    %3537 = vmatpush.bf16.msra.mxu0 %v3520
    %3538 = vmatpush.bf16.msra.mxu0 %v3519
    %3539 = vmatpush.bf16.msra.mxu0 %v3518
    %3540 = vmatpush.bf16.msra.mxu0 %v3517
    %3541 = vmatmul.bf16.gmra.mxu0 %v3463
    %v3542 = vpop.f32.mrf.mxu0
    %v3543 = vadd.f32 %v3483, %v3542
    %v3544 = vpop.f32.mrf.mxu0
    %3545 = vdwg.mxu0
    %v3546 = vpack.c.bf16 %v3543, %v3543
    %3547 = vst [vmem:[#allocation14] sm:$0x1] %v3546
    // Predicated region
    $region58: #{tpu_custom_call.1} parent=1 // pred_check
      _
    $region59: #{tpu_custom_call.1} parent=1 // pred_check_branch
      %3549 = sbr.rel (0) target = $region61
    $region60: #{tpu_custom_call.1} parent=1 // pred_region
      %3551 = vsyncadd [#allocation4], 0
      %s3553 = sshll.u32 [#allocation14], 4
      %s3554 = int_to_ptr.vmem [resolvable:$true] %s3553
      %s3555 = sshll.u32 %s7, 4
      %s3556 = int_to_ptr.hbm [resolvable:$true] %s3555
      %3558 = dma.vmem_to_hbm [thread:$0]  %s3554, 16, %s3556, [#allocation4]
    $region61: #{tpu_custom_call.1} parent=1 // pred_fallthru
      _
    // Predicated region
    $region62: #{tpu_custom_call.1} parent=1 // pred_check
      _
    $region63: #{tpu_custom_call.1} parent=1 // pred_check_branch
      %3560 = sbr.rel (0) target = $region65
    $region64: #{tpu_custom_call.1} parent=1 // pred_region
      %3562 = dma.done [#allocation4], 16
    $region65: #{tpu_custom_call.1} parent=1 // pred_fallthru
      _
    %3563 = vsyncpa [#allocation3], 1
    %3564 = vsyncpa [#allocation6], 1
    %3565 = vsyncpa [#allocation9], 1
    %3566 = vsyncpa [#allocation12], 1
    %3567 = vsyncpa [#allocation4], 1

</llo_original>
